<compile_context>
chip_gen: v6e
topology: v6e:2x2x1
jax: 0.10.0
libtpu: 0.0.40
codegen_flags: <defaults>
</compile_context>

<pallas_src>
import jax
import jax.numpy as jnp
from jax import lax
from jax.experimental import pallas as pl
from jax.experimental.pallas import tpu as pltpu

# Fixed by the module definition.
C_IN = 12        # input channels
C_H1 = 128       # layer_1 output channels
C_H2 = 128       # layer_2 output channels
C_OUT = 8        # layer_3 output channels
KSIZE = 129      # conv kernel size
PAD = 64         # conv padding -> "same" length output
KC = KSIZE * C_IN           # 1548: im2col feature width for the x-groups
_TAP_GROUP = 2   # trace-time unroll factor of the 128-deep tap loops


# ----------------------------- Pallas kernel ------------------------------ #
def _fused_cnn_kernel(xcol_ref, w1_ref, b1_ref,
                      w2a_ref, w2b_ref, b2_ref,
                      w3a_ref, w3b_ref, w3c_ref, b3_ref,
                      o_ref,
                      act1_ref, act2_ref):
    # xcol_ref : (L, K*12)  bf16   im2col of padded x: xcol[l, k*12+c]=x_pad[l+k,c]
    # w1_ref   : (K*12, 128) bf16  layer-1 weight, flattened (k, c_in) major
    # w2a_ref  : (K*12, 128) bf16  layer-2 weight, "x" channel group, flattened
    # w2b_ref  : (K, 128, 128) bf16  layer-2 weight, "y1" channel group, per tap
    # w3a_ref  : (8, K*12) bf16    layer-3 weight, "x" group (C_out on sublanes)
    # w3b/w3c  : (K, 8, 128) bf16  layer-3 weight, "y1"/"y2" groups, per tap
    # b*_ref   : f32 biases
    # o_ref    : (8, L) f32        NCW output slab for this batch element
    # act1/2   : (L+2*PAD, 128) f32 zero-padded y1 / y2 (VMEM scratch)
    L = xcol_ref.shape[0]

    # Zero ONLY the PAD border rows of the padded activation scratch.
    # NOTE: correctness relies on these border rows never being written below;
    # the interior [PAD:PAD+L] is fully overwritten every grid step.
    act1_ref[0:PAD, :] = jnp.zeros((PAD, C_H1), jnp.float32)
    act1_ref[PAD + L:PAD + L + PAD, :] = jnp.zeros((PAD, C_H1), jnp.float32)
    act2_ref[0:PAD, :] = jnp.zeros((PAD, C_H2), jnp.float32)
    act2_ref[PAD + L:PAD + L + PAD, :] = jnp.zeros((PAD, C_H2), jnp.float32)

    def tap_loop(tap, acc0):
        """acc = tap(K-1, ... tap(1, tap(0, acc0))) with a register carry."""
        n_full = KSIZE // _TAP_GROUP

        def body(g, acc):
            k0 = g * _TAP_GROUP
            for j in range(_TAP_GROUP):            # unrolled at trace time
                acc = tap(k0 + j, acc)
            return acc

        acc = lax.fori_loop(0, n_full, body, acc0)
        for k in range(n_full * _TAP_GROUP, KSIZE):    # remainder taps
            acc = tap(k, acc)
        return acc

    # ---- layer 1: one bf16 matmul, contraction depth K*12 = 1548 -----------
    y1 = jnp.dot(xcol_ref[...], w1_ref[...],
                 preferred_element_type=jnp.float32) + b1_ref[...]
    y1 = y1 * y1 * y1
    act1_ref[PAD:PAD + L, :] = y1

    # ---- layer 2: Conv1d(140 -> 128) on cat[x, y1] + bias + cube ------------
    # x-group: one 1548-deep matmul; y1-group: 129-tap loop, 128-deep matmuls.
    acc2_0 = jnp.dot(xcol_ref[...], w2a_ref[...],
                     preferred_element_type=jnp.float32)

    def tap2(k, acc):
        a = act1_ref[pl.ds(k, L), :].astype(jnp.bfloat16)
        return acc + jnp.dot(a, w2b_ref[k], preferred_element_type=jnp.float32)

    y2 = tap_loop(tap2, acc2_0) + b2_ref[...]
    y2 = y2 * y2 * y2
    act2_ref[PAD:PAD + L, :] = y2

    # ---- layer 3: Conv1d(268 -> 8) on cat[x, y1, y2], accumulated transposed
    # so the result is already NCW (C_out, L) and the store hits o_ref directly.
    acc3_0 = lax.dot_general(w3a_ref[...], xcol_ref[...],
                             dimension_numbers=(((1,), (1,)), ((), ())),
                             preferred_element_type=jnp.float32)   # (8, L)

    def tap3(k, acc):
        a1 = act1_ref[pl.ds(k, L), :].astype(jnp.bfloat16)
        a2 = act2_ref[pl.ds(k, L), :].astype(jnp.bfloat16)
        acc = acc + lax.dot_general(w3b_ref[k], a1,
                                    dimension_numbers=(((1,), (1,)), ((), ())),
                                    preferred_element_type=jnp.float32)
        acc = acc + lax.dot_general(w3c_ref[k], a2,
                                    dimension_numbers=(((1,), (1,)), ((), ())),
                                    preferred_element_type=jnp.float32)
        return acc

    y3 = tap_loop(tap3, acc3_0) + b3_ref[...]
    o_ref[...] = (y3 * y3 * y3).astype(o_ref.dtype)


# ------------------------------ JAX wrapper -------------------------------- #
def prepare_params(params):
    """One-time reformat of PyTorch-layout Conv1d params into kernel layouts."""
    (w1, b1), (w2, b2), (w3, b3) = params
    bf16, f32 = jnp.bfloat16, jnp.float32
    # layer 1: (128, 12, 129) -> (129, 12, 128) -> flat (1548, 128), (k, c) major.
    w1f = jnp.transpose(w1, (2, 1, 0)).reshape(KC, C_H1).astype(bf16)
    # layer 2: split input channels into the concat groups "x" (12) / "y1" (128).
    w2a = jnp.transpose(w2[:, :C_IN, :], (2, 1, 0)).reshape(KC, C_H2).astype(bf16)
    w2b = jnp.transpose(w2[:, C_IN:, :], (2, 1, 0)).astype(bf16)   # (K, 128, 128)
    # layer 3: x-group flattened for transposed accumulation, (8, K*12);
    # y-groups kept as (K, 8, 128) so the tiny C_out=8 sits on sublanes.
    w3a = jnp.transpose(w3[:, :C_IN, :], (0, 2, 1)).reshape(C_OUT, KC).astype(bf16)
    w3b = jnp.transpose(w3[:, C_IN:C_IN + C_H1, :], (2, 0, 1)).astype(bf16)
    w3c = jnp.transpose(w3[:, C_IN + C_H1:, :], (2, 0, 1)).astype(bf16)
    return dict(
        w1=w1f, b1=b1.reshape(1, C_H1).astype(f32),
        w2a=w2a, w2b=w2b, b2=b2.reshape(1, C_H2).astype(f32),
        w3a=w3a, w3b=w3b, w3c=w3c, b3=b3.reshape(C_OUT, 1).astype(f32),
    )


@jax.jit
def simple_cnn_sigmoid_forward(x_ncw, kparams):
    """x_ncw: (B, 12, L) NCW like the PyTorch module; returns (B, 8, L) f32."""
    B, _, L = x_ncw.shape
    L_pad = L + 2 * PAD

    # Wrapper-side im2col of the (tiny) 12-channel input: pure layout plumbing
    # that turns the three depth-12 concat groups into 1548-deep matmuls.
    x_blc = jnp.transpose(x_ncw, (0, 2, 1)).astype(jnp.float32)     # (B, L, 12)
    x_pad = jnp.pad(x_blc, ((0, 0), (PAD, PAD), (0, 0)))            # (B, L+128, 12)
    x_col = jnp.stack([x_pad[:, k:k + L, :] for k in range(KSIZE)], axis=2)
    x_col = x_col.reshape(B, L, KC).astype(jnp.bfloat16)            # (B, L, 1548)

    kern = pl.pallas_call(
        _fused_cnn_kernel,
        out_shape=jax.ShapeDtypeStruct((B, C_OUT, L), jnp.float32),
        grid_spec=pltpu.PrefetchScalarGridSpec(
            num_scalar_prefetch=0,
            grid=(B,),
            in_specs=[
                pl.BlockSpec((None, L, KC), lambda b: (b, 0, 0)),         # x_col
                pl.BlockSpec((KC, C_H1), lambda b: (0, 0)),               # w1
                pl.BlockSpec((1, C_H1), lambda b: (0, 0)),                # b1
                pl.BlockSpec((KC, C_H2), lambda b: (0, 0)),               # w2a
                pl.BlockSpec((KSIZE, C_H1, C_H2), lambda b: (0, 0, 0)),   # w2b
                pl.BlockSpec((1, C_H2), lambda b: (0, 0)),                # b2
                pl.BlockSpec((C_OUT, KC), lambda b: (0, 0)),              # w3a
                pl.BlockSpec((KSIZE, C_OUT, C_H1), lambda b: (0, 0, 0)),  # w3b
                pl.BlockSpec((KSIZE, C_OUT, C_H2), lambda b: (0, 0, 0)),  # w3c
                pl.BlockSpec((C_OUT, 1), lambda b: (0, 0)),               # b3
            ],
            out_specs=pl.BlockSpec((None, C_OUT, L), lambda b: (b, 0, 0)),
            scratch_shapes=[
                pltpu.VMEM((L_pad, C_H1), jnp.float32),    # padded y1
                pltpu.VMEM((L_pad, C_H2), jnp.float32),    # padded y2
            ],
        ),
        compiler_params=pltpu.CompilerParams(
            # Batch across TensorCores on multi-TC chips (v7x).  For B == 1 a
            # core-parallel split of L (or the tap range) would be needed to
            # use the second core; not required for this B=2 test.
            dimension_semantics=("parallel",),
            vmem_limit_bytes=24 * 1024 * 1024,   # ~12 MiB actually needed
        ),
    )
    return kern(x_col, kparams["w1"], kparams["b1"],
                kparams["w2a"], kparams["w2b"], kparams["b2"],
                kparams["w3a"], kparams["w3b"], kparams["w3c"], kparams["b3"])


# ------------------------- params (PyTorch layout) ------------------------- #
def init_params(key):
    # (C_out, C_in, K) per layer, matching the module __init__.
    layer_defs = [(C_IN, C_H1, KSIZE), (C_IN + C_H1, C_H2, KSIZE),
                  (C_IN + C_H1 + C_H2, C_OUT, KSIZE)]
    params = []
    for c_in, c_out, k in layer_defs:
        key, kw, kb = jax.random.split(key, 3)
        bound = (1.0 / (c_in * k)) ** 0.5   # PyTorch Conv1d default init bound
        w = jax.random.uniform(kw, (c_out, c_in, k), jnp.float32, -bound, bound)
        b = jax.random.uniform(kb, (c_out,), jnp.float32, -bound, bound)
        params.append((w, b))
    return params


# ------------------------------- references -------------------------------- #
def _ref_layer(x_ncw, w, b, operand_dtype):
    y = lax.conv_general_dilated(
        x_ncw.astype(operand_dtype), w.astype(operand_dtype),
        window_strides=(1,), padding=[(PAD, PAD)],
        dimension_numbers=("NCH", "OIH", "NCH"),
        precision=lax.Precision.HIGHEST,
        preferred_element_type=jnp.float32)
    y = y + b[None, :, None].astype(jnp.float32)
    return y * y * y


def ref_forward(x_ncw, params, operand_dtype=jnp.float32):
    """operand_dtype=bf16 replicates the kernel's mixed-precision rounding
    points exactly (bf16 conv operands, f32 accumulation / bias / cube)."""
    (w1, b1), (w2, b2), (w3, b3) = params
    x0 = x_ncw.astype(jnp.float32)
    y1 = _ref_layer(x0, w1, b1, operand_dtype)
    y2 = _ref_layer(jnp.concatenate([x0, y1], axis=1), w2, b2, operand_dtype)
    return _ref_layer(jnp.concatenate([x0, y1, y2], axis=1), w3, b3, operand_dtype)


# ---------------------------------- main ------------------------------------ #
if __name__ == "__main__":
    key = jax.random.PRNGKey(0)
    key, kx, kp = jax.random.split(key, 3)

    B, L = 2, 64                                   # NCW input, as nn.Conv1d expects
    x = jax.random.normal(kx, (B, C_IN, L), jnp.float32)
    params = init_params(kp)
    kparams = prepare_params(params)               # one-time weight reformat

    out = jax.block_until_ready(simple_cnn_sigmoid_forward(x, kparams))
    assert out.shape == (B, C_OUT, L), out.shape

    # 1) Tight structural check vs a reference that applies the SAME bf16
    #    operand rounding (catches tap-offset / concat-group / bias bugs,
    #    insensitive to the deliberate mixed-precision choice).
    ref_b = jax.block_until_ready(ref_forward(x, params, jnp.bfloat16))
    assert jnp.allclose(out, ref_b, rtol=2e-2, atol=2e-3), (
        float(jnp.max(jnp.abs(out - ref_b))))

    # 2) Looser check vs the full-f32 reference: bf16 operand rounding is
    #    amplified by the three stacked cubes (module is nominally f64).
    ref_f = jax.block_until_ready(ref_forward(x, params, jnp.float32))
    assert jnp.allclose(out, ref_f, rtol=5e-2, atol=2e-2), (
        float(jnp.max(jnp.abs(out - ref_f))))

    print("KERNEL_OK")
</pallas_src>

<mosaic_0001>
module attributes {stable_mosaic.version = 11 : i64} {
  func.func @_fused_cnn_kernel(%arg0: i32, %arg1: memref<1x64x1548xbf16, #tpu.memory_space<vmem>>, %arg2: memref<1548x128xbf16, #tpu.memory_space<vmem>>, %arg3: memref<1x128xf32, #tpu.memory_space<vmem>>, %arg4: memref<1548x128xbf16, #tpu.memory_space<vmem>>, %arg5: memref<129x128x128xbf16, #tpu.memory_space<vmem>>, %arg6: memref<1x128xf32, #tpu.memory_space<vmem>>, %arg7: memref<8x1548xbf16, #tpu.memory_space<vmem>>, %arg8: memref<129x8x128xbf16, #tpu.memory_space<vmem>>, %arg9: memref<129x8x128xbf16, #tpu.memory_space<vmem>>, %arg10: memref<8x1xf32, #tpu.memory_space<vmem>>, %arg11: memref<1x8x64xf32, #tpu.memory_space<vmem>>, %arg12: memref<192x128xf32, #tpu.memory_space<vmem>>, %arg13: memref<192x128xf32, #tpu.memory_space<vmem>>) attributes {dimension_semantics = [#tpu.dimension_semantics<parallel>], iteration_bounds = array<i64: 2>, scalar_prefetch = 0 : i64, scratch_operands = 2 : i64, tpu.core_type = #tpu.core_type<tc>, window_params = [{transform_indices = @transform_0, window_bounds = array<i64: 1, 64, 1548>}, {pipeline_mode = #tpu.pipeline_mode<synchronous>, transform_indices = @transform_1, window_bounds = array<i64: 1548, 128>}, {pipeline_mode = #tpu.pipeline_mode<synchronous>, transform_indices = @transform_2, window_bounds = array<i64: 1, 128>}, {pipeline_mode = #tpu.pipeline_mode<synchronous>, transform_indices = @transform_3, window_bounds = array<i64: 1548, 128>}, {pipeline_mode = #tpu.pipeline_mode<synchronous>, transform_indices = @transform_4, window_bounds = array<i64: 129, 128, 128>}, {pipeline_mode = #tpu.pipeline_mode<synchronous>, transform_indices = @transform_5, window_bounds = array<i64: 1, 128>}, {pipeline_mode = #tpu.pipeline_mode<synchronous>, transform_indices = @transform_6, window_bounds = array<i64: 8, 1548>}, {pipeline_mode = #tpu.pipeline_mode<synchronous>, transform_indices = @transform_7, window_bounds = array<i64: 129, 8, 128>}, {pipeline_mode = #tpu.pipeline_mode<synchronous>, transform_indices = @transform_8, window_bounds = array<i64: 129, 8, 128>}, {pipeline_mode = #tpu.pipeline_mode<synchronous>, transform_indices = @transform_9, window_bounds = array<i64: 8, 1>}, {transform_indices = @transform_10, window_bounds = array<i64: 1, 8, 64>}]} {
    %cst = arith.constant 0.000000e+00 : f32
    %0 = vector.broadcast %cst : f32 to vector<64x128xf32>
    %c0 = arith.constant 0 : index
    %c0_0 = arith.constant 0 : index
    %1 = vector.load %arg12[%c0, %c0_0] : memref<192x128xf32, #tpu.memory_space<vmem>>, vector<64x128xf32>
    tpu.vector_store %arg12[%c0, %c0_0], %0 {strides = array<i32>} : memref<192x128xf32, #tpu.memory_space<vmem>>, vector<64x128xf32>,
    %cst_1 = arith.constant 0.000000e+00 : f32
    %2 = vector.broadcast %cst_1 : f32 to vector<64x128xf32>
    %c128 = arith.constant 128 : index
    %c0_2 = arith.constant 0 : index
    %3 = vector.load %arg12[%c128, %c0_2] : memref<192x128xf32, #tpu.memory_space<vmem>>, vector<64x128xf32>
    tpu.vector_store %arg12[%c128, %c0_2], %2 {strides = array<i32>} : memref<192x128xf32, #tpu.memory_space<vmem>>, vector<64x128xf32>,
    %cst_3 = arith.constant 0.000000e+00 : f32
    %4 = vector.broadcast %cst_3 : f32 to vector<64x128xf32>
    %c0_4 = arith.constant 0 : index
    %c0_5 = arith.constant 0 : index
    %5 = vector.load %arg13[%c0_4, %c0_5] : memref<192x128xf32, #tpu.memory_space<vmem>>, vector<64x128xf32>
    tpu.vector_store %arg13[%c0_4, %c0_5], %4 {strides = array<i32>} : memref<192x128xf32, #tpu.memory_space<vmem>>, vector<64x128xf32>,
    %cst_6 = arith.constant 0.000000e+00 : f32
    %6 = vector.broadcast %cst_6 : f32 to vector<64x128xf32>
    %c128_7 = arith.constant 128 : index
    %c0_8 = arith.constant 0 : index
    %7 = vector.load %arg13[%c128_7, %c0_8] : memref<192x128xf32, #tpu.memory_space<vmem>>, vector<64x128xf32>
    tpu.vector_store %arg13[%c128_7, %c0_8], %6 {strides = array<i32>} : memref<192x128xf32, #tpu.memory_space<vmem>>, vector<64x128xf32>,
    %c0_9 = arith.constant 0 : index
    %c0_10 = arith.constant 0 : index
    %c0_11 = arith.constant 0 : index
    %8 = vector.load %arg1[%c0_9, %c0_10, %c0_11] : memref<1x64x1548xbf16, #tpu.memory_space<vmem>>, vector<1x64x1548xbf16>
    %9 = vector.shape_cast %8 : vector<1x64x1548xbf16> to vector<64x1548xbf16>
    %c0_12 = arith.constant 0 : index
    %c0_13 = arith.constant 0 : index
    %10 = vector.load %arg2[%c0_12, %c0_13] : memref<1548x128xbf16, #tpu.memory_space<vmem>>, vector<1548x128xbf16>
    %cst_14 = arith.constant dense<0.000000e+00> : vector<64x128xf32>
    %11 = tpu.matmul %9, %10, %cst_14 {dimension_numbers = #tpu.dot_dimension_numbers<[1], [0], [0], [1], [0, 0, 1, 1], [], []>} : vector<64x1548xbf16>, vector<1548x128xbf16>, vector<64x128xf32> -> vector<64x128xf32>
    %c0_15 = arith.constant 0 : index
    %c0_16 = arith.constant 0 : index
    %12 = vector.load %arg3[%c0_15, %c0_16] : memref<1x128xf32, #tpu.memory_space<vmem>>, vector<1x128xf32>
    %13 = vector.broadcast %12 : vector<1x128xf32> to vector<64x128xf32>
    %14 = arith.addf %11, %13 : vector<64x128xf32>
    %15 = arith.mulf %14, %14 : vector<64x128xf32>
    %16 = arith.mulf %15, %14 : vector<64x128xf32>
    %c64 = arith.constant 64 : index
    %c0_17 = arith.constant 0 : index
    %17 = vector.load %arg12[%c64, %c0_17] : memref<192x128xf32, #tpu.memory_space<vmem>>, vector<64x128xf32>
    tpu.vector_store %arg12[%c64, %c0_17], %16 {strides = array<i32>} : memref<192x128xf32, #tpu.memory_space<vmem>>, vector<64x128xf32>,
    %c0_18 = arith.constant 0 : index
    %c0_19 = arith.constant 0 : index
    %c0_20 = arith.constant 0 : index
    %18 = vector.load %arg1[%c0_18, %c0_19, %c0_20] : memref<1x64x1548xbf16, #tpu.memory_space<vmem>>, vector<1x64x1548xbf16>
    %19 = vector.shape_cast %18 : vector<1x64x1548xbf16> to vector<64x1548xbf16>
    %c0_21 = arith.constant 0 : index
    %c0_22 = arith.constant 0 : index
    %20 = vector.load %arg4[%c0_21, %c0_22] : memref<1548x128xbf16, #tpu.memory_space<vmem>>, vector<1548x128xbf16>
    %cst_23 = arith.constant dense<0.000000e+00> : vector<64x128xf32>
    %21 = tpu.matmul %19, %20, %cst_23 {dimension_numbers = #tpu.dot_dimension_numbers<[1], [0], [0], [1], [0, 0, 1, 1], [], []>} : vector<64x1548xbf16>, vector<1548x128xbf16>, vector<64x128xf32> -> vector<64x128xf32>
    %c0_i32 = arith.constant 0 : i32
    %c64_i32 = arith.constant 64 : i32
    %22 = arith.addi %c0_i32, %c64_i32 : i32
    %c1_i32 = arith.constant 1 : i32
    %23 = scf.for %arg14 = %c0_i32 to %22 step %c1_i32 iter_args(%arg15 = %21) -> (vector<64x128xf32>)  : i32 {
      %c2_i32 = arith.constant 2 : i32
      %62 = arith.muli %arg14, %c2_i32 : i32
      %c0_i32_62 = arith.constant 0 : i32
      %63 = arith.addi %62, %c0_i32_62 : i32
      %64 = arith.index_cast %63 : i32 to index
      %c0_63 = arith.constant 0 : index
      %65 = vector.load %arg12[%64, %c0_63] : memref<192x128xf32, #tpu.memory_space<vmem>>, vector<64x128xf32>
      %66 = arith.truncf %65 : vector<64x128xf32> to vector<64x128xbf16>
      %67 = arith.index_cast %63 : i32 to index
      %c0_64 = arith.constant 0 : index
      %c0_65 = arith.constant 0 : index
      %68 = vector.load %arg5[%67, %c0_64, %c0_65] : memref<129x128x128xbf16, #tpu.memory_space<vmem>>, vector<1x128x128xbf16>
      %69 = vector.shape_cast %68 : vector<1x128x128xbf16> to vector<128x128xbf16>
      %cst_66 = arith.constant dense<0.000000e+00> : vector<64x128xf32>
      %70 = tpu.matmul %66, %69, %cst_66 {dimension_numbers = #tpu.dot_dimension_numbers<[1], [0], [0], [1], [0, 0, 1, 1], [], []>} : vector<64x128xbf16>, vector<128x128xbf16>, vector<64x128xf32> -> vector<64x128xf32>
      %71 = arith.addf %arg15, %70 : vector<64x128xf32>
      %c1_i32_67 = arith.constant 1 : i32
      %72 = arith.addi %62, %c1_i32_67 : i32
      %73 = arith.index_cast %72 : i32 to index
      %c0_68 = arith.constant 0 : index
      %74 = vector.load %arg12[%73, %c0_68] : memref<192x128xf32, #tpu.memory_space<vmem>>, vector<64x128xf32>
      %75 = arith.truncf %74 : vector<64x128xf32> to vector<64x128xbf16>
      %76 = arith.index_cast %72 : i32 to index
      %c0_69 = arith.constant 0 : index
      %c0_70 = arith.constant 0 : index
      %77 = vector.load %arg5[%76, %c0_69, %c0_70] : memref<129x128x128xbf16, #tpu.memory_space<vmem>>, vector<1x128x128xbf16>
      %78 = vector.shape_cast %77 : vector<1x128x128xbf16> to vector<128x128xbf16>
      %cst_71 = arith.constant dense<0.000000e+00> : vector<64x128xf32>
      %79 = tpu.matmul %75, %78, %cst_71 {dimension_numbers = #tpu.dot_dimension_numbers<[1], [0], [0], [1], [0, 0, 1, 1], [], []>} : vector<64x128xbf16>, vector<128x128xbf16>, vector<64x128xf32> -> vector<64x128xf32>
      %80 = arith.addf %71, %79 : vector<64x128xf32>
      scf.yield %80 : vector<64x128xf32>
    }
    %c64_i32_24 = arith.constant 64 : i32
    %c128_25 = arith.constant 128 : index
    %c0_26 = arith.constant 0 : index
    %24 = vector.load %arg12[%c128_25, %c0_26] : memref<192x128xf32, #tpu.memory_space<vmem>>, vector<64x128xf32>
    %25 = arith.truncf %24 : vector<64x128xf32> to vector<64x128xbf16>
    %c128_27 = arith.constant 128 : index
    %c0_28 = arith.constant 0 : index
    %c0_29 = arith.constant 0 : index
    %26 = vector.load %arg5[%c128_27, %c0_28, %c0_29] : memref<129x128x128xbf16, #tpu.memory_space<vmem>>, vector<1x128x128xbf16>
    %27 = vector.shape_cast %26 : vector<1x128x128xbf16> to vector<128x128xbf16>
    %cst_30 = arith.constant dense<0.000000e+00> : vector<64x128xf32>
    %28 = tpu.matmul %25, %27, %cst_30 {dimension_numbers = #tpu.dot_dimension_numbers<[1], [0], [0], [1], [0, 0, 1, 1], [], []>} : vector<64x128xbf16>, vector<128x128xbf16>, vector<64x128xf32> -> vector<64x128xf32>
    %29 = arith.addf %23, %28 : vector<64x128xf32>
    %c0_31 = arith.constant 0 : index
    %c0_32 = arith.constant 0 : index
    %30 = vector.load %arg6[%c0_31, %c0_32] : memref<1x128xf32, #tpu.memory_space<vmem>>, vector<1x128xf32>
    %31 = vector.broadcast %30 : vector<1x128xf32> to vector<64x128xf32>
    %32 = arith.addf %29, %31 : vector<64x128xf32>
    %33 = arith.mulf %32, %32 : vector<64x128xf32>
    %34 = arith.mulf %33, %32 : vector<64x128xf32>
    %c64_33 = arith.constant 64 : index
    %c0_34 = arith.constant 0 : index
    %35 = vector.load %arg13[%c64_33, %c0_34] : memref<192x128xf32, #tpu.memory_space<vmem>>, vector<64x128xf32>
    tpu.vector_store %arg13[%c64_33, %c0_34], %34 {strides = array<i32>} : memref<192x128xf32, #tpu.memory_space<vmem>>, vector<64x128xf32>,
    %c0_35 = arith.constant 0 : index
    %c0_36 = arith.constant 0 : index
    %36 = vector.load %arg7[%c0_35, %c0_36] : memref<8x1548xbf16, #tpu.memory_space<vmem>>, vector<8x1548xbf16>
    %c0_37 = arith.constant 0 : index
    %c0_38 = arith.constant 0 : index
    %c0_39 = arith.constant 0 : index
    %37 = vector.load %arg1[%c0_37, %c0_38, %c0_39] : memref<1x64x1548xbf16, #tpu.memory_space<vmem>>, vector<1x64x1548xbf16>
    %38 = vector.shape_cast %37 : vector<1x64x1548xbf16> to vector<64x1548xbf16>
    %cst_40 = arith.constant dense<0.000000e+00> : vector<8x64xf32>
    %39 = tpu.matmul %36, %38, %cst_40 {dimension_numbers = #tpu.dot_dimension_numbers<[1], [1], [0], [0], [0, 0, 1, 0], [], []>} : vector<8x1548xbf16>, vector<64x1548xbf16>, vector<8x64xf32> -> vector<8x64xf32>
    %c0_i32_41 = arith.constant 0 : i32
    %c64_i32_42 = arith.constant 64 : i32
    %40 = arith.addi %c0_i32_41, %c64_i32_42 : i32
    %c1_i32_43 = arith.constant 1 : i32
    %41 = scf.for %arg14 = %c0_i32_41 to %40 step %c1_i32_43 iter_args(%arg15 = %39) -> (vector<8x64xf32>)  : i32 {
      %c2_i32 = arith.constant 2 : i32
      %62 = arith.muli %arg14, %c2_i32 : i32
      %c0_i32_62 = arith.constant 0 : i32
      %63 = arith.addi %62, %c0_i32_62 : i32
      %64 = arith.index_cast %63 : i32 to index
      %c0_63 = arith.constant 0 : index
      %65 = vector.load %arg12[%64, %c0_63] : memref<192x128xf32, #tpu.memory_space<vmem>>, vector<64x128xf32>
      %66 = arith.truncf %65 : vector<64x128xf32> to vector<64x128xbf16>
      %67 = arith.index_cast %63 : i32 to index
      %c0_64 = arith.constant 0 : index
      %68 = vector.load %arg13[%67, %c0_64] : memref<192x128xf32, #tpu.memory_space<vmem>>, vector<64x128xf32>
      %69 = arith.truncf %68 : vector<64x128xf32> to vector<64x128xbf16>
      %70 = arith.index_cast %63 : i32 to index
      %c0_65 = arith.constant 0 : index
      %c0_66 = arith.constant 0 : index
      %71 = vector.load %arg8[%70, %c0_65, %c0_66] : memref<129x8x128xbf16, #tpu.memory_space<vmem>>, vector<1x8x128xbf16>
      %72 = vector.shape_cast %71 : vector<1x8x128xbf16> to vector<8x128xbf16>
      %cst_67 = arith.constant dense<0.000000e+00> : vector<8x64xf32>
      %73 = tpu.matmul %72, %66, %cst_67 {dimension_numbers = #tpu.dot_dimension_numbers<[1], [1], [0], [0], [0, 0, 1, 0], [], []>} : vector<8x128xbf16>, vector<64x128xbf16>, vector<8x64xf32> -> vector<8x64xf32>
      %74 = arith.addf %arg15, %73 : vector<8x64xf32>
      %75 = arith.index_cast %63 : i32 to index
      %c0_68 = arith.constant 0 : index
      %c0_69 = arith.constant 0 : index
      %76 = vector.load %arg9[%75, %c0_68, %c0_69] : memref<129x8x128xbf16, #tpu.memory_space<vmem>>, vector<1x8x128xbf16>
      %77 = vector.shape_cast %76 : vector<1x8x128xbf16> to vector<8x128xbf16>
      %cst_70 = arith.constant dense<0.000000e+00> : vector<8x64xf32>
      %78 = tpu.matmul %77, %69, %cst_70 {dimension_numbers = #tpu.dot_dimension_numbers<[1], [1], [0], [0], [0, 0, 1, 0], [], []>} : vector<8x128xbf16>, vector<64x128xbf16>, vector<8x64xf32> -> vector<8x64xf32>
      %79 = arith.addf %74, %78 : vector<8x64xf32>
      %c1_i32_71 = arith.constant 1 : i32
      %80 = arith.addi %62, %c1_i32_71 : i32
      %81 = arith.index_cast %80 : i32 to index
      %c0_72 = arith.constant 0 : index
      %82 = vector.load %arg12[%81, %c0_72] : memref<192x128xf32, #tpu.memory_space<vmem>>, vector<64x128xf32>
      %83 = arith.truncf %82 : vector<64x128xf32> to vector<64x128xbf16>
      %84 = arith.index_cast %80 : i32 to index
      %c0_73 = arith.constant 0 : index
      %85 = vector.load %arg13[%84, %c0_73] : memref<192x128xf32, #tpu.memory_space<vmem>>, vector<64x128xf32>
      %86 = arith.truncf %85 : vector<64x128xf32> to vector<64x128xbf16>
      %87 = arith.index_cast %80 : i32 to index
      %c0_74 = arith.constant 0 : index
      %c0_75 = arith.constant 0 : index
      %88 = vector.load %arg8[%87, %c0_74, %c0_75] : memref<129x8x128xbf16, #tpu.memory_space<vmem>>, vector<1x8x128xbf16>
      %89 = vector.shape_cast %88 : vector<1x8x128xbf16> to vector<8x128xbf16>
      %cst_76 = arith.constant dense<0.000000e+00> : vector<8x64xf32>
      %90 = tpu.matmul %89, %83, %cst_76 {dimension_numbers = #tpu.dot_dimension_numbers<[1], [1], [0], [0], [0, 0, 1, 0], [], []>} : vector<8x128xbf16>, vector<64x128xbf16>, vector<8x64xf32> -> vector<8x64xf32>
      %91 = arith.addf %79, %90 : vector<8x64xf32>
      %92 = arith.index_cast %80 : i32 to index
      %c0_77 = arith.constant 0 : index
      %c0_78 = arith.constant 0 : index
      %93 = vector.load %arg9[%92, %c0_77, %c0_78] : memref<129x8x128xbf16, #tpu.memory_space<vmem>>, vector<1x8x128xbf16>
      %94 = vector.shape_cast %93 : vector<1x8x128xbf16> to vector<8x128xbf16>
      %cst_79 = arith.constant dense<0.000000e+00> : vector<8x64xf32>
      %95 = tpu.matmul %94, %86, %cst_79 {dimension_numbers = #tpu.dot_dimension_numbers<[1], [1], [0], [0], [0, 0, 1, 0], [], []>} : vector<8x128xbf16>, vector<64x128xbf16>, vector<8x64xf32> -> vector<8x64xf32>
      %96 = arith.addf %91, %95 : vector<8x64xf32>
      scf.yield %96 : vector<8x64xf32>
    }
    %c64_i32_44 = arith.constant 64 : i32
    %c128_45 = arith.constant 128 : index
    %c0_46 = arith.constant 0 : index
    %42 = vector.load %arg12[%c128_45, %c0_46] : memref<192x128xf32, #tpu.memory_space<vmem>>, vector<64x128xf32>
    %43 = arith.truncf %42 : vector<64x128xf32> to vector<64x128xbf16>
    %c128_47 = arith.constant 128 : index
    %c0_48 = arith.constant 0 : index
    %44 = vector.load %arg13[%c128_47, %c0_48] : memref<192x128xf32, #tpu.memory_space<vmem>>, vector<64x128xf32>
    %45 = arith.truncf %44 : vector<64x128xf32> to vector<64x128xbf16>
    %c128_49 = arith.constant 128 : index
    %c0_50 = arith.constant 0 : index
    %c0_51 = arith.constant 0 : index
    %46 = vector.load %arg8[%c128_49, %c0_50, %c0_51] : memref<129x8x128xbf16, #tpu.memory_space<vmem>>, vector<1x8x128xbf16>
    %47 = vector.shape_cast %46 : vector<1x8x128xbf16> to vector<8x128xbf16>
    %cst_52 = arith.constant dense<0.000000e+00> : vector<8x64xf32>
    %48 = tpu.matmul %47, %43, %cst_52 {dimension_numbers = #tpu.dot_dimension_numbers<[1], [1], [0], [0], [0, 0, 1, 0], [], []>} : vector<8x128xbf16>, vector<64x128xbf16>, vector<8x64xf32> -> vector<8x64xf32>
    %49 = arith.addf %41, %48 : vector<8x64xf32>
    %c128_53 = arith.constant 128 : index
    %c0_54 = arith.constant 0 : index
    %c0_55 = arith.constant 0 : index
    %50 = vector.load %arg9[%c128_53, %c0_54, %c0_55] : memref<129x8x128xbf16, #tpu.memory_space<vmem>>, vector<1x8x128xbf16>
    %51 = vector.shape_cast %50 : vector<1x8x128xbf16> to vector<8x128xbf16>
    %cst_56 = arith.constant dense<0.000000e+00> : vector<8x64xf32>
    %52 = tpu.matmul %51, %45, %cst_56 {dimension_numbers = #tpu.dot_dimension_numbers<[1], [1], [0], [0], [0, 0, 1, 0], [], []>} : vector<8x128xbf16>, vector<64x128xbf16>, vector<8x64xf32> -> vector<8x64xf32>
    %53 = arith.addf %49, %52 : vector<8x64xf32>
    %c0_57 = arith.constant 0 : index
    %c0_58 = arith.constant 0 : index
    %54 = vector.load %arg10[%c0_57, %c0_58] : memref<8x1xf32, #tpu.memory_space<vmem>>, vector<8x1xf32>
    %55 = vector.broadcast %54 : vector<8x1xf32> to vector<8x64xf32>
    %56 = arith.addf %53, %55 : vector<8x64xf32>
    %57 = arith.mulf %56, %56 : vector<8x64xf32>
    %58 = arith.mulf %57, %56 : vector<8x64xf32>
    %c0_59 = arith.constant 0 : index
    %c0_60 = arith.constant 0 : index
    %c0_61 = arith.constant 0 : index
    %59 = vector.load %arg11[%c0_59, %c0_60, %c0_61] : memref<1x8x64xf32, #tpu.memory_space<vmem>>, vector<1x8x64xf32>
    %60 = vector.shape_cast %59 : vector<1x8x64xf32> to vector<8x64xf32>
    %61 = vector.shape_cast %58 : vector<8x64xf32> to vector<1x8x64xf32>
    tpu.vector_store %arg11[%c0_59, %c0_60, %c0_61], %61 {strides = array<i32>} : memref<1x8x64xf32, #tpu.memory_space<vmem>>, vector<1x8x64xf32>,
    return
  }
  func.func @transform_0(%arg0: i32) -> (i32, i32, i32) {
    %c0_i32 = arith.constant 0 : i32
    %c0_i32_0 = arith.constant 0 : i32
    %c0_i32_1 = arith.constant 0 : i32
    return %arg0, %c0_i32, %c0_i32_0 : i32, i32, i32
  }
  func.func @transform_1(%arg0: i32) -> (i32, i32) {
    %c0_i32 = arith.constant 0 : i32
    %c0_i32_0 = arith.constant 0 : i32
    %c0_i32_1 = arith.constant 0 : i32
    return %c0_i32, %c0_i32_0 : i32, i32
  }
  func.func @transform_2(%arg0: i32) -> (i32, i32) {
    %c0_i32 = arith.constant 0 : i32
    %c0_i32_0 = arith.constant 0 : i32
    %c0_i32_1 = arith.constant 0 : i32
    return %c0_i32, %c0_i32_0 : i32, i32
  }
  func.func @transform_3(%arg0: i32) -> (i32, i32) {
    %c0_i32 = arith.constant 0 : i32
    %c0_i32_0 = arith.constant 0 : i32
    %c0_i32_1 = arith.constant 0 : i32
    return %c0_i32, %c0_i32_0 : i32, i32
  }
  func.func @transform_4(%arg0: i32) -> (i32, i32, i32) {
    %c0_i32 = arith.constant 0 : i32
    %c0_i32_0 = arith.constant 0 : i32
    %c0_i32_1 = arith.constant 0 : i32
    %c0_i32_2 = arith.constant 0 : i32
    return %c0_i32, %c0_i32_0, %c0_i32_1 : i32, i32, i32
  }
  func.func @transform_5(%arg0: i32) -> (i32, i32) {
    %c0_i32 = arith.constant 0 : i32
    %c0_i32_0 = arith.constant 0 : i32
    %c0_i32_1 = arith.constant 0 : i32
    return %c0_i32, %c0_i32_0 : i32, i32
  }
  func.func @transform_6(%arg0: i32) -> (i32, i32) {
    %c0_i32 = arith.constant 0 : i32
    %c0_i32_0 = arith.constant 0 : i32
    %c0_i32_1 = arith.constant 0 : i32
    return %c0_i32, %c0_i32_0 : i32, i32
  }
  func.func @transform_7(%arg0: i32) -> (i32, i32, i32) {
    %c0_i32 = arith.constant 0 : i32
    %c0_i32_0 = arith.constant 0 : i32
    %c0_i32_1 = arith.constant 0 : i32
    %c0_i32_2 = arith.constant 0 : i32
    return %c0_i32, %c0_i32_0, %c0_i32_1 : i32, i32, i32
  }
  func.func @transform_8(%arg0: i32) -> (i32, i32, i32) {
    %c0_i32 = arith.constant 0 : i32
    %c0_i32_0 = arith.constant 0 : i32
    %c0_i32_1 = arith.constant 0 : i32
    %c0_i32_2 = arith.constant 0 : i32
    return %c0_i32, %c0_i32_0, %c0_i32_1 : i32, i32, i32
  }
  func.func @transform_9(%arg0: i32) -> (i32, i32) {
    %c0_i32 = arith.constant 0 : i32
    %c0_i32_0 = arith.constant 0 : i32
    %c0_i32_1 = arith.constant 0 : i32
    return %c0_i32, %c0_i32_0 : i32, i32
  }
  func.func @transform_10(%arg0: i32) -> (i32, i32, i32) {
    %c0_i32 = arith.constant 0 : i32
    %c0_i32_0 = arith.constant 0 : i32
    %c0_i32_1 = arith.constant 0 : i32
    return %arg0, %c0_i32, %c0_i32_0 : i32, i32, i32
  }
}

</mosaic_0001>

<llo_original>
// kernel: simple_cnn_sigmoid_forward.1
$region0: #{simple_cnn_sigmoid_forward.1}
  #allocation0 [shape = 'u32[]', space=smem, size = 0x4, offset = 0x4, fixed_abs, tag = 'smem constant byte address 0x4 - core index']
  #allocation1 [shape = 'u32[144,128]{1,0:T(1,128)}', space=vmem, size = 0x12000, scoped, tag = 'internal scratch']
  #allocation2 [shape = 'f32[192,128]{1,0:T(8,128)}', space=vmem, size = 0x18000, scoped, tag = 'scratch operand']
  #allocation3 [shape = 'f32[192,128]{1,0:T(8,128)}', space=vmem, size = 0x18000, scoped, tag = 'scratch operand']
  %s0 = inlined_call_operand.vmem [shape: bf16[2,64,1548], index: 0, kind: input, shape index: {}]
  %s1 = inlined_call_operand.hbm [shape: bf16[1548,128], index: 1, kind: input, shape index: {}]
  %s2 = inlined_call_operand.hbm [shape: f32[1,128], index: 2, kind: input, shape index: {}]
  %s3 = inlined_call_operand.hbm [shape: bf16[1548,128], index: 3, kind: input, shape index: {}]
  %s4 = inlined_call_operand.hbm [shape: bf16[129,128,128], index: 4, kind: input, shape index: {}]
  %s5 = inlined_call_operand.hbm [shape: f32[1,128], index: 5, kind: input, shape index: {}]
  %s6 = inlined_call_operand.hbm [shape: bf16[8,1548], index: 6, kind: input, shape index: {}]
  %s7 = inlined_call_operand.hbm [shape: bf16[129,8,128], index: 7, kind: input, shape index: {}]
  %s8 = inlined_call_operand.hbm [shape: bf16[129,8,128], index: 8, kind: input, shape index: {}]
  %s9 = inlined_call_operand.vmem [shape: f32[8,1], index: 9, kind: input, shape index: {}]
  %s10 = inlined_call_operand.hbm [shape: f32[2,8,64], index: 10, kind: output, shape index: {}]
  %s11 = sld [smem:[#allocation0]]
  $region119: #{simple_cnn_sigmoid_forward.1} parent=0
    _
  %s13 = ssub.s32 1, %s11
  %s14 = scalar_select 0, %s13, %s11
  $region1: #{simple_cnn_sigmoid_forward.1} parent=0
    #allocation4 [shape = 'u8[397312]{0}', space=vmem, size = 0x61000, scoped, tag = 'input window, operand 1, single buffered']
    #allocation5 [shape = 's32[2]{0}', space=sflag, size = 0x8, scoped, tag = 'scoped memory for simple_cnn_sigmoid_forward.1']
    #allocation6 [shape = 's32[2]{0}', space=sflag, size = 0x8, scoped, tag = 'scoped memory for simple_cnn_sigmoid_forward.1']
    #allocation7 [shape = 'u8[512]{0}', space=vmem, size = 0x400, scoped, tag = 'input window, operand 2, single buffered']
    #allocation8 [shape = 's32[1]{0}', space=sflag, size = 0x4, scoped, tag = 'scoped memory for simple_cnn_sigmoid_forward.1']
    #allocation9 [shape = 'u8[397312]{0}', space=vmem, size = 0x61000, scoped, tag = 'input window, operand 3, single buffered']
    #allocation10 [shape = 'u8[4227072]{0}', space=vmem, size = 0x408000, scoped, tag = 'input window, operand 4, single buffered']
    #allocation11 [shape = 's32[1]{0}', space=sflag, size = 0x4, scoped, tag = 'scoped memory for simple_cnn_sigmoid_forward.1']
    #allocation12 [shape = 'u8[512]{0}', space=vmem, size = 0x400, scoped, tag = 'input window, operand 5, single buffered']
    #allocation13 [shape = 'u8[26624]{0}', space=vmem, size = 0x6800, scoped, tag = 'input window, operand 6, single buffered']
    #allocation14 [shape = 's32[1]{0}', space=sflag, size = 0x4, scoped, tag = 'scoped memory for simple_cnn_sigmoid_forward.1']
    #allocation15 [shape = 'u8[264192]{0}', space=vmem, size = 0x40800, scoped, tag = 'input window, operand 7, single buffered']
    #allocation16 [shape = 'u8[264192]{0}', space=vmem, size = 0x40800, scoped, tag = 'input window, operand 8, single buffered']
    #allocation17 [shape = 's32[1]{0}', space=sflag, size = 0x4, scoped, tag = 'scoped memory for simple_cnn_sigmoid_forward.1']
    #allocation18 [shape = 'u8[8192]{0}', space=vmem, size = 0x2000, scoped, tag = 'output window, operand 0']
    %15 = vsyncpa [#allocation5], 0
    %16 = vsyncpa [#allocation8], 0
    %17 = vsyncpa [#allocation11], 0
    %18 = vsyncpa [#allocation14], 0
    %19 = vsyncpa [#allocation17], 0
    %20 = vsyncpa [#allocation6], 0
    %s21 = scalar_lea.sflag [#allocation6], 1
    %22 = vsyncpa %s21, 0
    loop: start=0, step=1, limit=4
    $region2: #{simple_cnn_sigmoid_forward.1} parent=1 // loop_pre_header
      _
    $region3: #{simple_cnn_sigmoid_forward.1} parent=1 // loop_header
      %s24 = sphi 0, %s28
      %p25 = scmp.ge.s32.totalorder %s24, 4
      %s34 = sphi 0, %s36
      %s37 = sphi 0, %s34
      %s38 = sphi 0, %s37
      %s54 = sphi 0, %s38
      %s58 = sphi 0, %s58
      %s60 = sphi 0, %s58
      %s61 = sphi 0, %s60
      %s75 = sphi 0, %s61
      %s79 = sphi 0, %s79
      %s81 = sphi 0, %s79
      %s82 = sphi 0, %s81
      %s96 = sphi 0, %s82
      %s100 = sphi 0, %s100
      %s102 = sphi 0, %s100
      %s103 = sphi 0, %s102
      %s117 = sphi 0, %s103
      %s121 = sphi 0, %s121
      %s123 = sphi 0, %s121
      %s124 = sphi 0, %s123
      %s138 = sphi 0, %s124
      %s142 = sphi 0, %s142
      %s144 = sphi 0, %s142
      %s145 = sphi 0, %s144
      %s159 = sphi 0, %s145
      %s163 = sphi 0, %s163
      %s165 = sphi 0, %s163
      %s166 = sphi 0, %s165
      %s180 = sphi 0, %s166
      %s184 = sphi 0, %s184
      %s186 = sphi 0, %s184
      %s187 = sphi 0, %s186
      %s201 = sphi 0, %s187
      %s205 = sphi 0, %s205
      %s207 = sphi 0, %s205
      %s208 = sphi 0, %s207
      %s222 = sphi 0, %s208
      %s226 = sphi 0, %s226
      %s228 = sphi 0, %s226
      %s229 = sphi 0, %s228
      %s243 = sphi 0, %s229
      %s249 = sphi 0, %s251
      %s252 = sphi 0, %s249
      %s253 = sphi 0, %s252
      %s269 = sphi 0, %s253
    $region4: #{simple_cnn_sigmoid_forward.1} parent=1 // loop_header_branch
      %27 = sbr.rel (%p25) target = $region8
    $region5: #{simple_cnn_sigmoid_forward.1} parent=1 // loop_body
      %s29 = ssub.s32 %s24, 1
      %s30 = ssub.s32 %s24, 2
      %s31 = sadd.s32 %s24, 1
      %s32 = ssub.s32 %s24, %s31
      %p33 = scmp.eq.s32.totalorder %s32, 0
      %s35 = sadd.s32 %s34, 1
      %s36 = scalar_select %p33, %s34, %s35
      %p39 = pneg %p33
      %p40 = scmp.eq.s32.totalorder %s24, 1
      %p41 = por %p39, %p40
      %p42 = scmp.ne.s32.totalorder %s34, %s37
      %p43 = scmp.eq.s32.totalorder %s24, 0
      %p44 = por %p42, %p43
      %p45 = scmp.ne.s32.totalorder %s34, %s37
      %p46 = scmp.eq.s32.totalorder %s29, 1
      %p47 = por %p45, %p46
      %p48 = scmp.ne.s32.totalorder %s37, %s38
      %p49 = scmp.eq.s32.totalorder %s29, 0
      %p50 = por %p48, %p49
      %p51 = scmp.ne.s32.totalorder %s37, %s38
      %p52 = scmp.eq.s32.totalorder %s30, 1
      %p53 = por %p51, %p52
      %p55 = scmp.ne.s32.totalorder %s38, %s54
      %p56 = scmp.eq.s32.totalorder %s30, 0
      %p57 = por %p55, %p56
      %s59 = sadd.s32 %s58, 1
      %p62 = scmp.eq.s32.totalorder %s24, 1
      %p63 = scmp.ne.s32.totalorder %s58, %s60
      %p64 = scmp.eq.s32.totalorder %s24, 0
      %p65 = por %p63, %p64
      %p66 = scmp.ne.s32.totalorder %s58, %s60
      %p67 = scmp.eq.s32.totalorder %s29, 1
      %p68 = por %p66, %p67
      %p69 = scmp.ne.s32.totalorder %s60, %s61
      %p70 = scmp.eq.s32.totalorder %s29, 0
      %p71 = por %p69, %p70
      %p72 = scmp.ne.s32.totalorder %s60, %s61
      %p73 = scmp.eq.s32.totalorder %s30, 1
      %p74 = por %p72, %p73
      %p76 = scmp.ne.s32.totalorder %s61, %s75
      %p77 = scmp.eq.s32.totalorder %s30, 0
      %p78 = por %p76, %p77
      %s80 = sadd.s32 %s79, 1
      %p83 = scmp.eq.s32.totalorder %s24, 1
      %p84 = scmp.ne.s32.totalorder %s79, %s81
      %p85 = scmp.eq.s32.totalorder %s24, 0
      %p86 = por %p84, %p85
      %p87 = scmp.ne.s32.totalorder %s79, %s81
      %p88 = scmp.eq.s32.totalorder %s29, 1
      %p89 = por %p87, %p88
      %p90 = scmp.ne.s32.totalorder %s81, %s82
      %p91 = scmp.eq.s32.totalorder %s29, 0
      %p92 = por %p90, %p91
      %p93 = scmp.ne.s32.totalorder %s81, %s82
      %p94 = scmp.eq.s32.totalorder %s30, 1
      %p95 = por %p93, %p94
      %p97 = scmp.ne.s32.totalorder %s82, %s96
      %p98 = scmp.eq.s32.totalorder %s30, 0
      %p99 = por %p97, %p98
      %s101 = sadd.s32 %s100, 1
      %p104 = scmp.eq.s32.totalorder %s24, 1
      %p105 = scmp.ne.s32.totalorder %s100, %s102
      %p106 = scmp.eq.s32.totalorder %s24, 0
      %p107 = por %p105, %p106
      %p108 = scmp.ne.s32.totalorder %s100, %s102
      %p109 = scmp.eq.s32.totalorder %s29, 1
      %p110 = por %p108, %p109
      %p111 = scmp.ne.s32.totalorder %s102, %s103
      %p112 = scmp.eq.s32.totalorder %s29, 0
      %p113 = por %p111, %p112
      %p114 = scmp.ne.s32.totalorder %s102, %s103
      %p115 = scmp.eq.s32.totalorder %s30, 1
      %p116 = por %p114, %p115
      %p118 = scmp.ne.s32.totalorder %s103, %s117
      %p119 = scmp.eq.s32.totalorder %s30, 0
      %p120 = por %p118, %p119
      %s122 = sadd.s32 %s121, 1
      %p125 = scmp.eq.s32.totalorder %s24, 1
      %p126 = scmp.ne.s32.totalorder %s121, %s123
      %p127 = scmp.eq.s32.totalorder %s24, 0
      %p128 = por %p126, %p127
      %p129 = scmp.ne.s32.totalorder %s121, %s123
      %p130 = scmp.eq.s32.totalorder %s29, 1
      %p131 = por %p129, %p130
      %p132 = scmp.ne.s32.totalorder %s123, %s124
      %p133 = scmp.eq.s32.totalorder %s29, 0
      %p134 = por %p132, %p133
      %p135 = scmp.ne.s32.totalorder %s123, %s124
      %p136 = scmp.eq.s32.totalorder %s30, 1
      %p137 = por %p135, %p136
      %p139 = scmp.ne.s32.totalorder %s124, %s138
      %p140 = scmp.eq.s32.totalorder %s30, 0
      %p141 = por %p139, %p140
      %s143 = sadd.s32 %s142, 1
      %p146 = scmp.eq.s32.totalorder %s24, 1
      %p147 = scmp.ne.s32.totalorder %s142, %s144
      %p148 = scmp.eq.s32.totalorder %s24, 0
      %p149 = por %p147, %p148
      %p150 = scmp.ne.s32.totalorder %s142, %s144
      %p151 = scmp.eq.s32.totalorder %s29, 1
      %p152 = por %p150, %p151
      %p153 = scmp.ne.s32.totalorder %s144, %s145
      %p154 = scmp.eq.s32.totalorder %s29, 0
      %p155 = por %p153, %p154
      %p156 = scmp.ne.s32.totalorder %s144, %s145
      %p157 = scmp.eq.s32.totalorder %s30, 1
      %p158 = por %p156, %p157
      %p160 = scmp.ne.s32.totalorder %s145, %s159
      %p161 = scmp.eq.s32.totalorder %s30, 0
      %p162 = por %p160, %p161
      %s164 = sadd.s32 %s163, 1
      %p167 = scmp.eq.s32.totalorder %s24, 1
      %p168 = scmp.ne.s32.totalorder %s163, %s165
      %p169 = scmp.eq.s32.totalorder %s24, 0
      %p170 = por %p168, %p169
      %p171 = scmp.ne.s32.totalorder %s163, %s165
      %p172 = scmp.eq.s32.totalorder %s29, 1
      %p173 = por %p171, %p172
      %p174 = scmp.ne.s32.totalorder %s165, %s166
      %p175 = scmp.eq.s32.totalorder %s29, 0
      %p176 = por %p174, %p175
      %p177 = scmp.ne.s32.totalorder %s165, %s166
      %p178 = scmp.eq.s32.totalorder %s30, 1
      %p179 = por %p177, %p178
      %p181 = scmp.ne.s32.totalorder %s166, %s180
      %p182 = scmp.eq.s32.totalorder %s30, 0
      %p183 = por %p181, %p182
      %s185 = sadd.s32 %s184, 1
      %p188 = scmp.eq.s32.totalorder %s24, 1
      %p189 = scmp.ne.s32.totalorder %s184, %s186
      %p190 = scmp.eq.s32.totalorder %s24, 0
      %p191 = por %p189, %p190
      %p192 = scmp.ne.s32.totalorder %s184, %s186
      %p193 = scmp.eq.s32.totalorder %s29, 1
      %p194 = por %p192, %p193
      %p195 = scmp.ne.s32.totalorder %s186, %s187
      %p196 = scmp.eq.s32.totalorder %s29, 0
      %p197 = por %p195, %p196
      %p198 = scmp.ne.s32.totalorder %s186, %s187
      %p199 = scmp.eq.s32.totalorder %s30, 1
      %p200 = por %p198, %p199
      %p202 = scmp.ne.s32.totalorder %s187, %s201
      %p203 = scmp.eq.s32.totalorder %s30, 0
      %p204 = por %p202, %p203
      %s206 = sadd.s32 %s205, 1
      %p209 = scmp.eq.s32.totalorder %s24, 1
      %p210 = scmp.ne.s32.totalorder %s205, %s207
      %p211 = scmp.eq.s32.totalorder %s24, 0
      %p212 = por %p210, %p211
      %p213 = scmp.ne.s32.totalorder %s205, %s207
      %p214 = scmp.eq.s32.totalorder %s29, 1
      %p215 = por %p213, %p214
      %p216 = scmp.ne.s32.totalorder %s207, %s208
      %p217 = scmp.eq.s32.totalorder %s29, 0
      %p218 = por %p216, %p217
      %p219 = scmp.ne.s32.totalorder %s207, %s208
      %p220 = scmp.eq.s32.totalorder %s30, 1
      %p221 = por %p219, %p220
      %p223 = scmp.ne.s32.totalorder %s208, %s222
      %p224 = scmp.eq.s32.totalorder %s30, 0
      %p225 = por %p223, %p224
      %s227 = sadd.s32 %s226, 1
      %p230 = scmp.eq.s32.totalorder %s24, 1
      %p231 = scmp.ne.s32.totalorder %s226, %s228
      %p232 = scmp.eq.s32.totalorder %s24, 0
      %p233 = por %p231, %p232
      %p234 = scmp.ne.s32.totalorder %s226, %s228
      %p235 = scmp.eq.s32.totalorder %s29, 1
      %p236 = por %p234, %p235
      %p237 = scmp.ne.s32.totalorder %s228, %s229
      %p238 = scmp.eq.s32.totalorder %s29, 0
      %p239 = por %p237, %p238
      %p240 = scmp.ne.s32.totalorder %s228, %s229
      %p241 = scmp.eq.s32.totalorder %s30, 1
      %p242 = por %p240, %p241
      %p244 = scmp.ne.s32.totalorder %s229, %s243
      %p245 = scmp.eq.s32.totalorder %s30, 0
      %p246 = por %p244, %p245
      %s247 = ssub.s32 %s24, %s31
      %p248 = scmp.eq.s32.totalorder %s247, 0
      %s250 = sadd.s32 %s249, 1
      %s251 = scalar_select %p248, %s249, %s250
      %p254 = pneg %p248
      %p255 = scmp.eq.s32.totalorder %s24, 1
      %p256 = por %p254, %p255
      %p257 = scmp.ne.s32.totalorder %s249, %s252
      %p258 = scmp.eq.s32.totalorder %s24, 0
      %p259 = por %p257, %p258
      %p260 = scmp.ne.s32.totalorder %s249, %s252
      %p261 = scmp.eq.s32.totalorder %s29, 1
      %p262 = por %p260, %p261
      %p263 = scmp.ne.s32.totalorder %s252, %s253
      %p264 = scmp.eq.s32.totalorder %s29, 0
      %p265 = por %p263, %p264
      %p266 = scmp.ne.s32.totalorder %s252, %s253
      %p267 = scmp.eq.s32.totalorder %s30, 1
      %p268 = por %p266, %p267
      %p270 = scmp.ne.s32.totalorder %s253, %s269
      %p271 = scmp.eq.s32.totalorder %s30, 0
      %p272 = por %p270, %p271
      %p273 = scmp.le.s32.totalorder 1, %s24
      %p274 = scmp.lt.s32.totalorder %s24, 3
      %p275 = pnand %p273, %p274
      %p276 = pneg %p275
      // Predicated region
      $region9: #{simple_cnn_sigmoid_forward.1} parent=5 // pred_check
        _
      $region10: #{simple_cnn_sigmoid_forward.1} parent=5 // pred_check_branch
        %278 = sbr.rel (%p275) target = $region12
      $region11: #{simple_cnn_sigmoid_forward.1} parent=5 // pred_region
        %s279 = ssub.s32 %s24, 1
        // Predicated region
        $region13: #{simple_cnn_sigmoid_forward.1} parent=11 // pred_check
          %p280 = pneg %p71
        $region14: #{simple_cnn_sigmoid_forward.1} parent=11 // pred_check_branch
          %282 = sbr.rel (%p280) target = $region16
        $region15: #{simple_cnn_sigmoid_forward.1} parent=11 // pred_region
          %s284 = ssub.s32 12416, 12416
          %285 = vsyncadd [#allocation5], %s284
          %s286 = sshll.u32 [#allocation4], 4
          %s287 = int_to_ptr.vmem [resolvable:$true] %s286
          %292 = dma.hbm_to_vmem [thread:$0]  %s1, 12416, %s287, [#allocation5], 64, 64, 4
        $region16: #{simple_cnn_sigmoid_forward.1} parent=11 // pred_fallthru
          _
        // Predicated region
        $region17: #{simple_cnn_sigmoid_forward.1} parent=11 // pred_check
          %p293 = pneg %p92
        $region18: #{simple_cnn_sigmoid_forward.1} parent=11 // pred_check_branch
          %295 = sbr.rel (%p293) target = $region20
        $region19: #{simple_cnn_sigmoid_forward.1} parent=11 // pred_region
          %s297 = ssub.s32 16, 16
          %298 = vsyncadd [#allocation8], %s297
          %s300 = sshll.u32 [#allocation7], 4
          %s301 = int_to_ptr.vmem [resolvable:$true] %s300
          %303 = dma.hbm_to_vmem [thread:$0]  %s2, 16, %s301, [#allocation8]
        $region20: #{simple_cnn_sigmoid_forward.1} parent=11 // pred_fallthru
          _
        // Predicated region
        $region21: #{simple_cnn_sigmoid_forward.1} parent=11 // pred_check
          %p304 = pneg %p113
        $region22: #{simple_cnn_sigmoid_forward.1} parent=11 // pred_check_branch
          %306 = sbr.rel (%p304) target = $region24
        $region23: #{simple_cnn_sigmoid_forward.1} parent=11 // pred_region
          %s308 = ssub.s32 12416, 12416
          %309 = vsyncadd [#allocation8], %s308
          %s310 = sshll.u32 [#allocation9], 4
          %s311 = int_to_ptr.vmem [resolvable:$true] %s310
          %316 = dma.hbm_to_vmem [thread:$0]  %s3, 12416, %s311, [#allocation8], 64, 64, 4
        $region24: #{simple_cnn_sigmoid_forward.1} parent=11 // pred_fallthru
          _
        // Predicated region
        $region25: #{simple_cnn_sigmoid_forward.1} parent=11 // pred_check
          %p317 = pneg %p134
        $region26: #{simple_cnn_sigmoid_forward.1} parent=11 // pred_check_branch
          %319 = sbr.rel (%p317) target = $region28
        $region27: #{simple_cnn_sigmoid_forward.1} parent=11 // pred_region
          %s321 = ssub.s32 132096, 132096
          %322 = vsyncadd [#allocation11], %s321
          %s323 = sshll.u32 [#allocation10], 4
          %s324 = int_to_ptr.vmem [resolvable:$true] %s323
          %329 = dma.hbm_to_vmem [thread:$0]  %s4, 132096, %s324, [#allocation11], 64, 64, 4
        $region28: #{simple_cnn_sigmoid_forward.1} parent=11 // pred_fallthru
          _
        // Predicated region
        $region29: #{simple_cnn_sigmoid_forward.1} parent=11 // pred_check
          %p330 = pneg %p155
        $region30: #{simple_cnn_sigmoid_forward.1} parent=11 // pred_check_branch
          %332 = sbr.rel (%p330) target = $region32
        $region31: #{simple_cnn_sigmoid_forward.1} parent=11 // pred_region
          %s334 = ssub.s32 16, 16
          %335 = vsyncadd [#allocation11], %s334
          %s337 = sshll.u32 [#allocation12], 4
          %s338 = int_to_ptr.vmem [resolvable:$true] %s337
          %340 = dma.hbm_to_vmem [thread:$0]  %s5, 16, %s338, [#allocation11]
        $region32: #{simple_cnn_sigmoid_forward.1} parent=11 // pred_fallthru
          _
        // Predicated region
        $region33: #{simple_cnn_sigmoid_forward.1} parent=11 // pred_check
          %p341 = pneg %p176
        $region34: #{simple_cnn_sigmoid_forward.1} parent=11 // pred_check_branch
          %343 = sbr.rel (%p341) target = $region36
        $region35: #{simple_cnn_sigmoid_forward.1} parent=11 // pred_region
          %s345 = ssub.s32 832, 832
          %346 = vsyncadd [#allocation14], %s345
          %s348 = sshll.u32 [#allocation13], 4
          %s349 = int_to_ptr.vmem [resolvable:$true] %s348
          %351 = dma.hbm_to_vmem [thread:$0]  %s6, 832, %s349, [#allocation14]
        $region36: #{simple_cnn_sigmoid_forward.1} parent=11 // pred_fallthru
          _
        // Predicated region
        $region37: #{simple_cnn_sigmoid_forward.1} parent=11 // pred_check
          %p352 = pneg %p197
        $region38: #{simple_cnn_sigmoid_forward.1} parent=11 // pred_check_branch
          %354 = sbr.rel (%p352) target = $region40
        $region39: #{simple_cnn_sigmoid_forward.1} parent=11 // pred_region
          %s356 = ssub.s32 8256, 8256
          %357 = vsyncadd [#allocation14], %s356
          %s358 = sshll.u32 [#allocation15], 4
          %s359 = int_to_ptr.vmem [resolvable:$true] %s358
          %364 = dma.hbm_to_vmem [thread:$0]  %s7, 8256, %s359, [#allocation14], 64, 64, 4
        $region40: #{simple_cnn_sigmoid_forward.1} parent=11 // pred_fallthru
          _
        // Predicated region
        $region41: #{simple_cnn_sigmoid_forward.1} parent=11 // pred_check
          %p365 = pneg %p218
        $region42: #{simple_cnn_sigmoid_forward.1} parent=11 // pred_check_branch
          %367 = sbr.rel (%p365) target = $region44
        $region43: #{simple_cnn_sigmoid_forward.1} parent=11 // pred_region
          %s369 = ssub.s32 8256, 8256
          %370 = vsyncadd [#allocation17], %s369
          %s371 = sshll.u32 [#allocation16], 4
          %s372 = int_to_ptr.vmem [resolvable:$true] %s371
          %377 = dma.hbm_to_vmem [thread:$0]  %s8, 8256, %s372, [#allocation17], 64, 64, 4
        $region44: #{simple_cnn_sigmoid_forward.1} parent=11 // pred_fallthru
          _
        // Predicated region
        $region45: #{simple_cnn_sigmoid_forward.1} parent=11 // pred_check
          %p378 = pneg %p239
        $region46: #{simple_cnn_sigmoid_forward.1} parent=11 // pred_check_branch
          %380 = sbr.rel (%p378) target = $region48
        $region47: #{simple_cnn_sigmoid_forward.1} parent=11 // pred_region
          _
        $region48: #{simple_cnn_sigmoid_forward.1} parent=11 // pred_fallthru
          _
      $region12: #{simple_cnn_sigmoid_forward.1} parent=5 // pred_fallthru
        _
      %p381 = scmp.lt.s32.totalorder %s24, 2
      // Predicated region
      $region49: #{simple_cnn_sigmoid_forward.1} parent=5 // pred_check
        %p382 = pneg %p381
      $region50: #{simple_cnn_sigmoid_forward.1} parent=5 // pred_check_branch
        %384 = sbr.rel (%p382) target = $region52
      $region51: #{simple_cnn_sigmoid_forward.1} parent=5 // pred_region
        // Predicated region
        $region53: #{simple_cnn_sigmoid_forward.1} parent=51 // pred_check
          %p385 = pneg %p44
        $region54: #{simple_cnn_sigmoid_forward.1} parent=51 // pred_check_branch
          %387 = sbr.rel (%p385) target = $region56
        $region55: #{simple_cnn_sigmoid_forward.1} parent=51 // pred_region
          %p388 = scmp.lt.s32.totalorder %s24, 1
          %s389 = scalar_select %p388, %s24, 1
          %s390 = smul.addr %s389, 104
          %s391 = smul.addr %s390, 4
          %s392 = scalar_lea.vmem %s0, %s391
        $region56: #{simple_cnn_sigmoid_forward.1} parent=51 // pred_fallthru
          _
      $region52: #{simple_cnn_sigmoid_forward.1} parent=5 // pred_fallthru
        _
      %p393 = scmp.le.s32.totalorder 1, %s24
      %p394 = scmp.lt.s32.totalorder %s24, 3
      %p395 = pnand %p393, %p394
      %p396 = pneg %p395
      // Predicated region
      $region57: #{simple_cnn_sigmoid_forward.1} parent=5 // pred_check
        _
      $region58: #{simple_cnn_sigmoid_forward.1} parent=5 // pred_check_branch
        %398 = sbr.rel (%p395) target = $region60
      $region59: #{simple_cnn_sigmoid_forward.1} parent=5 // pred_region
        %s399 = ssub.s32 %s24, 1
        // Predicated region
        $region61: #{simple_cnn_sigmoid_forward.1} parent=59 // pred_check
          %p400 = pneg %p71
        $region62: #{simple_cnn_sigmoid_forward.1} parent=59 // pred_check_branch
          %402 = sbr.rel (%p400) target = $region64
        $region63: #{simple_cnn_sigmoid_forward.1} parent=59 // pred_region
          %403 = dma.done [#allocation5], 12416
        $region64: #{simple_cnn_sigmoid_forward.1} parent=59 // pred_fallthru
          _
        // Predicated region
        $region65: #{simple_cnn_sigmoid_forward.1} parent=59 // pred_check
          %p404 = pneg %p92
        $region66: #{simple_cnn_sigmoid_forward.1} parent=59 // pred_check_branch
          %406 = sbr.rel (%p404) target = $region68
        $region67: #{simple_cnn_sigmoid_forward.1} parent=59 // pred_region
          %407 = dma.done [#allocation8], 16
        $region68: #{simple_cnn_sigmoid_forward.1} parent=59 // pred_fallthru
          _
        // Predicated region
        $region69: #{simple_cnn_sigmoid_forward.1} parent=59 // pred_check
          %p408 = pneg %p113
        $region70: #{simple_cnn_sigmoid_forward.1} parent=59 // pred_check_branch
          %410 = sbr.rel (%p408) target = $region72
        $region71: #{simple_cnn_sigmoid_forward.1} parent=59 // pred_region
          %411 = dma.done [#allocation8], 12416
        $region72: #{simple_cnn_sigmoid_forward.1} parent=59 // pred_fallthru
          _
        // Predicated region
        $region73: #{simple_cnn_sigmoid_forward.1} parent=59 // pred_check
          %p412 = pneg %p134
        $region74: #{simple_cnn_sigmoid_forward.1} parent=59 // pred_check_branch
          %414 = sbr.rel (%p412) target = $region76
        $region75: #{simple_cnn_sigmoid_forward.1} parent=59 // pred_region
          %415 = dma.done [#allocation11], 132096
        $region76: #{simple_cnn_sigmoid_forward.1} parent=59 // pred_fallthru
          _
        // Predicated region
        $region77: #{simple_cnn_sigmoid_forward.1} parent=59 // pred_check
          %p416 = pneg %p155
        $region78: #{simple_cnn_sigmoid_forward.1} parent=59 // pred_check_branch
          %418 = sbr.rel (%p416) target = $region80
        $region79: #{simple_cnn_sigmoid_forward.1} parent=59 // pred_region
          %419 = dma.done [#allocation11], 16
        $region80: #{simple_cnn_sigmoid_forward.1} parent=59 // pred_fallthru
          _
        // Predicated region
        $region81: #{simple_cnn_sigmoid_forward.1} parent=59 // pred_check
          %p420 = pneg %p176
        $region82: #{simple_cnn_sigmoid_forward.1} parent=59 // pred_check_branch
          %422 = sbr.rel (%p420) target = $region84
        $region83: #{simple_cnn_sigmoid_forward.1} parent=59 // pred_region
          %423 = dma.done [#allocation14], 832
        $region84: #{simple_cnn_sigmoid_forward.1} parent=59 // pred_fallthru
          _
        // Predicated region
        $region85: #{simple_cnn_sigmoid_forward.1} parent=59 // pred_check
          %p424 = pneg %p197
        $region86: #{simple_cnn_sigmoid_forward.1} parent=59 // pred_check_branch
          %426 = sbr.rel (%p424) target = $region88
        $region87: #{simple_cnn_sigmoid_forward.1} parent=59 // pred_region
          %427 = dma.done [#allocation14], 8256
        $region88: #{simple_cnn_sigmoid_forward.1} parent=59 // pred_fallthru
          _
        // Predicated region
        $region89: #{simple_cnn_sigmoid_forward.1} parent=59 // pred_check
          %p428 = pneg %p218
        $region90: #{simple_cnn_sigmoid_forward.1} parent=59 // pred_check_branch
          %430 = sbr.rel (%p428) target = $region92
        $region91: #{simple_cnn_sigmoid_forward.1} parent=59 // pred_region
          %431 = dma.done [#allocation17], 8256
        $region92: #{simple_cnn_sigmoid_forward.1} parent=59 // pred_fallthru
          _
        %p432 = scmp.lt.s32.totalorder %s29, 1
        %s433 = scalar_select %p432, %s29, 1
        %s434 = smul.addr %s433, 104
        %s435 = smul.addr %s434, 4
        %s436 = scalar_lea.vmem %s0, %s435
        %p437 = pneg %p50
        %p438 = pneg %p47
        %p439 = pneg %p71
        %p440 = pneg %p68
        %p441 = pneg %p92
        %p442 = pneg %p89
        %p443 = pneg %p113
        %p444 = pneg %p110
        %p445 = pneg %p134
        %p446 = pneg %p131
        %p447 = pneg %p155
        %p448 = pneg %p152
        %p449 = pneg %p176
        %p450 = pneg %p173
        %p451 = pneg %p197
        %p452 = pneg %p194
        %p453 = pneg %p218
        %p454 = pneg %p215
        %p455 = pneg %p239
        %p456 = pneg %p236
        %p457 = pneg %p265
        %p458 = pneg %p262
        %s459 = sand.u32 %s252, 1
        %s460 = scalar_lea.sflag [#allocation6], %s459
        %s461 = sand.u32 %s252, 1
        %s462 = smul.addr %s461, 8
        %s463 = scalar_lea.vmem [#allocation18], %s462
        %p464 = scmp.lt.s32.totalorder %s29, 1
        %s465 = scalar_select %p464, %s29, 1
        %s466 = smul.addr %s465, 104
        %s467 = smul.addr %s466, 4
        %s468 = scalar_lea.vmem %s0, %s467
        %470 = vst [vmem:[#allocation2] sm:$0xff] 0.0
        %471 = vst [vmem:[#allocation2 + $0x8] sm:$0xff] 0.0
        %472 = vst [vmem:[#allocation2 + $0x10] sm:$0xff] 0.0
        %473 = vst [vmem:[#allocation2 + $0x18] sm:$0xff] 0.0
        %474 = vst [vmem:[#allocation2 + $0x20] sm:$0xff] 0.0
        %475 = vst [vmem:[#allocation2 + $0x28] sm:$0xff] 0.0
        %476 = vst [vmem:[#allocation2 + $0x30] sm:$0xff] 0.0
        %477 = vst [vmem:[#allocation2 + $0x38] sm:$0xff] 0.0
        %478 = vst [vmem:[#allocation2 + $0x80] sm:$0xff] 0.0
        %479 = vst [vmem:[#allocation2 + $0x88] sm:$0xff] 0.0
        %480 = vst [vmem:[#allocation2 + $0x90] sm:$0xff] 0.0
        %481 = vst [vmem:[#allocation2 + $0x98] sm:$0xff] 0.0
        %482 = vst [vmem:[#allocation2 + $0xa0] sm:$0xff] 0.0
        %483 = vst [vmem:[#allocation2 + $0xa8] sm:$0xff] 0.0
        %484 = vst [vmem:[#allocation2 + $0xb0] sm:$0xff] 0.0
        %485 = vst [vmem:[#allocation2 + $0xb8] sm:$0xff] 0.0
        %486 = vst [vmem:[#allocation3] sm:$0xff] 0.0
        %487 = vst [vmem:[#allocation3 + $0x8] sm:$0xff] 0.0
        %488 = vst [vmem:[#allocation3 + $0x10] sm:$0xff] 0.0
        %489 = vst [vmem:[#allocation3 + $0x18] sm:$0xff] 0.0
        %490 = vst [vmem:[#allocation3 + $0x20] sm:$0xff] 0.0
        %491 = vst [vmem:[#allocation3 + $0x28] sm:$0xff] 0.0
        %492 = vst [vmem:[#allocation3 + $0x30] sm:$0xff] 0.0
        %493 = vst [vmem:[#allocation3 + $0x38] sm:$0xff] 0.0
        %494 = vst [vmem:[#allocation3 + $0x80] sm:$0xff] 0.0
        %495 = vst [vmem:[#allocation3 + $0x88] sm:$0xff] 0.0
        %496 = vst [vmem:[#allocation3 + $0x90] sm:$0xff] 0.0
        %497 = vst [vmem:[#allocation3 + $0x98] sm:$0xff] 0.0
        %498 = vst [vmem:[#allocation3 + $0xa0] sm:$0xff] 0.0
        %499 = vst [vmem:[#allocation3 + $0xa8] sm:$0xff] 0.0
        %500 = vst [vmem:[#allocation3 + $0xb0] sm:$0xff] 0.0
        %501 = vst [vmem:[#allocation3 + $0xb8] sm:$0xff] 0.0
        %v502 = vld [vmem:[%s468] sm:$0xff]
        %v503 = vld [vmem:[%s468 + $0x8] sm:$0xff]
        %v504 = vld [vmem:[%s468 + $0x10] sm:$0xff]
        %v505 = vld [vmem:[%s468 + $0x18] sm:$0xff]
        %v506 = vld [vmem:[%s468 + $0x20] sm:$0xff]
        %v507 = vld [vmem:[%s468 + $0x28] sm:$0xff]
        %v508 = vld [vmem:[%s468 + $0x30] sm:$0xf]
        %v509 = vld [vmem:[%s468 + $0x34] sm:$0xff]
        %v510 = vld [vmem:[%s468 + $0x3c] sm:$0xff]
        %v511 = vld [vmem:[%s468 + $0x44] sm:$0xff]
        %v512 = vld [vmem:[%s468 + $0x4c] sm:$0xff]
        %v513 = vld [vmem:[%s468 + $0x54] sm:$0xff]
        %v514 = vld [vmem:[%s468 + $0x5c] sm:$0xff]
        %v515 = vld [vmem:[%s468 + $0x64] sm:$0xf]
        %v516 = vld [vmem:[%s468 + $0x68] sm:$0xff]
        %v517 = vld [vmem:[%s468 + $0x70] sm:$0xff]
        %v518 = vld [vmem:[%s468 + $0x78] sm:$0xff]
        %v519 = vld [vmem:[%s468 + $0x80] sm:$0xff]
        %v520 = vld [vmem:[%s468 + $0x88] sm:$0xff]
        %v521 = vld [vmem:[%s468 + $0x90] sm:$0xff]
        %v522 = vld [vmem:[%s468 + $0x98] sm:$0xf]
        %v523 = vld [vmem:[%s468 + $0x9c] sm:$0xff]
        %v524 = vld [vmem:[%s468 + $0xa4] sm:$0xff]
        %v525 = vld [vmem:[%s468 + $0xac] sm:$0xff]
        %v526 = vld [vmem:[%s468 + $0xb4] sm:$0xff]
        %v527 = vld [vmem:[%s468 + $0xbc] sm:$0xff]
        %v528 = vld [vmem:[%s468 + $0xc4] sm:$0xff]
        %v529 = vld [vmem:[%s468 + $0xcc] sm:$0xf]
        %v530 = vld [vmem:[%s468 + $0xd0] sm:$0xff]
        %v531 = vld [vmem:[%s468 + $0xd8] sm:$0xff]
        %v532 = vld [vmem:[%s468 + $0xe0] sm:$0xff]
        %v533 = vld [vmem:[%s468 + $0xe8] sm:$0xff]
        %v534 = vld [vmem:[%s468 + $0xf0] sm:$0xff]
        %v535 = vld [vmem:[%s468 + $0xf8] sm:$0xff]
        %v536 = vld [vmem:[%s468 + $0x100] sm:$0xf]
        %v537 = vld [vmem:[%s468 + $0x104] sm:$0xff]
        %v538 = vld [vmem:[%s468 + $0x10c] sm:$0xff]
        %v539 = vld [vmem:[%s468 + $0x114] sm:$0xff]
        %v540 = vld [vmem:[%s468 + $0x11c] sm:$0xff]
        %v541 = vld [vmem:[%s468 + $0x124] sm:$0xff]
        %v542 = vld [vmem:[%s468 + $0x12c] sm:$0xff]
        %v543 = vld [vmem:[%s468 + $0x134] sm:$0xf]
        %v544 = vld [vmem:[%s468 + $0x138] sm:$0xff]
        %v545 = vld [vmem:[%s468 + $0x140] sm:$0xff]
        %v546 = vld [vmem:[%s468 + $0x148] sm:$0xff]
        %v547 = vld [vmem:[%s468 + $0x150] sm:$0xff]
        %v548 = vld [vmem:[%s468 + $0x158] sm:$0xff]
        %v549 = vld [vmem:[%s468 + $0x160] sm:$0xff]
        %v550 = vld [vmem:[%s468 + $0x168] sm:$0xf]
        %v551 = vld [vmem:[%s468 + $0x16c] sm:$0xff]
        %v552 = vld [vmem:[%s468 + $0x174] sm:$0xff]
        %v553 = vld [vmem:[%s468 + $0x17c] sm:$0xff]
        %v554 = vld [vmem:[%s468 + $0x184] sm:$0xff]
        %v555 = vld [vmem:[%s468 + $0x18c] sm:$0xff]
        %v556 = vld [vmem:[%s468 + $0x194] sm:$0xff]
        %v557 = vld [vmem:[%s468 + $0x19c] sm:$0xf]
        %v558 = vld [vmem:[#allocation4] sm:$0xf]
        %v559 = vld [vmem:[#allocation4 + $0x4] sm:$0xf]
        %v560 = vld [vmem:[#allocation4 + $0x8] sm:$0xf]
        %v561 = vld [vmem:[#allocation4 + $0xc] sm:$0xf]
        %v562 = vld [vmem:[#allocation4 + $0x10] sm:$0xf]
        %v563 = vld [vmem:[#allocation4 + $0x14] sm:$0xf]
        %v564 = vld [vmem:[#allocation4 + $0x18] sm:$0xf]
        %v565 = vld [vmem:[#allocation4 + $0x1c] sm:$0xf]
        %v566 = vld [vmem:[#allocation4 + $0x20] sm:$0xf]
        %v567 = vld [vmem:[#allocation4 + $0x24] sm:$0xf]
        %v568 = vld [vmem:[#allocation4 + $0x28] sm:$0xf]
        %v569 = vld [vmem:[#allocation4 + $0x2c] sm:$0xf]
        %v570 = vld [vmem:[#allocation4 + $0x30] sm:$0xf]
        %v571 = vld [vmem:[#allocation4 + $0x34] sm:$0xf]
        %v572 = vld [vmem:[#allocation4 + $0x38] sm:$0xf]
        %v573 = vld [vmem:[#allocation4 + $0x3c] sm:$0xf]
        %v574 = vld [vmem:[#allocation4 + $0x40] sm:$0xf]
        %v575 = vld [vmem:[#allocation4 + $0x44] sm:$0xf]
        %v576 = vld [vmem:[#allocation4 + $0x48] sm:$0xf]
        %v577 = vld [vmem:[#allocation4 + $0x4c] sm:$0xf]
        %v578 = vld [vmem:[#allocation4 + $0x50] sm:$0xf]
        %v579 = vld [vmem:[#allocation4 + $0x54] sm:$0xf]
        %v580 = vld [vmem:[#allocation4 + $0x58] sm:$0xf]
        %v581 = vld [vmem:[#allocation4 + $0x5c] sm:$0xf]
        %v582 = vld [vmem:[#allocation4 + $0x60] sm:$0xf]
        %v583 = vld [vmem:[#allocation4 + $0x64] sm:$0xf]
        %v584 = vld [vmem:[#allocation4 + $0x68] sm:$0xf]
        %v585 = vld [vmem:[#allocation4 + $0x6c] sm:$0xf]
        %v586 = vld [vmem:[#allocation4 + $0x70] sm:$0xf]
        %v587 = vld [vmem:[#allocation4 + $0x74] sm:$0xf]
        %v588 = vld [vmem:[#allocation4 + $0x78] sm:$0xf]
        %v589 = vld [vmem:[#allocation4 + $0x7c] sm:$0xf]
        %v590 = vld [vmem:[#allocation4 + $0x80] sm:$0xf]
        %v591 = vld [vmem:[#allocation4 + $0x84] sm:$0xf]
        %v592 = vld [vmem:[#allocation4 + $0x88] sm:$0xf]
        %v593 = vld [vmem:[#allocation4 + $0x8c] sm:$0xf]
        %v594 = vld [vmem:[#allocation4 + $0x90] sm:$0xf]
        %v595 = vld [vmem:[#allocation4 + $0x94] sm:$0xf]
        %v596 = vld [vmem:[#allocation4 + $0x98] sm:$0xf]
        %v597 = vld [vmem:[#allocation4 + $0x9c] sm:$0xf]
        %v598 = vld [vmem:[#allocation4 + $0xa0] sm:$0xf]
        %v599 = vld [vmem:[#allocation4 + $0xa4] sm:$0xf]
        %v600 = vld [vmem:[#allocation4 + $0xa8] sm:$0xf]
        %v601 = vld [vmem:[#allocation4 + $0xac] sm:$0xf]
        %v602 = vld [vmem:[#allocation4 + $0xb0] sm:$0xf]
        %v603 = vld [vmem:[#allocation4 + $0xb4] sm:$0xf]
        %v604 = vld [vmem:[#allocation4 + $0xb8] sm:$0xf]
        %v605 = vld [vmem:[#allocation4 + $0xbc] sm:$0xf]
        %v606 = vld [vmem:[#allocation4 + $0xc0] sm:$0xf]
        %v607 = vld [vmem:[#allocation4 + $0xc4] sm:$0xf]
        %v608 = vld [vmem:[#allocation4 + $0xc8] sm:$0xf]
        %v609 = vld [vmem:[#allocation4 + $0xcc] sm:$0xf]
        %v610 = vld [vmem:[#allocation4 + $0xd0] sm:$0xf]
        %v611 = vld [vmem:[#allocation4 + $0xd4] sm:$0xf]
        %v612 = vld [vmem:[#allocation4 + $0xd8] sm:$0xf]
        %v613 = vld [vmem:[#allocation4 + $0xdc] sm:$0xf]
        %v614 = vld [vmem:[#allocation4 + $0xe0] sm:$0xf]
        %v615 = vld [vmem:[#allocation4 + $0xe4] sm:$0xf]
        %v616 = vld [vmem:[#allocation4 + $0xe8] sm:$0xf]
        %v617 = vld [vmem:[#allocation4 + $0xec] sm:$0xf]
        %v618 = vld [vmem:[#allocation4 + $0xf0] sm:$0xf]
        %v619 = vld [vmem:[#allocation4 + $0xf4] sm:$0xf]
        %v620 = vld [vmem:[#allocation4 + $0xf8] sm:$0xf]
        %v621 = vld [vmem:[#allocation4 + $0xfc] sm:$0xf]
        %v622 = vld [vmem:[#allocation4 + $0x100] sm:$0xf]
        %v623 = vld [vmem:[#allocation4 + $0x104] sm:$0xf]
        %v624 = vld [vmem:[#allocation4 + $0x108] sm:$0xf]
        %v625 = vld [vmem:[#allocation4 + $0x10c] sm:$0xf]
        %v626 = vld [vmem:[#allocation4 + $0x110] sm:$0xf]
        %v627 = vld [vmem:[#allocation4 + $0x114] sm:$0xf]
        %v628 = vld [vmem:[#allocation4 + $0x118] sm:$0xf]
        %v629 = vld [vmem:[#allocation4 + $0x11c] sm:$0xf]
        %v630 = vld [vmem:[#allocation4 + $0x120] sm:$0xf]
        %v631 = vld [vmem:[#allocation4 + $0x124] sm:$0xf]
        %v632 = vld [vmem:[#allocation4 + $0x128] sm:$0xf]
        %v633 = vld [vmem:[#allocation4 + $0x12c] sm:$0xf]
        %v634 = vld [vmem:[#allocation4 + $0x130] sm:$0xf]
        %v635 = vld [vmem:[#allocation4 + $0x134] sm:$0xf]
        %v636 = vld [vmem:[#allocation4 + $0x138] sm:$0xf]
        %v637 = vld [vmem:[#allocation4 + $0x13c] sm:$0xf]
        %v638 = vld [vmem:[#allocation4 + $0x140] sm:$0xf]
        %v639 = vld [vmem:[#allocation4 + $0x144] sm:$0xf]
        %v640 = vld [vmem:[#allocation4 + $0x148] sm:$0xf]
        %v641 = vld [vmem:[#allocation4 + $0x14c] sm:$0xf]
        %v642 = vld [vmem:[#allocation4 + $0x150] sm:$0xf]
        %v643 = vld [vmem:[#allocation4 + $0x154] sm:$0xf]
        %v644 = vld [vmem:[#allocation4 + $0x158] sm:$0xf]
        %v645 = vld [vmem:[#allocation4 + $0x15c] sm:$0xf]
        %v646 = vld [vmem:[#allocation4 + $0x160] sm:$0xf]
        %v647 = vld [vmem:[#allocation4 + $0x164] sm:$0xf]
        %v648 = vld [vmem:[#allocation4 + $0x168] sm:$0xf]
        %v649 = vld [vmem:[#allocation4 + $0x16c] sm:$0xf]
        %v650 = vld [vmem:[#allocation4 + $0x170] sm:$0xf]
        %v651 = vld [vmem:[#allocation4 + $0x174] sm:$0xf]
        %v652 = vld [vmem:[#allocation4 + $0x178] sm:$0xf]
        %v653 = vld [vmem:[#allocation4 + $0x17c] sm:$0xf]
        %v654 = vld [vmem:[#allocation4 + $0x180] sm:$0xf]
        %v655 = vld [vmem:[#allocation4 + $0x184] sm:$0xf]
        %v656 = vld [vmem:[#allocation4 + $0x188] sm:$0xf]
        %v657 = vld [vmem:[#allocation4 + $0x18c] sm:$0xf]
        %v658 = vld [vmem:[#allocation4 + $0x190] sm:$0xf]
        %v659 = vld [vmem:[#allocation4 + $0x194] sm:$0xf]
        %v660 = vld [vmem:[#allocation4 + $0x198] sm:$0xf]
        %v661 = vld [vmem:[#allocation4 + $0x19c] sm:$0xf]
        %v662 = vld [vmem:[#allocation4 + $0x1a0] sm:$0xf]
        %v663 = vld [vmem:[#allocation4 + $0x1a4] sm:$0xf]
        %v664 = vld [vmem:[#allocation4 + $0x1a8] sm:$0xf]
        %v665 = vld [vmem:[#allocation4 + $0x1ac] sm:$0xf]
        %v666 = vld [vmem:[#allocation4 + $0x1b0] sm:$0xf]
        %v667 = vld [vmem:[#allocation4 + $0x1b4] sm:$0xf]
        %v668 = vld [vmem:[#allocation4 + $0x1b8] sm:$0xf]
        %v669 = vld [vmem:[#allocation4 + $0x1bc] sm:$0xf]
        %v670 = vld [vmem:[#allocation4 + $0x1c0] sm:$0xf]
        %v671 = vld [vmem:[#allocation4 + $0x1c4] sm:$0xf]
        %v672 = vld [vmem:[#allocation4 + $0x1c8] sm:$0xf]
        %v673 = vld [vmem:[#allocation4 + $0x1cc] sm:$0xf]
        %v674 = vld [vmem:[#allocation4 + $0x1d0] sm:$0xf]
        %v675 = vld [vmem:[#allocation4 + $0x1d4] sm:$0xf]
        %v676 = vld [vmem:[#allocation4 + $0x1d8] sm:$0xf]
        %v677 = vld [vmem:[#allocation4 + $0x1dc] sm:$0xf]
        %v678 = vld [vmem:[#allocation4 + $0x1e0] sm:$0xf]
        %v679 = vld [vmem:[#allocation4 + $0x1e4] sm:$0xf]
        %v680 = vld [vmem:[#allocation4 + $0x1e8] sm:$0xf]
        %v681 = vld [vmem:[#allocation4 + $0x1ec] sm:$0xf]
        %v682 = vld [vmem:[#allocation4 + $0x1f0] sm:$0xf]
        %v683 = vld [vmem:[#allocation4 + $0x1f4] sm:$0xf]
        %v684 = vld [vmem:[#allocation4 + $0x1f8] sm:$0xf]
        %v685 = vld [vmem:[#allocation4 + $0x1fc] sm:$0xf]
        %v686 = vld [vmem:[#allocation4 + $0x200] sm:$0xf]
        %v687 = vld [vmem:[#allocation4 + $0x204] sm:$0xf]
        %v688 = vld [vmem:[#allocation4 + $0x208] sm:$0xf]
        %v689 = vld [vmem:[#allocation4 + $0x20c] sm:$0xf]
        %v690 = vld [vmem:[#allocation4 + $0x210] sm:$0xf]
        %v691 = vld [vmem:[#allocation4 + $0x214] sm:$0xf]
        %v692 = vld [vmem:[#allocation4 + $0x218] sm:$0xf]
        %v693 = vld [vmem:[#allocation4 + $0x21c] sm:$0xf]
        %v694 = vld [vmem:[#allocation4 + $0x220] sm:$0xf]
        %v695 = vld [vmem:[#allocation4 + $0x224] sm:$0xf]
        %v696 = vld [vmem:[#allocation4 + $0x228] sm:$0xf]
        %v697 = vld [vmem:[#allocation4 + $0x22c] sm:$0xf]
        %v698 = vld [vmem:[#allocation4 + $0x230] sm:$0xf]
        %v699 = vld [vmem:[#allocation4 + $0x234] sm:$0xf]
        %v700 = vld [vmem:[#allocation4 + $0x238] sm:$0xf]
        %v701 = vld [vmem:[#allocation4 + $0x23c] sm:$0xf]
        %v702 = vld [vmem:[#allocation4 + $0x240] sm:$0xf]
        %v703 = vld [vmem:[#allocation4 + $0x244] sm:$0xf]
        %v704 = vld [vmem:[#allocation4 + $0x248] sm:$0xf]
        %v705 = vld [vmem:[#allocation4 + $0x24c] sm:$0xf]
        %v706 = vld [vmem:[#allocation4 + $0x250] sm:$0xf]
        %v707 = vld [vmem:[#allocation4 + $0x254] sm:$0xf]
        %v708 = vld [vmem:[#allocation4 + $0x258] sm:$0xf]
        %v709 = vld [vmem:[#allocation4 + $0x25c] sm:$0xf]
        %v710 = vld [vmem:[#allocation4 + $0x260] sm:$0xf]
        %v711 = vld [vmem:[#allocation4 + $0x264] sm:$0xf]
        %v712 = vld [vmem:[#allocation4 + $0x268] sm:$0xf]
        %v713 = vld [vmem:[#allocation4 + $0x26c] sm:$0xf]
        %v714 = vld [vmem:[#allocation4 + $0x270] sm:$0xf]
        %v715 = vld [vmem:[#allocation4 + $0x274] sm:$0xf]
        %v716 = vld [vmem:[#allocation4 + $0x278] sm:$0xf]
        %v717 = vld [vmem:[#allocation4 + $0x27c] sm:$0xf]
        %v718 = vld [vmem:[#allocation4 + $0x280] sm:$0xf]
        %v719 = vld [vmem:[#allocation4 + $0x284] sm:$0xf]
        %v720 = vld [vmem:[#allocation4 + $0x288] sm:$0xf]
        %v721 = vld [vmem:[#allocation4 + $0x28c] sm:$0xf]
        %v722 = vld [vmem:[#allocation4 + $0x290] sm:$0xf]
        %v723 = vld [vmem:[#allocation4 + $0x294] sm:$0xf]
        %v724 = vld [vmem:[#allocation4 + $0x298] sm:$0xf]
        %v725 = vld [vmem:[#allocation4 + $0x29c] sm:$0xf]
        %v726 = vld [vmem:[#allocation4 + $0x2a0] sm:$0xf]
        %v727 = vld [vmem:[#allocation4 + $0x2a4] sm:$0xf]
        %v728 = vld [vmem:[#allocation4 + $0x2a8] sm:$0xf]
        %v729 = vld [vmem:[#allocation4 + $0x2ac] sm:$0xf]
        %v730 = vld [vmem:[#allocation4 + $0x2b0] sm:$0xf]
        %v731 = vld [vmem:[#allocation4 + $0x2b4] sm:$0xf]
        %v732 = vld [vmem:[#allocation4 + $0x2b8] sm:$0xf]
        %v733 = vld [vmem:[#allocation4 + $0x2bc] sm:$0xf]
        %v734 = vld [vmem:[#allocation4 + $0x2c0] sm:$0xf]
        %v735 = vld [vmem:[#allocation4 + $0x2c4] sm:$0xf]
        %v736 = vld [vmem:[#allocation4 + $0x2c8] sm:$0xf]
        %v737 = vld [vmem:[#allocation4 + $0x2cc] sm:$0xf]
        %v738 = vld [vmem:[#allocation4 + $0x2d0] sm:$0xf]
        %v739 = vld [vmem:[#allocation4 + $0x2d4] sm:$0xf]
        %v740 = vld [vmem:[#allocation4 + $0x2d8] sm:$0xf]
        %v741 = vld [vmem:[#allocation4 + $0x2dc] sm:$0xf]
        %v742 = vld [vmem:[#allocation4 + $0x2e0] sm:$0xf]
        %v743 = vld [vmem:[#allocation4 + $0x2e4] sm:$0xf]
        %v744 = vld [vmem:[#allocation4 + $0x2e8] sm:$0xf]
        %v745 = vld [vmem:[#allocation4 + $0x2ec] sm:$0xf]
        %v746 = vld [vmem:[#allocation4 + $0x2f0] sm:$0xf]
        %v747 = vld [vmem:[#allocation4 + $0x2f4] sm:$0xf]
        %v748 = vld [vmem:[#allocation4 + $0x2f8] sm:$0xf]
        %v749 = vld [vmem:[#allocation4 + $0x2fc] sm:$0xf]
        %v750 = vld [vmem:[#allocation4 + $0x300] sm:$0xf]
        %v751 = vld [vmem:[#allocation4 + $0x304] sm:$0x3]
        %v752 = vld [vmem:[#allocation7] sm:$0x1]
        %v754 = vlaneseq
        %v755 = vshrl.u32 %v754, 7
        %v756 = vsub.s32 0, %v755
        %v757 = vrot.slane %v752, %v756
        %v815 = vunpack.c.l.b16 %v502
        %v816 = vunpack.c.h.b16 %v502
        %v817 = vunpack.c.l.b16 %v503
        %v818 = vunpack.c.h.b16 %v503
        %v819 = vunpack.c.l.b16 %v504
        %v820 = vunpack.c.h.b16 %v504
        %v821 = vunpack.c.l.b16 %v505
        %v822 = vunpack.c.h.b16 %v505
        %v823 = vunpack.c.l.b16 %v506
        %v824 = vunpack.c.h.b16 %v506
        %v825 = vunpack.c.l.b16 %v507
        %v826 = vunpack.c.h.b16 %v507
        %v827 = vunpack.c.l.b16 %v508
        %v828 = vunpack.c.l.b16 %v509
        %v829 = vunpack.c.h.b16 %v509
        %v830 = vunpack.c.l.b16 %v510
        %v831 = vunpack.c.h.b16 %v510
        %v832 = vunpack.c.l.b16 %v511
        %v833 = vunpack.c.h.b16 %v511
        %v834 = vunpack.c.l.b16 %v512
        %v835 = vunpack.c.h.b16 %v512
        %v836 = vunpack.c.l.b16 %v513
        %v837 = vunpack.c.h.b16 %v513
        %v838 = vunpack.c.l.b16 %v514
        %v839 = vunpack.c.h.b16 %v514
        %v840 = vunpack.c.l.b16 %v515
        %v841 = vunpack.c.l.b16 %v516
        %v842 = vunpack.c.h.b16 %v516
        %v843 = vunpack.c.l.b16 %v517
        %v844 = vunpack.c.h.b16 %v517
        %v845 = vunpack.c.l.b16 %v518
        %v846 = vunpack.c.h.b16 %v518
        %v847 = vunpack.c.l.b16 %v519
        %v848 = vunpack.c.h.b16 %v519
        %v849 = vunpack.c.l.b16 %v520
        %v850 = vunpack.c.h.b16 %v520
        %v851 = vunpack.c.l.b16 %v521
        %v852 = vunpack.c.h.b16 %v521
        %v853 = vunpack.c.l.b16 %v522
        %v854 = vunpack.c.l.b16 %v523
        %v855 = vunpack.c.h.b16 %v523
        %v856 = vunpack.c.l.b16 %v524
        %v857 = vunpack.c.h.b16 %v524
        %v858 = vunpack.c.l.b16 %v525
        %v859 = vunpack.c.h.b16 %v525
        %v860 = vunpack.c.l.b16 %v526
        %v861 = vunpack.c.h.b16 %v526
        %v862 = vunpack.c.l.b16 %v527
        %v863 = vunpack.c.h.b16 %v527
        %v864 = vunpack.c.l.b16 %v528
        %v865 = vunpack.c.h.b16 %v528
        %v866 = vunpack.c.l.b16 %v529
        %v867 = vunpack.c.l.b16 %v530
        %v868 = vunpack.c.h.b16 %v530
        %v869 = vunpack.c.l.b16 %v531
        %v870 = vunpack.c.h.b16 %v531
        %v871 = vunpack.c.l.b16 %v532
        %v872 = vunpack.c.h.b16 %v532
        %v873 = vunpack.c.l.b16 %v533
        %v874 = vunpack.c.h.b16 %v533
        %v875 = vunpack.c.l.b16 %v534
        %v876 = vunpack.c.h.b16 %v534
        %v877 = vunpack.c.l.b16 %v535
        %v878 = vunpack.c.h.b16 %v535
        %v879 = vunpack.c.l.b16 %v536
        %v880 = vunpack.c.l.b16 %v537
        %v881 = vunpack.c.h.b16 %v537
        %v882 = vunpack.c.l.b16 %v538
        %v883 = vunpack.c.h.b16 %v538
        %v884 = vunpack.c.l.b16 %v539
        %v885 = vunpack.c.h.b16 %v539
        %v886 = vunpack.c.l.b16 %v540
        %v887 = vunpack.c.h.b16 %v540
        %v888 = vunpack.c.l.b16 %v541
        %v889 = vunpack.c.h.b16 %v541
        %v890 = vunpack.c.l.b16 %v542
        %v891 = vunpack.c.h.b16 %v542
        %v892 = vunpack.c.l.b16 %v543
        %v893 = vunpack.c.l.b16 %v544
        %v894 = vunpack.c.h.b16 %v544
        %v895 = vunpack.c.l.b16 %v545
        %v896 = vunpack.c.h.b16 %v545
        %v897 = vunpack.c.l.b16 %v546
        %v898 = vunpack.c.h.b16 %v546
        %v899 = vunpack.c.l.b16 %v547
        %v900 = vunpack.c.h.b16 %v547
        %v901 = vunpack.c.l.b16 %v548
        %v902 = vunpack.c.h.b16 %v548
        %v903 = vunpack.c.l.b16 %v549
        %v904 = vunpack.c.h.b16 %v549
        %v905 = vunpack.c.l.b16 %v550
        %v906 = vunpack.c.l.b16 %v551
        %v907 = vunpack.c.h.b16 %v551
        %v908 = vunpack.c.l.b16 %v552
        %v909 = vunpack.c.h.b16 %v552
        %v910 = vunpack.c.l.b16 %v553
        %v911 = vunpack.c.h.b16 %v553
        %v912 = vunpack.c.l.b16 %v554
        %v913 = vunpack.c.h.b16 %v554
        %v914 = vunpack.c.l.b16 %v555
        %v915 = vunpack.c.h.b16 %v555
        %v916 = vunpack.c.l.b16 %v556
        %v917 = vunpack.c.h.b16 %v556
        %v918 = vunpack.c.l.b16 %v557
        %v919 = vpack.c.b16 %v828, %v815
        %v920 = vpack.c.b16 %v829, %v816
        %v921 = vpack.c.b16 %v830, %v817
        %v922 = vpack.c.b16 %v831, %v818
        %v923 = vpack.c.b16 %v832, %v819
        %v924 = vpack.c.b16 %v833, %v820
        %v925 = vpack.c.b16 %v834, %v821
        %v926 = vpack.c.b16 %v835, %v822
        %v927 = vpack.c.b16 %v836, %v823
        %v928 = vpack.c.b16 %v837, %v824
        %v929 = vpack.c.b16 %v838, %v825
        %v930 = vpack.c.b16 %v839, %v826
        %v931 = vpack.c.b16 %v840, %v827
        %v932 = vpack.c.b16 %v854, %v841
        %v933 = vpack.c.b16 %v855, %v842
        %v934 = vpack.c.b16 %v856, %v843
        %v935 = vpack.c.b16 %v857, %v844
        %v936 = vpack.c.b16 %v858, %v845
        %v937 = vpack.c.b16 %v859, %v846
        %v938 = vpack.c.b16 %v860, %v847
        %v939 = vpack.c.b16 %v861, %v848
        %v940 = vpack.c.b16 %v862, %v849
        %v941 = vpack.c.b16 %v863, %v850
        %v942 = vpack.c.b16 %v864, %v851
        %v943 = vpack.c.b16 %v865, %v852
        %v944 = vpack.c.b16 %v866, %v853
        %v945 = vpack.c.b16 %v880, %v867
        %v946 = vpack.c.b16 %v881, %v868
        %v947 = vpack.c.b16 %v882, %v869
        %v948 = vpack.c.b16 %v883, %v870
        %v949 = vpack.c.b16 %v884, %v871
        %v950 = vpack.c.b16 %v885, %v872
        %v951 = vpack.c.b16 %v886, %v873
        %v952 = vpack.c.b16 %v887, %v874
        %v953 = vpack.c.b16 %v888, %v875
        %v954 = vpack.c.b16 %v889, %v876
        %v955 = vpack.c.b16 %v890, %v877
        %v956 = vpack.c.b16 %v891, %v878
        %v957 = vpack.c.b16 %v892, %v879
        %v958 = vpack.c.b16 %v906, %v893
        %v959 = vpack.c.b16 %v907, %v894
        %v960 = vpack.c.b16 %v908, %v895
        %v961 = vpack.c.b16 %v909, %v896
        %v962 = vpack.c.b16 %v910, %v897
        %v963 = vpack.c.b16 %v911, %v898
        %v964 = vpack.c.b16 %v912, %v899
        %v965 = vpack.c.b16 %v913, %v900
        %v966 = vpack.c.b16 %v914, %v901
        %v967 = vpack.c.b16 %v915, %v902
        %v968 = vpack.c.b16 %v916, %v903
        %v969 = vpack.c.b16 %v917, %v904
        %v970 = vpack.c.b16 %v918, %v905
        %v1213 = vunpack.c.l.b16 %v558
        %v1214 = vunpack.c.l.b16 %v559
        %v1215 = vunpack.c.l.b16 %v560
        %v1216 = vunpack.c.l.b16 %v561
        %v1217 = vunpack.c.l.b16 %v562
        %v1218 = vunpack.c.l.b16 %v563
        %v1219 = vunpack.c.l.b16 %v564
        %v1220 = vunpack.c.l.b16 %v565
        %v1221 = vunpack.c.l.b16 %v566
        %v1222 = vunpack.c.l.b16 %v567
        %v1223 = vunpack.c.l.b16 %v568
        %v1224 = vunpack.c.l.b16 %v569
        %v1225 = vunpack.c.l.b16 %v570
        %v1226 = vunpack.c.l.b16 %v571
        %v1227 = vunpack.c.l.b16 %v572
        %v1228 = vunpack.c.l.b16 %v573
        %v1229 = vunpack.c.l.b16 %v574
        %v1230 = vunpack.c.l.b16 %v575
        %v1231 = vunpack.c.l.b16 %v576
        %v1232 = vunpack.c.l.b16 %v577
        %v1233 = vunpack.c.l.b16 %v578
        %v1234 = vunpack.c.l.b16 %v579
        %v1235 = vunpack.c.l.b16 %v580
        %v1236 = vunpack.c.l.b16 %v581
        %v1237 = vunpack.c.l.b16 %v582
        %v1238 = vunpack.c.l.b16 %v583
        %v1239 = vunpack.c.l.b16 %v584
        %v1240 = vunpack.c.l.b16 %v585
        %v1241 = vunpack.c.l.b16 %v586
        %v1242 = vunpack.c.l.b16 %v587
        %v1243 = vunpack.c.l.b16 %v588
        %v1244 = vunpack.c.l.b16 %v589
        %v1245 = vunpack.c.l.b16 %v590
        %v1246 = vunpack.c.l.b16 %v591
        %v1247 = vunpack.c.l.b16 %v592
        %v1248 = vunpack.c.l.b16 %v593
        %v1249 = vunpack.c.l.b16 %v594
        %v1250 = vunpack.c.l.b16 %v595
        %v1251 = vunpack.c.l.b16 %v596
        %v1252 = vunpack.c.l.b16 %v597
        %v1253 = vunpack.c.l.b16 %v598
        %v1254 = vunpack.c.l.b16 %v599
        %v1255 = vunpack.c.l.b16 %v600
        %v1256 = vunpack.c.l.b16 %v601
        %v1257 = vunpack.c.l.b16 %v602
        %v1258 = vunpack.c.l.b16 %v603
        %v1259 = vunpack.c.l.b16 %v604
        %v1260 = vunpack.c.l.b16 %v605
        %v1261 = vunpack.c.l.b16 %v606
        %v1262 = vunpack.c.l.b16 %v607
        %v1263 = vunpack.c.l.b16 %v608
        %v1264 = vunpack.c.l.b16 %v609
        %v1265 = vunpack.c.l.b16 %v610
        %v1266 = vunpack.c.l.b16 %v611
        %v1267 = vunpack.c.l.b16 %v612
        %v1268 = vunpack.c.l.b16 %v613
        %v1269 = vunpack.c.l.b16 %v614
        %v1270 = vunpack.c.l.b16 %v615
        %v1271 = vunpack.c.l.b16 %v616
        %v1272 = vunpack.c.l.b16 %v617
        %v1273 = vunpack.c.l.b16 %v618
        %v1274 = vunpack.c.l.b16 %v619
        %v1275 = vunpack.c.l.b16 %v620
        %v1276 = vunpack.c.l.b16 %v621
        %v1277 = vunpack.c.l.b16 %v622
        %v1278 = vunpack.c.l.b16 %v623
        %v1279 = vunpack.c.l.b16 %v624
        %v1280 = vunpack.c.l.b16 %v625
        %v1281 = vunpack.c.l.b16 %v626
        %v1282 = vunpack.c.l.b16 %v627
        %v1283 = vunpack.c.l.b16 %v628
        %v1284 = vunpack.c.l.b16 %v629
        %v1285 = vunpack.c.l.b16 %v630
        %v1286 = vunpack.c.l.b16 %v631
        %v1287 = vunpack.c.l.b16 %v632
        %v1288 = vunpack.c.l.b16 %v633
        %v1289 = vunpack.c.l.b16 %v634
        %v1290 = vunpack.c.l.b16 %v635
        %v1291 = vunpack.c.l.b16 %v636
        %v1292 = vunpack.c.l.b16 %v637
        %v1293 = vunpack.c.l.b16 %v638
        %v1294 = vunpack.c.l.b16 %v639
        %v1295 = vunpack.c.l.b16 %v640
        %v1296 = vunpack.c.l.b16 %v641
        %v1297 = vunpack.c.l.b16 %v642
        %v1298 = vunpack.c.l.b16 %v643
        %v1299 = vunpack.c.l.b16 %v644
        %v1300 = vunpack.c.l.b16 %v645
        %v1301 = vunpack.c.l.b16 %v646
        %v1302 = vunpack.c.l.b16 %v647
        %v1303 = vunpack.c.l.b16 %v648
        %v1304 = vunpack.c.l.b16 %v649
        %v1305 = vunpack.c.l.b16 %v650
        %v1306 = vunpack.c.l.b16 %v651
        %v1307 = vunpack.c.l.b16 %v652
        %v1308 = vunpack.c.l.b16 %v653
        %v1309 = vunpack.c.l.b16 %v654
        %v1310 = vunpack.c.l.b16 %v655
        %v1311 = vunpack.c.l.b16 %v656
        %v1312 = vunpack.c.l.b16 %v657
        %v1313 = vunpack.c.l.b16 %v658
        %v1314 = vunpack.c.l.b16 %v659
        %v1315 = vunpack.c.l.b16 %v660
        %v1316 = vunpack.c.l.b16 %v661
        %v1317 = vunpack.c.l.b16 %v662
        %v1318 = vunpack.c.l.b16 %v663
        %v1319 = vunpack.c.l.b16 %v664
        %v1320 = vunpack.c.l.b16 %v665
        %v1321 = vunpack.c.l.b16 %v666
        %v1322 = vunpack.c.l.b16 %v667
        %v1323 = vunpack.c.l.b16 %v668
        %v1324 = vunpack.c.l.b16 %v669
        %v1325 = vunpack.c.l.b16 %v670
        %v1326 = vunpack.c.l.b16 %v671
        %v1327 = vunpack.c.l.b16 %v672
        %v1328 = vunpack.c.l.b16 %v673
        %v1329 = vunpack.c.l.b16 %v674
        %v1330 = vunpack.c.l.b16 %v675
        %v1331 = vunpack.c.l.b16 %v676
        %v1332 = vunpack.c.l.b16 %v677
        %v1333 = vunpack.c.l.b16 %v678
        %v1334 = vunpack.c.l.b16 %v679
        %v1335 = vunpack.c.l.b16 %v680
        %v1336 = vunpack.c.l.b16 %v681
        %v1337 = vunpack.c.l.b16 %v682
        %v1338 = vunpack.c.l.b16 %v683
        %v1339 = vunpack.c.l.b16 %v684
        %v1340 = vunpack.c.l.b16 %v685
        %v1341 = vunpack.c.l.b16 %v686
        %v1342 = vunpack.c.l.b16 %v687
        %v1343 = vunpack.c.l.b16 %v688
        %v1344 = vunpack.c.l.b16 %v689
        %v1345 = vunpack.c.l.b16 %v690
        %v1346 = vunpack.c.l.b16 %v691
        %v1347 = vunpack.c.l.b16 %v692
        %v1348 = vunpack.c.l.b16 %v693
        %v1349 = vunpack.c.l.b16 %v694
        %v1350 = vunpack.c.l.b16 %v695
        %v1351 = vunpack.c.l.b16 %v696
        %v1352 = vunpack.c.l.b16 %v697
        %v1353 = vunpack.c.l.b16 %v698
        %v1354 = vunpack.c.l.b16 %v699
        %v1355 = vunpack.c.l.b16 %v700
        %v1356 = vunpack.c.l.b16 %v701
        %v1357 = vunpack.c.l.b16 %v702
        %v1358 = vunpack.c.l.b16 %v703
        %v1359 = vunpack.c.l.b16 %v704
        %v1360 = vunpack.c.l.b16 %v705
        %v1361 = vunpack.c.l.b16 %v706
        %v1362 = vunpack.c.l.b16 %v707
        %v1363 = vunpack.c.l.b16 %v708
        %v1364 = vunpack.c.l.b16 %v709
        %v1365 = vunpack.c.l.b16 %v710
        %v1366 = vunpack.c.l.b16 %v711
        %v1367 = vunpack.c.l.b16 %v712
        %v1368 = vunpack.c.l.b16 %v713
        %v1369 = vunpack.c.l.b16 %v714
        %v1370 = vunpack.c.l.b16 %v715
        %v1371 = vunpack.c.l.b16 %v716
        %v1372 = vunpack.c.l.b16 %v717
        %v1373 = vunpack.c.l.b16 %v718
        %v1374 = vunpack.c.l.b16 %v719
        %v1375 = vunpack.c.l.b16 %v720
        %v1376 = vunpack.c.l.b16 %v721
        %v1377 = vunpack.c.l.b16 %v722
        %v1378 = vunpack.c.l.b16 %v723
        %v1379 = vunpack.c.l.b16 %v724
        %v1380 = vunpack.c.l.b16 %v725
        %v1381 = vunpack.c.l.b16 %v726
        %v1382 = vunpack.c.l.b16 %v727
        %v1383 = vunpack.c.l.b16 %v728
        %v1384 = vunpack.c.l.b16 %v729
        %v1385 = vunpack.c.l.b16 %v730
        %v1386 = vunpack.c.l.b16 %v731
        %v1387 = vunpack.c.l.b16 %v732
        %v1388 = vunpack.c.l.b16 %v733
        %v1389 = vunpack.c.l.b16 %v734
        %v1390 = vunpack.c.l.b16 %v735
        %v1391 = vunpack.c.l.b16 %v736
        %v1392 = vunpack.c.l.b16 %v737
        %v1393 = vunpack.c.l.b16 %v738
        %v1394 = vunpack.c.l.b16 %v739
        %v1395 = vunpack.c.l.b16 %v740
        %v1396 = vunpack.c.l.b16 %v741
        %v1397 = vunpack.c.l.b16 %v742
        %v1398 = vunpack.c.l.b16 %v743
        %v1399 = vunpack.c.l.b16 %v744
        %v1400 = vunpack.c.l.b16 %v745
        %v1401 = vunpack.c.l.b16 %v746
        %v1402 = vunpack.c.l.b16 %v747
        %v1403 = vunpack.c.l.b16 %v748
        %v1404 = vunpack.c.l.b16 %v749
        %v1405 = vunpack.c.l.b16 %v750
        %v1406 = vunpack.c.l.b16 %v751
        %v1407 = vpack.c.b16 %v1214, %v1213
        %v1408 = vpack.c.b16 %v1216, %v1215
        %v1409 = vpack.c.b16 %v1218, %v1217
        %v1410 = vpack.c.b16 %v1220, %v1219
        %v1411 = vpack.c.b16 %v1222, %v1221
        %v1412 = vpack.c.b16 %v1224, %v1223
        %v1413 = vpack.c.b16 %v1226, %v1225
        %v1414 = vpack.c.b16 %v1228, %v1227
        %v1415 = vpack.c.b16 %v1230, %v1229
        %v1416 = vpack.c.b16 %v1232, %v1231
        %v1417 = vpack.c.b16 %v1234, %v1233
        %v1418 = vpack.c.b16 %v1236, %v1235
        %v1419 = vpack.c.b16 %v1238, %v1237
        %v1420 = vpack.c.b16 %v1240, %v1239
        %v1421 = vpack.c.b16 %v1242, %v1241
        %v1422 = vpack.c.b16 %v1244, %v1243
        %v1423 = vpack.c.b16 %v1246, %v1245
        %v1424 = vpack.c.b16 %v1248, %v1247
        %v1425 = vpack.c.b16 %v1250, %v1249
        %v1426 = vpack.c.b16 %v1252, %v1251
        %v1427 = vpack.c.b16 %v1254, %v1253
        %v1428 = vpack.c.b16 %v1256, %v1255
        %v1429 = vpack.c.b16 %v1258, %v1257
        %v1430 = vpack.c.b16 %v1260, %v1259
        %v1431 = vpack.c.b16 %v1262, %v1261
        %v1432 = vpack.c.b16 %v1264, %v1263
        %v1433 = vpack.c.b16 %v1266, %v1265
        %v1434 = vpack.c.b16 %v1268, %v1267
        %v1435 = vpack.c.b16 %v1270, %v1269
        %v1436 = vpack.c.b16 %v1272, %v1271
        %v1437 = vpack.c.b16 %v1274, %v1273
        %v1438 = vpack.c.b16 %v1276, %v1275
        %v1439 = vpack.c.b16 %v1278, %v1277
        %v1440 = vpack.c.b16 %v1280, %v1279
        %v1441 = vpack.c.b16 %v1282, %v1281
        %v1442 = vpack.c.b16 %v1284, %v1283
        %v1443 = vpack.c.b16 %v1286, %v1285
        %v1444 = vpack.c.b16 %v1288, %v1287
        %v1445 = vpack.c.b16 %v1290, %v1289
        %v1446 = vpack.c.b16 %v1292, %v1291
        %v1447 = vpack.c.b16 %v1294, %v1293
        %v1448 = vpack.c.b16 %v1296, %v1295
        %v1449 = vpack.c.b16 %v1298, %v1297
        %v1450 = vpack.c.b16 %v1300, %v1299
        %v1451 = vpack.c.b16 %v1302, %v1301
        %v1452 = vpack.c.b16 %v1304, %v1303
        %v1453 = vpack.c.b16 %v1306, %v1305
        %v1454 = vpack.c.b16 %v1308, %v1307
        %v1455 = vpack.c.b16 %v1310, %v1309
        %v1456 = vpack.c.b16 %v1312, %v1311
        %v1457 = vpack.c.b16 %v1314, %v1313
        %v1458 = vpack.c.b16 %v1316, %v1315
        %v1459 = vpack.c.b16 %v1318, %v1317
        %v1460 = vpack.c.b16 %v1320, %v1319
        %v1461 = vpack.c.b16 %v1322, %v1321
        %v1462 = vpack.c.b16 %v1324, %v1323
        %v1463 = vpack.c.b16 %v1326, %v1325
        %v1464 = vpack.c.b16 %v1328, %v1327
        %v1465 = vpack.c.b16 %v1330, %v1329
        %v1466 = vpack.c.b16 %v1332, %v1331
        %v1467 = vpack.c.b16 %v1334, %v1333
        %v1468 = vpack.c.b16 %v1336, %v1335
        %v1469 = vpack.c.b16 %v1338, %v1337
        %v1470 = vpack.c.b16 %v1340, %v1339
        %v1471 = vpack.c.b16 %v1342, %v1341
        %v1472 = vpack.c.b16 %v1344, %v1343
        %v1473 = vpack.c.b16 %v1346, %v1345
        %v1474 = vpack.c.b16 %v1348, %v1347
        %v1475 = vpack.c.b16 %v1350, %v1349
        %v1476 = vpack.c.b16 %v1352, %v1351
        %v1477 = vpack.c.b16 %v1354, %v1353
        %v1478 = vpack.c.b16 %v1356, %v1355
        %v1479 = vpack.c.b16 %v1358, %v1357
        %v1480 = vpack.c.b16 %v1360, %v1359
        %v1481 = vpack.c.b16 %v1362, %v1361
        %v1482 = vpack.c.b16 %v1364, %v1363
        %v1483 = vpack.c.b16 %v1366, %v1365
        %v1484 = vpack.c.b16 %v1368, %v1367
        %v1485 = vpack.c.b16 %v1370, %v1369
        %v1486 = vpack.c.b16 %v1372, %v1371
        %v1487 = vpack.c.b16 %v1374, %v1373
        %v1488 = vpack.c.b16 %v1376, %v1375
        %v1489 = vpack.c.b16 %v1378, %v1377
        %v1490 = vpack.c.b16 %v1380, %v1379
        %v1491 = vpack.c.b16 %v1382, %v1381
        %v1492 = vpack.c.b16 %v1384, %v1383
        %v1493 = vpack.c.b16 %v1386, %v1385
        %v1494 = vpack.c.b16 %v1388, %v1387
        %v1495 = vpack.c.b16 %v1390, %v1389
        %v1496 = vpack.c.b16 %v1392, %v1391
        %v1497 = vpack.c.b16 %v1394, %v1393
        %v1498 = vpack.c.b16 %v1396, %v1395
        %v1499 = vpack.c.b16 %v1398, %v1397
        %v1500 = vpack.c.b16 %v1400, %v1399
        %v1501 = vpack.c.b16 %v1402, %v1401
        %v1502 = vpack.c.b16 %v1404, %v1403
        %v1503 = vpack.c.b16 %v1406, %v1405
        %vm1600 = vcmask 97280
        %v1602 = vsel %vm1600, %v931, 0
        %v1605 = vsel %vm1600, %v944, 0
        %v1608 = vsel %vm1600, %v957, 0
        %v1611 = vsel %vm1600, %v970, 0
        %vm1613 = vcmask 1045504
        %v1615 = vsel %vm1613, %v1503, 0
        %1617 = vmatprep.subr.bf16.mxu0 0
        %1618 = vmatpush1.bf16.msra.mxu0 %v1414
        %1619 = vmatprep.subr.bf16.mxu0 0
        %1620 = vmatpush1.bf16.msra.mxu0 %v1413
        %1621 = vmatprep.subr.bf16.mxu0 0
        %1622 = vmatpush1.bf16.msra.mxu0 %v1412
        %1623 = vmatprep.subr.bf16.mxu0 0
        %1624 = vmatpush1.bf16.msra.mxu0 %v1411
        %1625 = vmatprep.subr.bf16.mxu0 0
        %1626 = vmatpush1.bf16.msra.mxu0 %v1410
        %1627 = vmatprep.subr.bf16.mxu0 0
        %1628 = vmatpush1.bf16.msra.mxu0 %v1409
        %1629 = vmatprep.subr.bf16.mxu0 0
        %1630 = vmatpush1.bf16.msra.mxu0 %v1408
        %1631 = vmatprep.subr.bf16.mxu0 0
        %1632 = vmatpush1.bf16.msra.mxu0 %v1407
        %1633 = vmatprep.subr.bf16.mxu0 0
        %1634 = vmatpush2.bf16.msra.mxu0 %v1422
        %1635 = vmatprep.subr.bf16.mxu0 0
        %1636 = vmatpush2.bf16.msra.mxu0 %v1421
        %1637 = vmatprep.subr.bf16.mxu0 0
        %1638 = vmatpush2.bf16.msra.mxu0 %v1420
        %1639 = vmatprep.subr.bf16.mxu0 0
        %1640 = vmatpush2.bf16.msra.mxu0 %v1419
        %1641 = vmatprep.subr.bf16.mxu0 0
        %1642 = vmatpush2.bf16.msra.mxu0 %v1418
        %1643 = vmatprep.subr.bf16.mxu0 0
        %1644 = vmatpush2.bf16.msra.mxu0 %v1417
        %1645 = vmatprep.subr.bf16.mxu0 0
        %1646 = vmatpush2.bf16.msra.mxu0 %v1416
        %1647 = vmatprep.subr.bf16.mxu0 0
        %1648 = vmatpush2.bf16.msra.mxu0 %v1415
        %1649 = vmatprep.mubr.bf16.mxu0 %v920
        %1650 = vmatmul.mubr.bf16.gmra.mxu0 %v919
        %v1651 = vpop.f32.mrf.mxu0
        %v1652 = vadd.f32 %v757, %v1651
        %v1653 = vpop.f32.mrf.mxu0
        %v1654 = vpop.f32.mrf.mxu0
        %v1655 = vadd.f32 %v757, %v1654
        %v1656 = vpop.f32.mrf.mxu0
        %1657 = vmatprep.mubr.bf16.mxu0 %v933
        %1658 = vmatmul.mubr.bf16.gmra.mxu0 %v932
        %v1659 = vpop.f32.mrf.mxu0
        %v1660 = vadd.f32 %v757, %v1659
        %v1661 = vpop.f32.mrf.mxu0
        %v1662 = vpop.f32.mrf.mxu0
        %v1663 = vadd.f32 %v757, %v1662
        %v1664 = vpop.f32.mrf.mxu0
        %1665 = vmatprep.mubr.bf16.mxu0 %v946
        %1666 = vmatmul.mubr.bf16.gmra.mxu0 %v945
        %v1667 = vpop.f32.mrf.mxu0
        %v1668 = vadd.f32 %v757, %v1667
        %v1669 = vpop.f32.mrf.mxu0
        %v1670 = vpop.f32.mrf.mxu0
        %v1671 = vadd.f32 %v757, %v1670
        %v1672 = vpop.f32.mrf.mxu0
        %1673 = vmatprep.mubr.bf16.mxu0 %v959
        %1674 = vmatmul.mubr.bf16.gmra.mxu0 %v958
        %v1675 = vpop.f32.mrf.mxu0
        %v1676 = vadd.f32 %v757, %v1675
        %v1677 = vpop.f32.mrf.mxu0
        %v1678 = vpop.f32.mrf.mxu0
        %v1679 = vadd.f32 %v757, %v1678
        %v1680 = vpop.f32.mrf.mxu0
        %1681 = vdwg.mxu0
        %1682 = vmatprep.subr.bf16.mxu0 0
        %1683 = vmatpush1.bf16.msra.mxu0 %v1430
        %1684 = vmatprep.subr.bf16.mxu0 0
        %1685 = vmatpush1.bf16.msra.mxu0 %v1429
        %1686 = vmatprep.subr.bf16.mxu0 0
        %1687 = vmatpush1.bf16.msra.mxu0 %v1428
        %1688 = vmatprep.subr.bf16.mxu0 0
        %1689 = vmatpush1.bf16.msra.mxu0 %v1427
        %1690 = vmatprep.subr.bf16.mxu0 0
        %1691 = vmatpush1.bf16.msra.mxu0 %v1426
        %1692 = vmatprep.subr.bf16.mxu0 0
        %1693 = vmatpush1.bf16.msra.mxu0 %v1425
        %1694 = vmatprep.subr.bf16.mxu0 0
        %1695 = vmatpush1.bf16.msra.mxu0 %v1424
        %1696 = vmatprep.subr.bf16.mxu0 0
        %1697 = vmatpush1.bf16.msra.mxu0 %v1423
        %1698 = vmatprep.subr.bf16.mxu0 0
        %1699 = vmatpush2.bf16.msra.mxu0 %v1438
        %1700 = vmatprep.subr.bf16.mxu0 0
        %1701 = vmatpush2.bf16.msra.mxu0 %v1437
        %1702 = vmatprep.subr.bf16.mxu0 0
        %1703 = vmatpush2.bf16.msra.mxu0 %v1436
        %1704 = vmatprep.subr.bf16.mxu0 0
        %1705 = vmatpush2.bf16.msra.mxu0 %v1435
        %1706 = vmatprep.subr.bf16.mxu0 0
        %1707 = vmatpush2.bf16.msra.mxu0 %v1434
        %1708 = vmatprep.subr.bf16.mxu0 0
        %1709 = vmatpush2.bf16.msra.mxu0 %v1433
        %1710 = vmatprep.subr.bf16.mxu0 0
        %1711 = vmatpush2.bf16.msra.mxu0 %v1432
        %1712 = vmatprep.subr.bf16.mxu0 0
        %1713 = vmatpush2.bf16.msra.mxu0 %v1431
        %1714 = vmatprep.mubr.bf16.mxu0 %v922
        %1715 = vmatmul.mubr.bf16.gmra.mxu0 %v921
        %v1716 = vpop.f32.mrf.mxu0
        %v1717 = vadd.f32 %v1652, %v1716
        %v1718 = vpop.f32.mrf.mxu0
        %v1719 = vpop.f32.mrf.mxu0
        %v1720 = vadd.f32 %v1655, %v1719
        %v1721 = vpop.f32.mrf.mxu0
        %1722 = vmatprep.mubr.bf16.mxu0 %v935
        %1723 = vmatmul.mubr.bf16.gmra.mxu0 %v934
        %v1724 = vpop.f32.mrf.mxu0
        %v1725 = vadd.f32 %v1660, %v1724
        %v1726 = vpop.f32.mrf.mxu0
        %v1727 = vpop.f32.mrf.mxu0
        %v1728 = vadd.f32 %v1663, %v1727
        %v1729 = vpop.f32.mrf.mxu0
        %1730 = vmatprep.mubr.bf16.mxu0 %v948
        %1731 = vmatmul.mubr.bf16.gmra.mxu0 %v947
        %v1732 = vpop.f32.mrf.mxu0
        %v1733 = vadd.f32 %v1668, %v1732
        %v1734 = vpop.f32.mrf.mxu0
        %v1735 = vpop.f32.mrf.mxu0
        %v1736 = vadd.f32 %v1671, %v1735
        %v1737 = vpop.f32.mrf.mxu0
        %1738 = vmatprep.mubr.bf16.mxu0 %v961
        %1739 = vmatmul.mubr.bf16.gmra.mxu0 %v960
        %v1740 = vpop.f32.mrf.mxu0
        %v1741 = vadd.f32 %v1676, %v1740
        %v1742 = vpop.f32.mrf.mxu0
        %v1743 = vpop.f32.mrf.mxu0
        %v1744 = vadd.f32 %v1679, %v1743
        %v1745 = vpop.f32.mrf.mxu0
        %1746 = vdwg.mxu0
        %1747 = vmatprep.subr.bf16.mxu0 0
        %1748 = vmatpush1.bf16.msra.mxu0 %v1446
        %1749 = vmatprep.subr.bf16.mxu0 0
        %1750 = vmatpush1.bf16.msra.mxu0 %v1445
        %1751 = vmatprep.subr.bf16.mxu0 0
        %1752 = vmatpush1.bf16.msra.mxu0 %v1444
        %1753 = vmatprep.subr.bf16.mxu0 0
        %1754 = vmatpush1.bf16.msra.mxu0 %v1443
        %1755 = vmatprep.subr.bf16.mxu0 0
        %1756 = vmatpush1.bf16.msra.mxu0 %v1442
        %1757 = vmatprep.subr.bf16.mxu0 0
        %1758 = vmatpush1.bf16.msra.mxu0 %v1441
        %1759 = vmatprep.subr.bf16.mxu0 0
        %1760 = vmatpush1.bf16.msra.mxu0 %v1440
        %1761 = vmatprep.subr.bf16.mxu0 0
        %1762 = vmatpush1.bf16.msra.mxu0 %v1439
        %1763 = vmatprep.subr.bf16.mxu0 0
        %1764 = vmatpush2.bf16.msra.mxu0 %v1454
        %1765 = vmatprep.subr.bf16.mxu0 0
        %1766 = vmatpush2.bf16.msra.mxu0 %v1453
        %1767 = vmatprep.subr.bf16.mxu0 0
        %1768 = vmatpush2.bf16.msra.mxu0 %v1452
        %1769 = vmatprep.subr.bf16.mxu0 0
        %1770 = vmatpush2.bf16.msra.mxu0 %v1451
        %1771 = vmatprep.subr.bf16.mxu0 0
        %1772 = vmatpush2.bf16.msra.mxu0 %v1450
        %1773 = vmatprep.subr.bf16.mxu0 0
        %1774 = vmatpush2.bf16.msra.mxu0 %v1449
        %1775 = vmatprep.subr.bf16.mxu0 0
        %1776 = vmatpush2.bf16.msra.mxu0 %v1448
        %1777 = vmatprep.subr.bf16.mxu0 0
        %1778 = vmatpush2.bf16.msra.mxu0 %v1447
        %1779 = vmatprep.mubr.bf16.mxu0 %v924
        %1780 = vmatmul.mubr.bf16.gmra.mxu0 %v923
        %v1781 = vpop.f32.mrf.mxu0
        %v1782 = vadd.f32 %v1717, %v1781
        %v1783 = vpop.f32.mrf.mxu0
        %v1784 = vpop.f32.mrf.mxu0
        %v1785 = vadd.f32 %v1720, %v1784
        %v1786 = vpop.f32.mrf.mxu0
        %1787 = vmatprep.mubr.bf16.mxu0 %v937
        %1788 = vmatmul.mubr.bf16.gmra.mxu0 %v936
        %v1789 = vpop.f32.mrf.mxu0
        %v1790 = vadd.f32 %v1725, %v1789
        %v1791 = vpop.f32.mrf.mxu0
        %v1792 = vpop.f32.mrf.mxu0
        %v1793 = vadd.f32 %v1728, %v1792
        %v1794 = vpop.f32.mrf.mxu0
        %1795 = vmatprep.mubr.bf16.mxu0 %v950
        %1796 = vmatmul.mubr.bf16.gmra.mxu0 %v949
        %v1797 = vpop.f32.mrf.mxu0
        %v1798 = vadd.f32 %v1733, %v1797
        %v1799 = vpop.f32.mrf.mxu0
        %v1800 = vpop.f32.mrf.mxu0
        %v1801 = vadd.f32 %v1736, %v1800
        %v1802 = vpop.f32.mrf.mxu0
        %1803 = vmatprep.mubr.bf16.mxu0 %v963
        %1804 = vmatmul.mubr.bf16.gmra.mxu0 %v962
        %v1805 = vpop.f32.mrf.mxu0
        %v1806 = vadd.f32 %v1741, %v1805
        %v1807 = vpop.f32.mrf.mxu0
        %v1808 = vpop.f32.mrf.mxu0
        %v1809 = vadd.f32 %v1744, %v1808
        %v1810 = vpop.f32.mrf.mxu0
        %1811 = vdwg.mxu0
        %1812 = vmatprep.subr.bf16.mxu0 0
        %1813 = vmatpush1.bf16.msra.mxu0 %v1462
        %1814 = vmatprep.subr.bf16.mxu0 0
        %1815 = vmatpush1.bf16.msra.mxu0 %v1461
        %1816 = vmatprep.subr.bf16.mxu0 0
        %1817 = vmatpush1.bf16.msra.mxu0 %v1460
        %1818 = vmatprep.subr.bf16.mxu0 0
        %1819 = vmatpush1.bf16.msra.mxu0 %v1459
        %1820 = vmatprep.subr.bf16.mxu0 0
        %1821 = vmatpush1.bf16.msra.mxu0 %v1458
        %1822 = vmatprep.subr.bf16.mxu0 0
        %1823 = vmatpush1.bf16.msra.mxu0 %v1457
        %1824 = vmatprep.subr.bf16.mxu0 0
        %1825 = vmatpush1.bf16.msra.mxu0 %v1456
        %1826 = vmatprep.subr.bf16.mxu0 0
        %1827 = vmatpush1.bf16.msra.mxu0 %v1455
        %1828 = vmatprep.subr.bf16.mxu0 0
        %1829 = vmatpush2.bf16.msra.mxu0 %v1470
        %1830 = vmatprep.subr.bf16.mxu0 0
        %1831 = vmatpush2.bf16.msra.mxu0 %v1469
        %1832 = vmatprep.subr.bf16.mxu0 0
        %1833 = vmatpush2.bf16.msra.mxu0 %v1468
        %1834 = vmatprep.subr.bf16.mxu0 0
        %1835 = vmatpush2.bf16.msra.mxu0 %v1467
        %1836 = vmatprep.subr.bf16.mxu0 0
        %1837 = vmatpush2.bf16.msra.mxu0 %v1466
        %1838 = vmatprep.subr.bf16.mxu0 0
        %1839 = vmatpush2.bf16.msra.mxu0 %v1465
        %1840 = vmatprep.subr.bf16.mxu0 0
        %1841 = vmatpush2.bf16.msra.mxu0 %v1464
        %1842 = vmatprep.subr.bf16.mxu0 0
        %1843 = vmatpush2.bf16.msra.mxu0 %v1463
        %1844 = vmatprep.mubr.bf16.mxu0 %v926
        %1845 = vmatmul.mubr.bf16.gmra.mxu0 %v925
        %v1846 = vpop.f32.mrf.mxu0
        %v1847 = vadd.f32 %v1782, %v1846
        %v1848 = vpop.f32.mrf.mxu0
        %v1849 = vpop.f32.mrf.mxu0
        %v1850 = vadd.f32 %v1785, %v1849
        %v1851 = vpop.f32.mrf.mxu0
        %1852 = vmatprep.mubr.bf16.mxu0 %v939
        %1853 = vmatmul.mubr.bf16.gmra.mxu0 %v938
        %v1854 = vpop.f32.mrf.mxu0
        %v1855 = vadd.f32 %v1790, %v1854
        %v1856 = vpop.f32.mrf.mxu0
        %v1857 = vpop.f32.mrf.mxu0
        %v1858 = vadd.f32 %v1793, %v1857
        %v1859 = vpop.f32.mrf.mxu0
        %1860 = vmatprep.mubr.bf16.mxu0 %v952
        %1861 = vmatmul.mubr.bf16.gmra.mxu0 %v951
        %v1862 = vpop.f32.mrf.mxu0
        %v1863 = vadd.f32 %v1798, %v1862
        %v1864 = vpop.f32.mrf.mxu0
        %v1865 = vpop.f32.mrf.mxu0
        %v1866 = vadd.f32 %v1801, %v1865
        %v1867 = vpop.f32.mrf.mxu0
        %1868 = vmatprep.mubr.bf16.mxu0 %v965
        %1869 = vmatmul.mubr.bf16.gmra.mxu0 %v964
        %v1870 = vpop.f32.mrf.mxu0
        %v1871 = vadd.f32 %v1806, %v1870
        %v1872 = vpop.f32.mrf.mxu0
        %v1873 = vpop.f32.mrf.mxu0
        %v1874 = vadd.f32 %v1809, %v1873
        %v1875 = vpop.f32.mrf.mxu0
        %1876 = vdwg.mxu0
        %1877 = vmatprep.subr.bf16.mxu0 0
        %1878 = vmatpush1.bf16.msra.mxu0 %v1478
        %1879 = vmatprep.subr.bf16.mxu0 0
        %1880 = vmatpush1.bf16.msra.mxu0 %v1477
        %1881 = vmatprep.subr.bf16.mxu0 0
        %1882 = vmatpush1.bf16.msra.mxu0 %v1476
        %1883 = vmatprep.subr.bf16.mxu0 0
        %1884 = vmatpush1.bf16.msra.mxu0 %v1475
        %1885 = vmatprep.subr.bf16.mxu0 0
        %1886 = vmatpush1.bf16.msra.mxu0 %v1474
        %1887 = vmatprep.subr.bf16.mxu0 0
        %1888 = vmatpush1.bf16.msra.mxu0 %v1473
        %1889 = vmatprep.subr.bf16.mxu0 0
        %1890 = vmatpush1.bf16.msra.mxu0 %v1472
        %1891 = vmatprep.subr.bf16.mxu0 0
        %1892 = vmatpush1.bf16.msra.mxu0 %v1471
        %1893 = vmatprep.subr.bf16.mxu0 0
        %1894 = vmatpush2.bf16.msra.mxu0 %v1486
        %1895 = vmatprep.subr.bf16.mxu0 0
        %1896 = vmatpush2.bf16.msra.mxu0 %v1485
        %1897 = vmatprep.subr.bf16.mxu0 0
        %1898 = vmatpush2.bf16.msra.mxu0 %v1484
        %1899 = vmatprep.subr.bf16.mxu0 0
        %1900 = vmatpush2.bf16.msra.mxu0 %v1483
        %1901 = vmatprep.subr.bf16.mxu0 0
        %1902 = vmatpush2.bf16.msra.mxu0 %v1482
        %1903 = vmatprep.subr.bf16.mxu0 0
        %1904 = vmatpush2.bf16.msra.mxu0 %v1481
        %1905 = vmatprep.subr.bf16.mxu0 0
        %1906 = vmatpush2.bf16.msra.mxu0 %v1480
        %1907 = vmatprep.subr.bf16.mxu0 0
        %1908 = vmatpush2.bf16.msra.mxu0 %v1479
        %1909 = vmatprep.mubr.bf16.mxu0 %v928
        %1910 = vmatmul.mubr.bf16.gmra.mxu0 %v927
        %v1911 = vpop.f32.mrf.mxu0
        %v1912 = vadd.f32 %v1847, %v1911
        %v1913 = vpop.f32.mrf.mxu0
        %v1914 = vpop.f32.mrf.mxu0
        %v1915 = vadd.f32 %v1850, %v1914
        %v1916 = vpop.f32.mrf.mxu0
        %1917 = vmatprep.mubr.bf16.mxu0 %v941
        %1918 = vmatmul.mubr.bf16.gmra.mxu0 %v940
        %v1919 = vpop.f32.mrf.mxu0
        %v1920 = vadd.f32 %v1855, %v1919
        %v1921 = vpop.f32.mrf.mxu0
        %v1922 = vpop.f32.mrf.mxu0
        %v1923 = vadd.f32 %v1858, %v1922
        %v1924 = vpop.f32.mrf.mxu0
        %1925 = vmatprep.mubr.bf16.mxu0 %v954
        %1926 = vmatmul.mubr.bf16.gmra.mxu0 %v953
        %v1927 = vpop.f32.mrf.mxu0
        %v1928 = vadd.f32 %v1863, %v1927
        %v1929 = vpop.f32.mrf.mxu0
        %v1930 = vpop.f32.mrf.mxu0
        %v1931 = vadd.f32 %v1866, %v1930
        %v1932 = vpop.f32.mrf.mxu0
        %1933 = vmatprep.mubr.bf16.mxu0 %v967
        %1934 = vmatmul.mubr.bf16.gmra.mxu0 %v966
        %v1935 = vpop.f32.mrf.mxu0
        %v1936 = vadd.f32 %v1871, %v1935
        %v1937 = vpop.f32.mrf.mxu0
        %v1938 = vpop.f32.mrf.mxu0
        %v1939 = vadd.f32 %v1874, %v1938
        %v1940 = vpop.f32.mrf.mxu0
        %1941 = vdwg.mxu0
        %1942 = vmatprep.subr.bf16.mxu0 0
        %1943 = vmatpush1.bf16.msra.mxu0 %v1494
        %1944 = vmatprep.subr.bf16.mxu0 0
        %1945 = vmatpush1.bf16.msra.mxu0 %v1493
        %1946 = vmatprep.subr.bf16.mxu0 0
        %1947 = vmatpush1.bf16.msra.mxu0 %v1492
        %1948 = vmatprep.subr.bf16.mxu0 0
        %1949 = vmatpush1.bf16.msra.mxu0 %v1491
        %1950 = vmatprep.subr.bf16.mxu0 0
        %1951 = vmatpush1.bf16.msra.mxu0 %v1490
        %1952 = vmatprep.subr.bf16.mxu0 0
        %1953 = vmatpush1.bf16.msra.mxu0 %v1489
        %1954 = vmatprep.subr.bf16.mxu0 0
        %1955 = vmatpush1.bf16.msra.mxu0 %v1488
        %1956 = vmatprep.subr.bf16.mxu0 0
        %1957 = vmatpush1.bf16.msra.mxu0 %v1487
        %1958 = vmatprep.subr.bf16.mxu0 0
        %1959 = vmatpush2.bf16.msra.mxu0 %v1502
        %1960 = vmatprep.subr.bf16.mxu0 0
        %1961 = vmatpush2.bf16.msra.mxu0 %v1501
        %1962 = vmatprep.subr.bf16.mxu0 0
        %1963 = vmatpush2.bf16.msra.mxu0 %v1500
        %1964 = vmatprep.subr.bf16.mxu0 0
        %1965 = vmatpush2.bf16.msra.mxu0 %v1499
        %1966 = vmatprep.subr.bf16.mxu0 0
        %1967 = vmatpush2.bf16.msra.mxu0 %v1498
        %1968 = vmatprep.subr.bf16.mxu0 0
        %1969 = vmatpush2.bf16.msra.mxu0 %v1497
        %1970 = vmatprep.subr.bf16.mxu0 0
        %1971 = vmatpush2.bf16.msra.mxu0 %v1496
        %1972 = vmatprep.subr.bf16.mxu0 0
        %1973 = vmatpush2.bf16.msra.mxu0 %v1495
        %1974 = vmatprep.mubr.bf16.mxu0 %v930
        %1975 = vmatmul.mubr.bf16.gmra.mxu0 %v929
        %v1976 = vpop.f32.mrf.mxu0
        %v1977 = vadd.f32 %v1912, %v1976
        %v1978 = vpop.f32.mrf.mxu0
        %v1979 = vpop.f32.mrf.mxu0
        %v1980 = vadd.f32 %v1915, %v1979
        %v1981 = vpop.f32.mrf.mxu0
        %1982 = vmatprep.mubr.bf16.mxu0 %v943
        %1983 = vmatmul.mubr.bf16.gmra.mxu0 %v942
        %v1984 = vpop.f32.mrf.mxu0
        %v1985 = vadd.f32 %v1920, %v1984
        %v1986 = vpop.f32.mrf.mxu0
        %v1987 = vpop.f32.mrf.mxu0
        %v1988 = vadd.f32 %v1923, %v1987
        %v1989 = vpop.f32.mrf.mxu0
        %1990 = vmatprep.mubr.bf16.mxu0 %v956
        %1991 = vmatmul.mubr.bf16.gmra.mxu0 %v955
        %v1992 = vpop.f32.mrf.mxu0
        %v1993 = vadd.f32 %v1928, %v1992
        %v1994 = vpop.f32.mrf.mxu0
        %v1995 = vpop.f32.mrf.mxu0
        %v1996 = vadd.f32 %v1931, %v1995
        %v1997 = vpop.f32.mrf.mxu0
        %1998 = vmatprep.mubr.bf16.mxu0 %v969
        %1999 = vmatmul.mubr.bf16.gmra.mxu0 %v968
        %v2000 = vpop.f32.mrf.mxu0
        %v2001 = vadd.f32 %v1936, %v2000
        %v2002 = vpop.f32.mrf.mxu0
        %v2003 = vpop.f32.mrf.mxu0
        %v2004 = vadd.f32 %v1939, %v2003
        %v2005 = vpop.f32.mrf.mxu0
        %2006 = vdwg.mxu0
        %2007 = vmatprep.subr.bf16.mxu0 0
        %2008 = vmatpush1.bf16.msra.mxu0 0
        %2009 = vmatprep.subr.bf16.mxu0 0
        %2010 = vmatpush1.bf16.msra.mxu0 0
        %2011 = vmatprep.subr.bf16.mxu0 0
        %2012 = vmatpush1.bf16.msra.mxu0 0
        %2013 = vmatprep.subr.bf16.mxu0 0
        %2014 = vmatpush1.bf16.msra.mxu0 0
        %2015 = vmatprep.subr.bf16.mxu0 0
        %2016 = vmatpush1.bf16.msra.mxu0 0
        %2017 = vmatprep.subr.bf16.mxu0 0
        %2018 = vmatpush1.bf16.msra.mxu0 0
        %2019 = vmatprep.subr.bf16.mxu0 0
        %2020 = vmatpush1.bf16.msra.mxu0 0
        %2021 = vmatprep.subr.bf16.mxu0 0
        %2022 = vmatpush1.bf16.msra.mxu0 %v1615
        %2023 = vmatprep.subr.bf16.mxu0 0
        %2024 = vmatpush2.bf16.msra.mxu0 0
        %2025 = vmatprep.subr.bf16.mxu0 0
        %2026 = vmatpush2.bf16.msra.mxu0 0
        %2027 = vmatprep.subr.bf16.mxu0 0
        %2028 = vmatpush2.bf16.msra.mxu0 0
        %2029 = vmatprep.subr.bf16.mxu0 0
        %2030 = vmatpush2.bf16.msra.mxu0 0
        %2031 = vmatprep.subr.bf16.mxu0 0
        %2032 = vmatpush2.bf16.msra.mxu0 0
        %2033 = vmatprep.subr.bf16.mxu0 0
        %2034 = vmatpush2.bf16.msra.mxu0 0
        %2035 = vmatprep.subr.bf16.mxu0 0
        %2036 = vmatpush2.bf16.msra.mxu0 0
        %2037 = vmatprep.subr.bf16.mxu0 0
        %2038 = vmatpush2.bf16.msra.mxu0 0
        %2039 = vmatprep.mubr.bf16.mxu0 0
        %2040 = vmatmul.mubr.bf16.gmra.mxu0 %v1602
        %v2041 = vpop.f32.mrf.mxu0
        %v2042 = vadd.f32 %v1977, %v2041
        %v2043 = vpop.f32.mrf.mxu0
        %v2044 = vpop.f32.mrf.mxu0
        %v2045 = vadd.f32 %v1980, %v2044
        %v2046 = vpop.f32.mrf.mxu0
        %2047 = vmatprep.mubr.bf16.mxu0 0
        %2048 = vmatmul.mubr.bf16.gmra.mxu0 %v1605
        %v2049 = vpop.f32.mrf.mxu0
        %v2050 = vadd.f32 %v1985, %v2049
        %v2051 = vpop.f32.mrf.mxu0
        %v2052 = vpop.f32.mrf.mxu0
        %v2053 = vadd.f32 %v1988, %v2052
        %v2054 = vpop.f32.mrf.mxu0
        %2055 = vmatprep.mubr.bf16.mxu0 0
        %2056 = vmatmul.mubr.bf16.gmra.mxu0 %v1608
        %v2057 = vpop.f32.mrf.mxu0
        %v2058 = vadd.f32 %v1993, %v2057
        %v2059 = vpop.f32.mrf.mxu0
        %v2060 = vpop.f32.mrf.mxu0
        %v2061 = vadd.f32 %v1996, %v2060
        %v2062 = vpop.f32.mrf.mxu0
        %2063 = vmatprep.mubr.bf16.mxu0 0
        %2064 = vmatmul.mubr.bf16.gmra.mxu0 %v1611
        %v2065 = vpop.f32.mrf.mxu0
        %v2066 = vadd.f32 %v2001, %v2065
        %v2067 = vpop.f32.mrf.mxu0
        %v2068 = vpop.f32.mrf.mxu0
        %v2069 = vadd.f32 %v2004, %v2068
        %v2070 = vpop.f32.mrf.mxu0
        %2071 = vdwg.mxu0
        %v2072 = vmul.f32 %v2042, %v2042
        %v2073 = vmul.f32 %v2045, %v2045
        %v2074 = vmul.f32 %v2050, %v2050
        %v2075 = vmul.f32 %v2053, %v2053
        %v2076 = vmul.f32 %v2058, %v2058
        %v2077 = vmul.f32 %v2061, %v2061
        %v2078 = vmul.f32 %v2066, %v2066
        %v2079 = vmul.f32 %v2069, %v2069
        %v2080 = vmul.f32 %v2072, %v2042
        %v2081 = vmul.f32 %v2073, %v2045
        %v2082 = vmul.f32 %v2074, %v2050
        %v2083 = vmul.f32 %v2075, %v2053
        %v2084 = vmul.f32 %v2076, %v2058
        %v2085 = vmul.f32 %v2077, %v2061
        %v2086 = vmul.f32 %v2078, %v2066
        %v2087 = vmul.f32 %v2079, %v2069
        %2088 = vst [vmem:[#allocation2 + $0x40] sm:$0xff] %v2080
        %2089 = vst [vmem:[#allocation2 + $0x48] sm:$0xff] %v2081
        %2090 = vst [vmem:[#allocation2 + $0x50] sm:$0xff] %v2082
        %2091 = vst [vmem:[#allocation2 + $0x58] sm:$0xff] %v2083
        %2092 = vst [vmem:[#allocation2 + $0x60] sm:$0xff] %v2084
        %2093 = vst [vmem:[#allocation2 + $0x68] sm:$0xff] %v2085
        %2094 = vst [vmem:[#allocation2 + $0x70] sm:$0xff] %v2086
        %2095 = vst [vmem:[#allocation2 + $0x78] sm:$0xff] %v2087
        %v2096 = vld [vmem:[%s468] sm:$0xff]
        %v2097 = vld [vmem:[%s468 + $0x8] sm:$0xff]
        %v2098 = vld [vmem:[%s468 + $0x10] sm:$0xff]
        %v2099 = vld [vmem:[%s468 + $0x18] sm:$0xff]
        %v2100 = vld [vmem:[%s468 + $0x20] sm:$0xff]
        %v2101 = vld [vmem:[%s468 + $0x28] sm:$0xff]
        %v2102 = vld [vmem:[%s468 + $0x30] sm:$0xf]
        %v2103 = vld [vmem:[%s468 + $0x34] sm:$0xff]
        %v2104 = vld [vmem:[%s468 + $0x3c] sm:$0xff]
        %v2105 = vld [vmem:[%s468 + $0x44] sm:$0xff]
        %v2106 = vld [vmem:[%s468 + $0x4c] sm:$0xff]
        %v2107 = vld [vmem:[%s468 + $0x54] sm:$0xff]
        %v2108 = vld [vmem:[%s468 + $0x5c] sm:$0xff]
        %v2109 = vld [vmem:[%s468 + $0x64] sm:$0xf]
        %v2110 = vld [vmem:[%s468 + $0x68] sm:$0xff]
        %v2111 = vld [vmem:[%s468 + $0x70] sm:$0xff]
        %v2112 = vld [vmem:[%s468 + $0x78] sm:$0xff]
        %v2113 = vld [vmem:[%s468 + $0x80] sm:$0xff]
        %v2114 = vld [vmem:[%s468 + $0x88] sm:$0xff]
        %v2115 = vld [vmem:[%s468 + $0x90] sm:$0xff]
        %v2116 = vld [vmem:[%s468 + $0x98] sm:$0xf]
        %v2117 = vld [vmem:[%s468 + $0x9c] sm:$0xff]
        %v2118 = vld [vmem:[%s468 + $0xa4] sm:$0xff]
        %v2119 = vld [vmem:[%s468 + $0xac] sm:$0xff]
        %v2120 = vld [vmem:[%s468 + $0xb4] sm:$0xff]
        %v2121 = vld [vmem:[%s468 + $0xbc] sm:$0xff]
        %v2122 = vld [vmem:[%s468 + $0xc4] sm:$0xff]
        %v2123 = vld [vmem:[%s468 + $0xcc] sm:$0xf]
        %v2124 = vld [vmem:[%s468 + $0xd0] sm:$0xff]
        %v2125 = vld [vmem:[%s468 + $0xd8] sm:$0xff]
        %v2126 = vld [vmem:[%s468 + $0xe0] sm:$0xff]
        %v2127 = vld [vmem:[%s468 + $0xe8] sm:$0xff]
        %v2128 = vld [vmem:[%s468 + $0xf0] sm:$0xff]
        %v2129 = vld [vmem:[%s468 + $0xf8] sm:$0xff]
        %v2130 = vld [vmem:[%s468 + $0x100] sm:$0xf]
        %v2131 = vld [vmem:[%s468 + $0x104] sm:$0xff]
        %v2132 = vld [vmem:[%s468 + $0x10c] sm:$0xff]
        %v2133 = vld [vmem:[%s468 + $0x114] sm:$0xff]
        %v2134 = vld [vmem:[%s468 + $0x11c] sm:$0xff]
        %v2135 = vld [vmem:[%s468 + $0x124] sm:$0xff]
        %v2136 = vld [vmem:[%s468 + $0x12c] sm:$0xff]
        %v2137 = vld [vmem:[%s468 + $0x134] sm:$0xf]
        %v2138 = vld [vmem:[%s468 + $0x138] sm:$0xff]
        %v2139 = vld [vmem:[%s468 + $0x140] sm:$0xff]
        %v2140 = vld [vmem:[%s468 + $0x148] sm:$0xff]
        %v2141 = vld [vmem:[%s468 + $0x150] sm:$0xff]
        %v2142 = vld [vmem:[%s468 + $0x158] sm:$0xff]
        %v2143 = vld [vmem:[%s468 + $0x160] sm:$0xff]
        %v2144 = vld [vmem:[%s468 + $0x168] sm:$0xf]
        %v2145 = vld [vmem:[%s468 + $0x16c] sm:$0xff]
        %v2146 = vld [vmem:[%s468 + $0x174] sm:$0xff]
        %v2147 = vld [vmem:[%s468 + $0x17c] sm:$0xff]
        %v2148 = vld [vmem:[%s468 + $0x184] sm:$0xff]
        %v2149 = vld [vmem:[%s468 + $0x18c] sm:$0xff]
        %v2150 = vld [vmem:[%s468 + $0x194] sm:$0xff]
        %v2151 = vld [vmem:[%s468 + $0x19c] sm:$0xf]
        %v2152 = vld [vmem:[#allocation9] sm:$0xf]
        %v2153 = vld [vmem:[#allocation9 + $0x4] sm:$0xf]
        %v2154 = vld [vmem:[#allocation9 + $0x8] sm:$0xf]
        %v2155 = vld [vmem:[#allocation9 + $0xc] sm:$0xf]
        %v2156 = vld [vmem:[#allocation9 + $0x10] sm:$0xf]
        %v2157 = vld [vmem:[#allocation9 + $0x14] sm:$0xf]
        %v2158 = vld [vmem:[#allocation9 + $0x18] sm:$0xf]
        %v2159 = vld [vmem:[#allocation9 + $0x1c] sm:$0xf]
        %v2160 = vld [vmem:[#allocation9 + $0x20] sm:$0xf]
        %v2161 = vld [vmem:[#allocation9 + $0x24] sm:$0xf]
        %v2162 = vld [vmem:[#allocation9 + $0x28] sm:$0xf]
        %v2163 = vld [vmem:[#allocation9 + $0x2c] sm:$0xf]
        %v2164 = vld [vmem:[#allocation9 + $0x30] sm:$0xf]
        %v2165 = vld [vmem:[#allocation9 + $0x34] sm:$0xf]
        %v2166 = vld [vmem:[#allocation9 + $0x38] sm:$0xf]
        %v2167 = vld [vmem:[#allocation9 + $0x3c] sm:$0xf]
        %v2168 = vld [vmem:[#allocation9 + $0x40] sm:$0xf]
        %v2169 = vld [vmem:[#allocation9 + $0x44] sm:$0xf]
        %v2170 = vld [vmem:[#allocation9 + $0x48] sm:$0xf]
        %v2171 = vld [vmem:[#allocation9 + $0x4c] sm:$0xf]
        %v2172 = vld [vmem:[#allocation9 + $0x50] sm:$0xf]
        %v2173 = vld [vmem:[#allocation9 + $0x54] sm:$0xf]
        %v2174 = vld [vmem:[#allocation9 + $0x58] sm:$0xf]
        %v2175 = vld [vmem:[#allocation9 + $0x5c] sm:$0xf]
        %v2176 = vld [vmem:[#allocation9 + $0x60] sm:$0xf]
        %v2177 = vld [vmem:[#allocation9 + $0x64] sm:$0xf]
        %v2178 = vld [vmem:[#allocation9 + $0x68] sm:$0xf]
        %v2179 = vld [vmem:[#allocation9 + $0x6c] sm:$0xf]
        %v2180 = vld [vmem:[#allocation9 + $0x70] sm:$0xf]
        %v2181 = vld [vmem:[#allocation9 + $0x74] sm:$0xf]
        %v2182 = vld [vmem:[#allocation9 + $0x78] sm:$0xf]
        %v2183 = vld [vmem:[#allocation9 + $0x7c] sm:$0xf]
        %v2184 = vld [vmem:[#allocation9 + $0x80] sm:$0xf]
        %v2185 = vld [vmem:[#allocation9 + $0x84] sm:$0xf]
        %v2186 = vld [vmem:[#allocation9 + $0x88] sm:$0xf]
        %v2187 = vld [vmem:[#allocation9 + $0x8c] sm:$0xf]
        %v2188 = vld [vmem:[#allocation9 + $0x90] sm:$0xf]
        %v2189 = vld [vmem:[#allocation9 + $0x94] sm:$0xf]
        %v2190 = vld [vmem:[#allocation9 + $0x98] sm:$0xf]
        %v2191 = vld [vmem:[#allocation9 + $0x9c] sm:$0xf]
        %v2192 = vld [vmem:[#allocation9 + $0xa0] sm:$0xf]
        %v2193 = vld [vmem:[#allocation9 + $0xa4] sm:$0xf]
        %v2194 = vld [vmem:[#allocation9 + $0xa8] sm:$0xf]
        %v2195 = vld [vmem:[#allocation9 + $0xac] sm:$0xf]
        %v2196 = vld [vmem:[#allocation9 + $0xb0] sm:$0xf]
        %v2197 = vld [vmem:[#allocation9 + $0xb4] sm:$0xf]
        %v2198 = vld [vmem:[#allocation9 + $0xb8] sm:$0xf]
        %v2199 = vld [vmem:[#allocation9 + $0xbc] sm:$0xf]
        %v2200 = vld [vmem:[#allocation9 + $0xc0] sm:$0xf]
        %v2201 = vld [vmem:[#allocation9 + $0xc4] sm:$0xf]
        %v2202 = vld [vmem:[#allocation9 + $0xc8] sm:$0xf]
        %v2203 = vld [vmem:[#allocation9 + $0xcc] sm:$0xf]
        %v2204 = vld [vmem:[#allocation9 + $0xd0] sm:$0xf]
        %v2205 = vld [vmem:[#allocation9 + $0xd4] sm:$0xf]
        %v2206 = vld [vmem:[#allocation9 + $0xd8] sm:$0xf]
        %v2207 = vld [vmem:[#allocation9 + $0xdc] sm:$0xf]
        %v2208 = vld [vmem:[#allocation9 + $0xe0] sm:$0xf]
        %v2209 = vld [vmem:[#allocation9 + $0xe4] sm:$0xf]
        %v2210 = vld [vmem:[#allocation9 + $0xe8] sm:$0xf]
        %v2211 = vld [vmem:[#allocation9 + $0xec] sm:$0xf]
        %v2212 = vld [vmem:[#allocation9 + $0xf0] sm:$0xf]
        %v2213 = vld [vmem:[#allocation9 + $0xf4] sm:$0xf]
        %v2214 = vld [vmem:[#allocation9 + $0xf8] sm:$0xf]
        %v2215 = vld [vmem:[#allocation9 + $0xfc] sm:$0xf]
        %v2216 = vld [vmem:[#allocation9 + $0x100] sm:$0xf]
        %v2217 = vld [vmem:[#allocation9 + $0x104] sm:$0xf]
        %v2218 = vld [vmem:[#allocation9 + $0x108] sm:$0xf]
        %v2219 = vld [vmem:[#allocation9 + $0x10c] sm:$0xf]
        %v2220 = vld [vmem:[#allocation9 + $0x110] sm:$0xf]
        %v2221 = vld [vmem:[#allocation9 + $0x114] sm:$0xf]
        %v2222 = vld [vmem:[#allocation9 + $0x118] sm:$0xf]
        %v2223 = vld [vmem:[#allocation9 + $0x11c] sm:$0xf]
        %v2224 = vld [vmem:[#allocation9 + $0x120] sm:$0xf]
        %v2225 = vld [vmem:[#allocation9 + $0x124] sm:$0xf]
        %v2226 = vld [vmem:[#allocation9 + $0x128] sm:$0xf]
        %v2227 = vld [vmem:[#allocation9 + $0x12c] sm:$0xf]
        %v2228 = vld [vmem:[#allocation9 + $0x130] sm:$0xf]
        %v2229 = vld [vmem:[#allocation9 + $0x134] sm:$0xf]
        %v2230 = vld [vmem:[#allocation9 + $0x138] sm:$0xf]
        %v2231 = vld [vmem:[#allocation9 + $0x13c] sm:$0xf]
        %v2232 = vld [vmem:[#allocation9 + $0x140] sm:$0xf]
        %v2233 = vld [vmem:[#allocation9 + $0x144] sm:$0xf]
        %v2234 = vld [vmem:[#allocation9 + $0x148] sm:$0xf]
        %v2235 = vld [vmem:[#allocation9 + $0x14c] sm:$0xf]
        %v2236 = vld [vmem:[#allocation9 + $0x150] sm:$0xf]
        %v2237 = vld [vmem:[#allocation9 + $0x154] sm:$0xf]
        %v2238 = vld [vmem:[#allocation9 + $0x158] sm:$0xf]
        %v2239 = vld [vmem:[#allocation9 + $0x15c] sm:$0xf]
        %v2240 = vld [vmem:[#allocation9 + $0x160] sm:$0xf]
        %v2241 = vld [vmem:[#allocation9 + $0x164] sm:$0xf]
        %v2242 = vld [vmem:[#allocation9 + $0x168] sm:$0xf]
        %v2243 = vld [vmem:[#allocation9 + $0x16c] sm:$0xf]
        %v2244 = vld [vmem:[#allocation9 + $0x170] sm:$0xf]
        %v2245 = vld [vmem:[#allocation9 + $0x174] sm:$0xf]
        %v2246 = vld [vmem:[#allocation9 + $0x178] sm:$0xf]
        %v2247 = vld [vmem:[#allocation9 + $0x17c] sm:$0xf]
        %v2248 = vld [vmem:[#allocation9 + $0x180] sm:$0xf]
        %v2249 = vld [vmem:[#allocation9 + $0x184] sm:$0xf]
        %v2250 = vld [vmem:[#allocation9 + $0x188] sm:$0xf]
        %v2251 = vld [vmem:[#allocation9 + $0x18c] sm:$0xf]
        %v2252 = vld [vmem:[#allocation9 + $0x190] sm:$0xf]
        %v2253 = vld [vmem:[#allocation9 + $0x194] sm:$0xf]
        %v2254 = vld [vmem:[#allocation9 + $0x198] sm:$0xf]
        %v2255 = vld [vmem:[#allocation9 + $0x19c] sm:$0xf]
        %v2256 = vld [vmem:[#allocation9 + $0x1a0] sm:$0xf]
        %v2257 = vld [vmem:[#allocation9 + $0x1a4] sm:$0xf]
        %v2258 = vld [vmem:[#allocation9 + $0x1a8] sm:$0xf]
        %v2259 = vld [vmem:[#allocation9 + $0x1ac] sm:$0xf]
        %v2260 = vld [vmem:[#allocation9 + $0x1b0] sm:$0xf]
        %v2261 = vld [vmem:[#allocation9 + $0x1b4] sm:$0xf]
        %v2262 = vld [vmem:[#allocation9 + $0x1b8] sm:$0xf]
        %v2263 = vld [vmem:[#allocation9 + $0x1bc] sm:$0xf]
        %v2264 = vld [vmem:[#allocation9 + $0x1c0] sm:$0xf]
        %v2265 = vld [vmem:[#allocation9 + $0x1c4] sm:$0xf]
        %v2266 = vld [vmem:[#allocation9 + $0x1c8] sm:$0xf]
        %v2267 = vld [vmem:[#allocation9 + $0x1cc] sm:$0xf]
        %v2268 = vld [vmem:[#allocation9 + $0x1d0] sm:$0xf]
        %v2269 = vld [vmem:[#allocation9 + $0x1d4] sm:$0xf]
        %v2270 = vld [vmem:[#allocation9 + $0x1d8] sm:$0xf]
        %v2271 = vld [vmem:[#allocation9 + $0x1dc] sm:$0xf]
        %v2272 = vld [vmem:[#allocation9 + $0x1e0] sm:$0xf]
        %v2273 = vld [vmem:[#allocation9 + $0x1e4] sm:$0xf]
        %v2274 = vld [vmem:[#allocation9 + $0x1e8] sm:$0xf]
        %v2275 = vld [vmem:[#allocation9 + $0x1ec] sm:$0xf]
        %v2276 = vld [vmem:[#allocation9 + $0x1f0] sm:$0xf]
        %v2277 = vld [vmem:[#allocation9 + $0x1f4] sm:$0xf]
        %v2278 = vld [vmem:[#allocation9 + $0x1f8] sm:$0xf]
        %v2279 = vld [vmem:[#allocation9 + $0x1fc] sm:$0xf]
        %v2280 = vld [vmem:[#allocation9 + $0x200] sm:$0xf]
        %v2281 = vld [vmem:[#allocation9 + $0x204] sm:$0xf]
        %v2282 = vld [vmem:[#allocation9 + $0x208] sm:$0xf]
        %v2283 = vld [vmem:[#allocation9 + $0x20c] sm:$0xf]
        %v2284 = vld [vmem:[#allocation9 + $0x210] sm:$0xf]
        %v2285 = vld [vmem:[#allocation9 + $0x214] sm:$0xf]
        %v2286 = vld [vmem:[#allocation9 + $0x218] sm:$0xf]
        %v2287 = vld [vmem:[#allocation9 + $0x21c] sm:$0xf]
        %v2288 = vld [vmem:[#allocation9 + $0x220] sm:$0xf]
        %v2289 = vld [vmem:[#allocation9 + $0x224] sm:$0xf]
        %v2290 = vld [vmem:[#allocation9 + $0x228] sm:$0xf]
        %v2291 = vld [vmem:[#allocation9 + $0x22c] sm:$0xf]
        %v2292 = vld [vmem:[#allocation9 + $0x230] sm:$0xf]
        %v2293 = vld [vmem:[#allocation9 + $0x234] sm:$0xf]
        %v2294 = vld [vmem:[#allocation9 + $0x238] sm:$0xf]
        %v2295 = vld [vmem:[#allocation9 + $0x23c] sm:$0xf]
        %v2296 = vld [vmem:[#allocation9 + $0x240] sm:$0xf]
        %v2297 = vld [vmem:[#allocation9 + $0x244] sm:$0xf]
        %v2298 = vld [vmem:[#allocation9 + $0x248] sm:$0xf]
        %v2299 = vld [vmem:[#allocation9 + $0x24c] sm:$0xf]
        %v2300 = vld [vmem:[#allocation9 + $0x250] sm:$0xf]
        %v2301 = vld [vmem:[#allocation9 + $0x254] sm:$0xf]
        %v2302 = vld [vmem:[#allocation9 + $0x258] sm:$0xf]
        %v2303 = vld [vmem:[#allocation9 + $0x25c] sm:$0xf]
        %v2304 = vld [vmem:[#allocation9 + $0x260] sm:$0xf]
        %v2305 = vld [vmem:[#allocation9 + $0x264] sm:$0xf]
        %v2306 = vld [vmem:[#allocation9 + $0x268] sm:$0xf]
        %v2307 = vld [vmem:[#allocation9 + $0x26c] sm:$0xf]
        %v2308 = vld [vmem:[#allocation9 + $0x270] sm:$0xf]
        %v2309 = vld [vmem:[#allocation9 + $0x274] sm:$0xf]
        %v2310 = vld [vmem:[#allocation9 + $0x278] sm:$0xf]
        %v2311 = vld [vmem:[#allocation9 + $0x27c] sm:$0xf]
        %v2312 = vld [vmem:[#allocation9 + $0x280] sm:$0xf]
        %v2313 = vld [vmem:[#allocation9 + $0x284] sm:$0xf]
        %v2314 = vld [vmem:[#allocation9 + $0x288] sm:$0xf]
        %v2315 = vld [vmem:[#allocation9 + $0x28c] sm:$0xf]
        %v2316 = vld [vmem:[#allocation9 + $0x290] sm:$0xf]
        %v2317 = vld [vmem:[#allocation9 + $0x294] sm:$0xf]
        %v2318 = vld [vmem:[#allocation9 + $0x298] sm:$0xf]
        %v2319 = vld [vmem:[#allocation9 + $0x29c] sm:$0xf]
        %v2320 = vld [vmem:[#allocation9 + $0x2a0] sm:$0xf]
        %v2321 = vld [vmem:[#allocation9 + $0x2a4] sm:$0xf]
        %v2322 = vld [vmem:[#allocation9 + $0x2a8] sm:$0xf]
        %v2323 = vld [vmem:[#allocation9 + $0x2ac] sm:$0xf]
        %v2324 = vld [vmem:[#allocation9 + $0x2b0] sm:$0xf]
        %v2325 = vld [vmem:[#allocation9 + $0x2b4] sm:$0xf]
        %v2326 = vld [vmem:[#allocation9 + $0x2b8] sm:$0xf]
        %v2327 = vld [vmem:[#allocation9 + $0x2bc] sm:$0xf]
        %v2328 = vld [vmem:[#allocation9 + $0x2c0] sm:$0xf]
        %v2329 = vld [vmem:[#allocation9 + $0x2c4] sm:$0xf]
        %v2330 = vld [vmem:[#allocation9 + $0x2c8] sm:$0xf]
        %v2331 = vld [vmem:[#allocation9 + $0x2cc] sm:$0xf]
        %v2332 = vld [vmem:[#allocation9 + $0x2d0] sm:$0xf]
        %v2333 = vld [vmem:[#allocation9 + $0x2d4] sm:$0xf]
        %v2334 = vld [vmem:[#allocation9 + $0x2d8] sm:$0xf]
        %v2335 = vld [vmem:[#allocation9 + $0x2dc] sm:$0xf]
        %v2336 = vld [vmem:[#allocation9 + $0x2e0] sm:$0xf]
        %v2337 = vld [vmem:[#allocation9 + $0x2e4] sm:$0xf]
        %v2338 = vld [vmem:[#allocation9 + $0x2e8] sm:$0xf]
        %v2339 = vld [vmem:[#allocation9 + $0x2ec] sm:$0xf]
        %v2340 = vld [vmem:[#allocation9 + $0x2f0] sm:$0xf]
        %v2341 = vld [vmem:[#allocation9 + $0x2f4] sm:$0xf]
        %v2342 = vld [vmem:[#allocation9 + $0x2f8] sm:$0xf]
        %v2343 = vld [vmem:[#allocation9 + $0x2fc] sm:$0xf]
        %v2344 = vld [vmem:[#allocation9 + $0x300] sm:$0xf]
        %v2345 = vld [vmem:[#allocation9 + $0x304] sm:$0x3]
        %v2402 = vunpack.c.l.b16 %v2096
        %v2403 = vunpack.c.h.b16 %v2096
        %v2404 = vunpack.c.l.b16 %v2097
        %v2405 = vunpack.c.h.b16 %v2097
        %v2406 = vunpack.c.l.b16 %v2098
        %v2407 = vunpack.c.h.b16 %v2098
        %v2408 = vunpack.c.l.b16 %v2099
        %v2409 = vunpack.c.h.b16 %v2099
        %v2410 = vunpack.c.l.b16 %v2100
        %v2411 = vunpack.c.h.b16 %v2100
        %v2412 = vunpack.c.l.b16 %v2101
        %v2413 = vunpack.c.h.b16 %v2101
        %v2414 = vunpack.c.l.b16 %v2102
        %v2415 = vunpack.c.l.b16 %v2103
        %v2416 = vunpack.c.h.b16 %v2103
        %v2417 = vunpack.c.l.b16 %v2104
        %v2418 = vunpack.c.h.b16 %v2104
        %v2419 = vunpack.c.l.b16 %v2105
        %v2420 = vunpack.c.h.b16 %v2105
        %v2421 = vunpack.c.l.b16 %v2106
        %v2422 = vunpack.c.h.b16 %v2106
        %v2423 = vunpack.c.l.b16 %v2107
        %v2424 = vunpack.c.h.b16 %v2107
        %v2425 = vunpack.c.l.b16 %v2108
        %v2426 = vunpack.c.h.b16 %v2108
        %v2427 = vunpack.c.l.b16 %v2109
        %v2428 = vunpack.c.l.b16 %v2110
        %v2429 = vunpack.c.h.b16 %v2110
        %v2430 = vunpack.c.l.b16 %v2111
        %v2431 = vunpack.c.h.b16 %v2111
        %v2432 = vunpack.c.l.b16 %v2112
        %v2433 = vunpack.c.h.b16 %v2112
        %v2434 = vunpack.c.l.b16 %v2113
        %v2435 = vunpack.c.h.b16 %v2113
        %v2436 = vunpack.c.l.b16 %v2114
        %v2437 = vunpack.c.h.b16 %v2114
        %v2438 = vunpack.c.l.b16 %v2115
        %v2439 = vunpack.c.h.b16 %v2115
        %v2440 = vunpack.c.l.b16 %v2116
        %v2441 = vunpack.c.l.b16 %v2117
        %v2442 = vunpack.c.h.b16 %v2117
        %v2443 = vunpack.c.l.b16 %v2118
        %v2444 = vunpack.c.h.b16 %v2118
        %v2445 = vunpack.c.l.b16 %v2119
        %v2446 = vunpack.c.h.b16 %v2119
        %v2447 = vunpack.c.l.b16 %v2120
        %v2448 = vunpack.c.h.b16 %v2120
        %v2449 = vunpack.c.l.b16 %v2121
        %v2450 = vunpack.c.h.b16 %v2121
        %v2451 = vunpack.c.l.b16 %v2122
        %v2452 = vunpack.c.h.b16 %v2122
        %v2453 = vunpack.c.l.b16 %v2123
        %v2454 = vunpack.c.l.b16 %v2124
        %v2455 = vunpack.c.h.b16 %v2124
        %v2456 = vunpack.c.l.b16 %v2125
        %v2457 = vunpack.c.h.b16 %v2125
        %v2458 = vunpack.c.l.b16 %v2126
        %v2459 = vunpack.c.h.b16 %v2126
        %v2460 = vunpack.c.l.b16 %v2127
        %v2461 = vunpack.c.h.b16 %v2127
        %v2462 = vunpack.c.l.b16 %v2128
        %v2463 = vunpack.c.h.b16 %v2128
        %v2464 = vunpack.c.l.b16 %v2129
        %v2465 = vunpack.c.h.b16 %v2129
        %v2466 = vunpack.c.l.b16 %v2130
        %v2467 = vunpack.c.l.b16 %v2131
        %v2468 = vunpack.c.h.b16 %v2131
        %v2469 = vunpack.c.l.b16 %v2132
        %v2470 = vunpack.c.h.b16 %v2132
        %v2471 = vunpack.c.l.b16 %v2133
        %v2472 = vunpack.c.h.b16 %v2133
        %v2473 = vunpack.c.l.b16 %v2134
        %v2474 = vunpack.c.h.b16 %v2134
        %v2475 = vunpack.c.l.b16 %v2135
        %v2476 = vunpack.c.h.b16 %v2135
        %v2477 = vunpack.c.l.b16 %v2136
        %v2478 = vunpack.c.h.b16 %v2136
        %v2479 = vunpack.c.l.b16 %v2137
        %v2480 = vunpack.c.l.b16 %v2138
        %v2481 = vunpack.c.h.b16 %v2138
        %v2482 = vunpack.c.l.b16 %v2139
        %v2483 = vunpack.c.h.b16 %v2139
        %v2484 = vunpack.c.l.b16 %v2140
        %v2485 = vunpack.c.h.b16 %v2140
        %v2486 = vunpack.c.l.b16 %v2141
        %v2487 = vunpack.c.h.b16 %v2141
        %v2488 = vunpack.c.l.b16 %v2142
        %v2489 = vunpack.c.h.b16 %v2142
        %v2490 = vunpack.c.l.b16 %v2143
        %v2491 = vunpack.c.h.b16 %v2143
        %v2492 = vunpack.c.l.b16 %v2144
        %v2493 = vunpack.c.l.b16 %v2145
        %v2494 = vunpack.c.h.b16 %v2145
        %v2495 = vunpack.c.l.b16 %v2146
        %v2496 = vunpack.c.h.b16 %v2146
        %v2497 = vunpack.c.l.b16 %v2147
        %v2498 = vunpack.c.h.b16 %v2147
        %v2499 = vunpack.c.l.b16 %v2148
        %v2500 = vunpack.c.h.b16 %v2148
        %v2501 = vunpack.c.l.b16 %v2149
        %v2502 = vunpack.c.h.b16 %v2149
        %v2503 = vunpack.c.l.b16 %v2150
        %v2504 = vunpack.c.h.b16 %v2150
        %v2505 = vunpack.c.l.b16 %v2151
        %v2506 = vpack.c.b16 %v2415, %v2402
        %v2507 = vpack.c.b16 %v2416, %v2403
        %v2508 = vpack.c.b16 %v2417, %v2404
        %v2509 = vpack.c.b16 %v2418, %v2405
        %v2510 = vpack.c.b16 %v2419, %v2406
        %v2511 = vpack.c.b16 %v2420, %v2407
        %v2512 = vpack.c.b16 %v2421, %v2408
        %v2513 = vpack.c.b16 %v2422, %v2409
        %v2514 = vpack.c.b16 %v2423, %v2410
        %v2515 = vpack.c.b16 %v2424, %v2411
        %v2516 = vpack.c.b16 %v2425, %v2412
        %v2517 = vpack.c.b16 %v2426, %v2413
        %v2518 = vpack.c.b16 %v2427, %v2414
        %v2519 = vpack.c.b16 %v2441, %v2428
        %v2520 = vpack.c.b16 %v2442, %v2429
        %v2521 = vpack.c.b16 %v2443, %v2430
        %v2522 = vpack.c.b16 %v2444, %v2431
        %v2523 = vpack.c.b16 %v2445, %v2432
        %v2524 = vpack.c.b16 %v2446, %v2433
        %v2525 = vpack.c.b16 %v2447, %v2434
        %v2526 = vpack.c.b16 %v2448, %v2435
        %v2527 = vpack.c.b16 %v2449, %v2436
        %v2528 = vpack.c.b16 %v2450, %v2437
        %v2529 = vpack.c.b16 %v2451, %v2438
        %v2530 = vpack.c.b16 %v2452, %v2439
        %v2531 = vpack.c.b16 %v2453, %v2440
        %v2532 = vpack.c.b16 %v2467, %v2454
        %v2533 = vpack.c.b16 %v2468, %v2455
        %v2534 = vpack.c.b16 %v2469, %v2456
        %v2535 = vpack.c.b16 %v2470, %v2457
        %v2536 = vpack.c.b16 %v2471, %v2458
        %v2537 = vpack.c.b16 %v2472, %v2459
        %v2538 = vpack.c.b16 %v2473, %v2460
        %v2539 = vpack.c.b16 %v2474, %v2461
        %v2540 = vpack.c.b16 %v2475, %v2462
        %v2541 = vpack.c.b16 %v2476, %v2463
        %v2542 = vpack.c.b16 %v2477, %v2464
        %v2543 = vpack.c.b16 %v2478, %v2465
        %v2544 = vpack.c.b16 %v2479, %v2466
        %v2545 = vpack.c.b16 %v2493, %v2480
        %v2546 = vpack.c.b16 %v2494, %v2481
        %v2547 = vpack.c.b16 %v2495, %v2482
        %v2548 = vpack.c.b16 %v2496, %v2483
        %v2549 = vpack.c.b16 %v2497, %v2484
        %v2550 = vpack.c.b16 %v2498, %v2485
        %v2551 = vpack.c.b16 %v2499, %v2486
        %v2552 = vpack.c.b16 %v2500, %v2487
        %v2553 = vpack.c.b16 %v2501, %v2488
        %v2554 = vpack.c.b16 %v2502, %v2489
        %v2555 = vpack.c.b16 %v2503, %v2490
        %v2556 = vpack.c.b16 %v2504, %v2491
        %v2557 = vpack.c.b16 %v2505, %v2492
        %v2800 = vunpack.c.l.b16 %v2152
        %v2801 = vunpack.c.l.b16 %v2153
        %v2802 = vunpack.c.l.b16 %v2154
        %v2803 = vunpack.c.l.b16 %v2155
        %v2804 = vunpack.c.l.b16 %v2156
        %v2805 = vunpack.c.l.b16 %v2157
        %v2806 = vunpack.c.l.b16 %v2158
        %v2807 = vunpack.c.l.b16 %v2159
        %v2808 = vunpack.c.l.b16 %v2160
        %v2809 = vunpack.c.l.b16 %v2161
        %v2810 = vunpack.c.l.b16 %v2162
        %v2811 = vunpack.c.l.b16 %v2163
        %v2812 = vunpack.c.l.b16 %v2164
        %v2813 = vunpack.c.l.b16 %v2165
        %v2814 = vunpack.c.l.b16 %v2166
        %v2815 = vunpack.c.l.b16 %v2167
        %v2816 = vunpack.c.l.b16 %v2168
        %v2817 = vunpack.c.l.b16 %v2169
        %v2818 = vunpack.c.l.b16 %v2170
        %v2819 = vunpack.c.l.b16 %v2171
        %v2820 = vunpack.c.l.b16 %v2172
        %v2821 = vunpack.c.l.b16 %v2173
        %v2822 = vunpack.c.l.b16 %v2174
        %v2823 = vunpack.c.l.b16 %v2175
        %v2824 = vunpack.c.l.b16 %v2176
        %v2825 = vunpack.c.l.b16 %v2177
        %v2826 = vunpack.c.l.b16 %v2178
        %v2827 = vunpack.c.l.b16 %v2179
        %v2828 = vunpack.c.l.b16 %v2180
        %v2829 = vunpack.c.l.b16 %v2181
        %v2830 = vunpack.c.l.b16 %v2182
        %v2831 = vunpack.c.l.b16 %v2183
        %v2832 = vunpack.c.l.b16 %v2184
        %v2833 = vunpack.c.l.b16 %v2185
        %v2834 = vunpack.c.l.b16 %v2186
        %v2835 = vunpack.c.l.b16 %v2187
        %v2836 = vunpack.c.l.b16 %v2188
        %v2837 = vunpack.c.l.b16 %v2189
        %v2838 = vunpack.c.l.b16 %v2190
        %v2839 = vunpack.c.l.b16 %v2191
        %v2840 = vunpack.c.l.b16 %v2192
        %v2841 = vunpack.c.l.b16 %v2193
        %v2842 = vunpack.c.l.b16 %v2194
        %v2843 = vunpack.c.l.b16 %v2195
        %v2844 = vunpack.c.l.b16 %v2196
        %v2845 = vunpack.c.l.b16 %v2197
        %v2846 = vunpack.c.l.b16 %v2198
        %v2847 = vunpack.c.l.b16 %v2199
        %v2848 = vunpack.c.l.b16 %v2200
        %v2849 = vunpack.c.l.b16 %v2201
        %v2850 = vunpack.c.l.b16 %v2202
        %v2851 = vunpack.c.l.b16 %v2203
        %v2852 = vunpack.c.l.b16 %v2204
        %v2853 = vunpack.c.l.b16 %v2205
        %v2854 = vunpack.c.l.b16 %v2206
        %v2855 = vunpack.c.l.b16 %v2207
        %v2856 = vunpack.c.l.b16 %v2208
        %v2857 = vunpack.c.l.b16 %v2209
        %v2858 = vunpack.c.l.b16 %v2210
        %v2859 = vunpack.c.l.b16 %v2211
        %v2860 = vunpack.c.l.b16 %v2212
        %v2861 = vunpack.c.l.b16 %v2213
        %v2862 = vunpack.c.l.b16 %v2214
        %v2863 = vunpack.c.l.b16 %v2215
        %v2864 = vunpack.c.l.b16 %v2216
        %v2865 = vunpack.c.l.b16 %v2217
        %v2866 = vunpack.c.l.b16 %v2218
        %v2867 = vunpack.c.l.b16 %v2219
        %v2868 = vunpack.c.l.b16 %v2220
        %v2869 = vunpack.c.l.b16 %v2221
        %v2870 = vunpack.c.l.b16 %v2222
        %v2871 = vunpack.c.l.b16 %v2223
        %v2872 = vunpack.c.l.b16 %v2224
        %v2873 = vunpack.c.l.b16 %v2225
        %v2874 = vunpack.c.l.b16 %v2226
        %v2875 = vunpack.c.l.b16 %v2227
        %v2876 = vunpack.c.l.b16 %v2228
        %v2877 = vunpack.c.l.b16 %v2229
        %v2878 = vunpack.c.l.b16 %v2230
        %v2879 = vunpack.c.l.b16 %v2231
        %v2880 = vunpack.c.l.b16 %v2232
        %v2881 = vunpack.c.l.b16 %v2233
        %v2882 = vunpack.c.l.b16 %v2234
        %v2883 = vunpack.c.l.b16 %v2235
        %v2884 = vunpack.c.l.b16 %v2236
        %v2885 = vunpack.c.l.b16 %v2237
        %v2886 = vunpack.c.l.b16 %v2238
        %v2887 = vunpack.c.l.b16 %v2239
        %v2888 = vunpack.c.l.b16 %v2240
        %v2889 = vunpack.c.l.b16 %v2241
        %v2890 = vunpack.c.l.b16 %v2242
        %v2891 = vunpack.c.l.b16 %v2243
        %v2892 = vunpack.c.l.b16 %v2244
        %v2893 = vunpack.c.l.b16 %v2245
        %v2894 = vunpack.c.l.b16 %v2246
        %v2895 = vunpack.c.l.b16 %v2247
        %v2896 = vunpack.c.l.b16 %v2248
        %v2897 = vunpack.c.l.b16 %v2249
        %v2898 = vunpack.c.l.b16 %v2250
        %v2899 = vunpack.c.l.b16 %v2251
        %v2900 = vunpack.c.l.b16 %v2252
        %v2901 = vunpack.c.l.b16 %v2253
        %v2902 = vunpack.c.l.b16 %v2254
        %v2903 = vunpack.c.l.b16 %v2255
        %v2904 = vunpack.c.l.b16 %v2256
        %v2905 = vunpack.c.l.b16 %v2257
        %v2906 = vunpack.c.l.b16 %v2258
        %v2907 = vunpack.c.l.b16 %v2259
        %v2908 = vunpack.c.l.b16 %v2260
        %v2909 = vunpack.c.l.b16 %v2261
        %v2910 = vunpack.c.l.b16 %v2262
        %v2911 = vunpack.c.l.b16 %v2263
        %v2912 = vunpack.c.l.b16 %v2264
        %v2913 = vunpack.c.l.b16 %v2265
        %v2914 = vunpack.c.l.b16 %v2266
        %v2915 = vunpack.c.l.b16 %v2267
        %v2916 = vunpack.c.l.b16 %v2268
        %v2917 = vunpack.c.l.b16 %v2269
        %v2918 = vunpack.c.l.b16 %v2270
        %v2919 = vunpack.c.l.b16 %v2271
        %v2920 = vunpack.c.l.b16 %v2272
        %v2921 = vunpack.c.l.b16 %v2273
        %v2922 = vunpack.c.l.b16 %v2274
        %v2923 = vunpack.c.l.b16 %v2275
        %v2924 = vunpack.c.l.b16 %v2276
        %v2925 = vunpack.c.l.b16 %v2277
        %v2926 = vunpack.c.l.b16 %v2278
        %v2927 = vunpack.c.l.b16 %v2279
        %v2928 = vunpack.c.l.b16 %v2280
        %v2929 = vunpack.c.l.b16 %v2281
        %v2930 = vunpack.c.l.b16 %v2282
        %v2931 = vunpack.c.l.b16 %v2283
        %v2932 = vunpack.c.l.b16 %v2284
        %v2933 = vunpack.c.l.b16 %v2285
        %v2934 = vunpack.c.l.b16 %v2286
        %v2935 = vunpack.c.l.b16 %v2287
        %v2936 = vunpack.c.l.b16 %v2288
        %v2937 = vunpack.c.l.b16 %v2289
        %v2938 = vunpack.c.l.b16 %v2290
        %v2939 = vunpack.c.l.b16 %v2291
        %v2940 = vunpack.c.l.b16 %v2292
        %v2941 = vunpack.c.l.b16 %v2293
        %v2942 = vunpack.c.l.b16 %v2294
        %v2943 = vunpack.c.l.b16 %v2295
        %v2944 = vunpack.c.l.b16 %v2296
        %v2945 = vunpack.c.l.b16 %v2297
        %v2946 = vunpack.c.l.b16 %v2298
        %v2947 = vunpack.c.l.b16 %v2299
        %v2948 = vunpack.c.l.b16 %v2300
        %v2949 = vunpack.c.l.b16 %v2301
        %v2950 = vunpack.c.l.b16 %v2302
        %v2951 = vunpack.c.l.b16 %v2303
        %v2952 = vunpack.c.l.b16 %v2304
        %v2953 = vunpack.c.l.b16 %v2305
        %v2954 = vunpack.c.l.b16 %v2306
        %v2955 = vunpack.c.l.b16 %v2307
        %v2956 = vunpack.c.l.b16 %v2308
        %v2957 = vunpack.c.l.b16 %v2309
        %v2958 = vunpack.c.l.b16 %v2310
        %v2959 = vunpack.c.l.b16 %v2311
        %v2960 = vunpack.c.l.b16 %v2312
        %v2961 = vunpack.c.l.b16 %v2313
        %v2962 = vunpack.c.l.b16 %v2314
        %v2963 = vunpack.c.l.b16 %v2315
        %v2964 = vunpack.c.l.b16 %v2316
        %v2965 = vunpack.c.l.b16 %v2317
        %v2966 = vunpack.c.l.b16 %v2318
        %v2967 = vunpack.c.l.b16 %v2319
        %v2968 = vunpack.c.l.b16 %v2320
        %v2969 = vunpack.c.l.b16 %v2321
        %v2970 = vunpack.c.l.b16 %v2322
        %v2971 = vunpack.c.l.b16 %v2323
        %v2972 = vunpack.c.l.b16 %v2324
        %v2973 = vunpack.c.l.b16 %v2325
        %v2974 = vunpack.c.l.b16 %v2326
        %v2975 = vunpack.c.l.b16 %v2327
        %v2976 = vunpack.c.l.b16 %v2328
        %v2977 = vunpack.c.l.b16 %v2329
        %v2978 = vunpack.c.l.b16 %v2330
        %v2979 = vunpack.c.l.b16 %v2331
        %v2980 = vunpack.c.l.b16 %v2332
        %v2981 = vunpack.c.l.b16 %v2333
        %v2982 = vunpack.c.l.b16 %v2334
        %v2983 = vunpack.c.l.b16 %v2335
        %v2984 = vunpack.c.l.b16 %v2336
        %v2985 = vunpack.c.l.b16 %v2337
        %v2986 = vunpack.c.l.b16 %v2338
        %v2987 = vunpack.c.l.b16 %v2339
        %v2988 = vunpack.c.l.b16 %v2340
        %v2989 = vunpack.c.l.b16 %v2341
        %v2990 = vunpack.c.l.b16 %v2342
        %v2991 = vunpack.c.l.b16 %v2343
        %v2992 = vunpack.c.l.b16 %v2344
        %v2993 = vunpack.c.l.b16 %v2345
        %v2994 = vpack.c.b16 %v2801, %v2800
        %v2995 = vpack.c.b16 %v2803, %v2802
        %v2996 = vpack.c.b16 %v2805, %v2804
        %v2997 = vpack.c.b16 %v2807, %v2806
        %v2998 = vpack.c.b16 %v2809, %v2808
        %v2999 = vpack.c.b16 %v2811, %v2810
        %v3000 = vpack.c.b16 %v2813, %v2812
        %v3001 = vpack.c.b16 %v2815, %v2814
        %v3002 = vpack.c.b16 %v2817, %v2816
        %v3003 = vpack.c.b16 %v2819, %v2818
        %v3004 = vpack.c.b16 %v2821, %v2820
        %v3005 = vpack.c.b16 %v2823, %v2822
        %v3006 = vpack.c.b16 %v2825, %v2824
        %v3007 = vpack.c.b16 %v2827, %v2826
        %v3008 = vpack.c.b16 %v2829, %v2828
        %v3009 = vpack.c.b16 %v2831, %v2830
        %v3010 = vpack.c.b16 %v2833, %v2832
        %v3011 = vpack.c.b16 %v2835, %v2834
        %v3012 = vpack.c.b16 %v2837, %v2836
        %v3013 = vpack.c.b16 %v2839, %v2838
        %v3014 = vpack.c.b16 %v2841, %v2840
        %v3015 = vpack.c.b16 %v2843, %v2842
        %v3016 = vpack.c.b16 %v2845, %v2844
        %v3017 = vpack.c.b16 %v2847, %v2846
        %v3018 = vpack.c.b16 %v2849, %v2848
        %v3019 = vpack.c.b16 %v2851, %v2850
        %v3020 = vpack.c.b16 %v2853, %v2852
        %v3021 = vpack.c.b16 %v2855, %v2854
        %v3022 = vpack.c.b16 %v2857, %v2856
        %v3023 = vpack.c.b16 %v2859, %v2858
        %v3024 = vpack.c.b16 %v2861, %v2860
        %v3025 = vpack.c.b16 %v2863, %v2862
        %v3026 = vpack.c.b16 %v2865, %v2864
        %v3027 = vpack.c.b16 %v2867, %v2866
        %v3028 = vpack.c.b16 %v2869, %v2868
        %v3029 = vpack.c.b16 %v2871, %v2870
        %v3030 = vpack.c.b16 %v2873, %v2872
        %v3031 = vpack.c.b16 %v2875, %v2874
        %v3032 = vpack.c.b16 %v2877, %v2876
        %v3033 = vpack.c.b16 %v2879, %v2878
        %v3034 = vpack.c.b16 %v2881, %v2880
        %v3035 = vpack.c.b16 %v2883, %v2882
        %v3036 = vpack.c.b16 %v2885, %v2884
        %v3037 = vpack.c.b16 %v2887, %v2886
        %v3038 = vpack.c.b16 %v2889, %v2888
        %v3039 = vpack.c.b16 %v2891, %v2890
        %v3040 = vpack.c.b16 %v2893, %v2892
        %v3041 = vpack.c.b16 %v2895, %v2894
        %v3042 = vpack.c.b16 %v2897, %v2896
        %v3043 = vpack.c.b16 %v2899, %v2898
        %v3044 = vpack.c.b16 %v2901, %v2900
        %v3045 = vpack.c.b16 %v2903, %v2902
        %v3046 = vpack.c.b16 %v2905, %v2904
        %v3047 = vpack.c.b16 %v2907, %v2906
        %v3048 = vpack.c.b16 %v2909, %v2908
        %v3049 = vpack.c.b16 %v2911, %v2910
        %v3050 = vpack.c.b16 %v2913, %v2912
        %v3051 = vpack.c.b16 %v2915, %v2914
        %v3052 = vpack.c.b16 %v2917, %v2916
        %v3053 = vpack.c.b16 %v2919, %v2918
        %v3054 = vpack.c.b16 %v2921, %v2920
        %v3055 = vpack.c.b16 %v2923, %v2922
        %v3056 = vpack.c.b16 %v2925, %v2924
        %v3057 = vpack.c.b16 %v2927, %v2926
        %v3058 = vpack.c.b16 %v2929, %v2928
        %v3059 = vpack.c.b16 %v2931, %v2930
        %v3060 = vpack.c.b16 %v2933, %v2932
        %v3061 = vpack.c.b16 %v2935, %v2934
        %v3062 = vpack.c.b16 %v2937, %v2936
        %v3063 = vpack.c.b16 %v2939, %v2938
        %v3064 = vpack.c.b16 %v2941, %v2940
        %v3065 = vpack.c.b16 %v2943, %v2942
        %v3066 = vpack.c.b16 %v2945, %v2944
        %v3067 = vpack.c.b16 %v2947, %v2946
        %v3068 = vpack.c.b16 %v2949, %v2948
        %v3069 = vpack.c.b16 %v2951, %v2950
        %v3070 = vpack.c.b16 %v2953, %v2952
        %v3071 = vpack.c.b16 %v2955, %v2954
        %v3072 = vpack.c.b16 %v2957, %v2956
        %v3073 = vpack.c.b16 %v2959, %v2958
        %v3074 = vpack.c.b16 %v2961, %v2960
        %v3075 = vpack.c.b16 %v2963, %v2962
        %v3076 = vpack.c.b16 %v2965, %v2964
        %v3077 = vpack.c.b16 %v2967, %v2966
        %v3078 = vpack.c.b16 %v2969, %v2968
        %v3079 = vpack.c.b16 %v2971, %v2970
        %v3080 = vpack.c.b16 %v2973, %v2972
        %v3081 = vpack.c.b16 %v2975, %v2974
        %v3082 = vpack.c.b16 %v2977, %v2976
        %v3083 = vpack.c.b16 %v2979, %v2978
        %v3084 = vpack.c.b16 %v2981, %v2980
        %v3085 = vpack.c.b16 %v2983, %v2982
        %v3086 = vpack.c.b16 %v2985, %v2984
        %v3087 = vpack.c.b16 %v2987, %v2986
        %v3088 = vpack.c.b16 %v2989, %v2988
        %v3089 = vpack.c.b16 %v2991, %v2990
        %v3090 = vpack.c.b16 %v2993, %v2992
        %v3188 = vsel %vm1600, %v2518, 0
        %v3191 = vsel %vm1600, %v2531, 0
        %v3194 = vsel %vm1600, %v2544, 0
        %v3197 = vsel %vm1600, %v2557, 0
        %v3200 = vsel %vm1613, %v3090, 0
        %3202 = vmatprep.subr.bf16.mxu0 0
        %3203 = vmatpush1.bf16.msra.mxu0 %v3001
        %3204 = vmatprep.subr.bf16.mxu0 0
        %3205 = vmatpush1.bf16.msra.mxu0 %v3000
        %3206 = vmatprep.subr.bf16.mxu0 0
        %3207 = vmatpush1.bf16.msra.mxu0 %v2999
        %3208 = vmatprep.subr.bf16.mxu0 0
        %3209 = vmatpush1.bf16.msra.mxu0 %v2998
        %3210 = vmatprep.subr.bf16.mxu0 0
        %3211 = vmatpush1.bf16.msra.mxu0 %v2997
        %3212 = vmatprep.subr.bf16.mxu0 0
        %3213 = vmatpush1.bf16.msra.mxu0 %v2996
        %3214 = vmatprep.subr.bf16.mxu0 0
        %3215 = vmatpush1.bf16.msra.mxu0 %v2995
        %3216 = vmatprep.subr.bf16.mxu0 0
        %3217 = vmatpush1.bf16.msra.mxu0 %v2994
        %3218 = vmatprep.subr.bf16.mxu0 0
        %3219 = vmatpush2.bf16.msra.mxu0 %v3009
        %3220 = vmatprep.subr.bf16.mxu0 0
        %3221 = vmatpush2.bf16.msra.mxu0 %v3008
        %3222 = vmatprep.subr.bf16.mxu0 0
        %3223 = vmatpush2.bf16.msra.mxu0 %v3007
        %3224 = vmatprep.subr.bf16.mxu0 0
        %3225 = vmatpush2.bf16.msra.mxu0 %v3006
        %3226 = vmatprep.subr.bf16.mxu0 0
        %3227 = vmatpush2.bf16.msra.mxu0 %v3005
        %3228 = vmatprep.subr.bf16.mxu0 0
        %3229 = vmatpush2.bf16.msra.mxu0 %v3004
        %3230 = vmatprep.subr.bf16.mxu0 0
        %3231 = vmatpush2.bf16.msra.mxu0 %v3003
        %3232 = vmatprep.subr.bf16.mxu0 0
        %3233 = vmatpush2.bf16.msra.mxu0 %v3002
        %3234 = vmatprep.mubr.bf16.mxu0 %v2507
        %3235 = vmatmul.mubr.bf16.gmra.mxu0 %v2506
        %v3236 = vpop.f32.mrf.mxu0
        %v3237 = vadd.f32 0.0, %v3236
        %v3238 = vpop.f32.mrf.mxu0
        %v3239 = vpop.f32.mrf.mxu0
        %v3240 = vadd.f32 0.0, %v3239
        %v3241 = vpop.f32.mrf.mxu0
        %3242 = vmatprep.mubr.bf16.mxu0 %v2520
        %3243 = vmatmul.mubr.bf16.gmra.mxu0 %v2519
        %v3244 = vpop.f32.mrf.mxu0
        %v3245 = vadd.f32 0.0, %v3244
        %v3246 = vpop.f32.mrf.mxu0
        %v3247 = vpop.f32.mrf.mxu0
        %v3248 = vadd.f32 0.0, %v3247
        %v3249 = vpop.f32.mrf.mxu0
        %3250 = vmatprep.mubr.bf16.mxu0 %v2533
        %3251 = vmatmul.mubr.bf16.gmra.mxu0 %v2532
        %v3252 = vpop.f32.mrf.mxu0
        %v3253 = vadd.f32 0.0, %v3252
        %v3254 = vpop.f32.mrf.mxu0
        %v3255 = vpop.f32.mrf.mxu0
        %v3256 = vadd.f32 0.0, %v3255
        %v3257 = vpop.f32.mrf.mxu0
        %3258 = vmatprep.mubr.bf16.mxu0 %v2546
        %3259 = vmatmul.mubr.bf16.gmra.mxu0 %v2545
        %v3260 = vpop.f32.mrf.mxu0
        %v3261 = vadd.f32 0.0, %v3260
        %v3262 = vpop.f32.mrf.mxu0
        %v3263 = vpop.f32.mrf.mxu0
        %v3264 = vadd.f32 0.0, %v3263
        %v3265 = vpop.f32.mrf.mxu0
        %3266 = vdwg.mxu0
        %3267 = vmatprep.subr.bf16.mxu0 0
        %3268 = vmatpush1.bf16.msra.mxu0 %v3017
        %3269 = vmatprep.subr.bf16.mxu0 0
        %3270 = vmatpush1.bf16.msra.mxu0 %v3016
        %3271 = vmatprep.subr.bf16.mxu0 0
        %3272 = vmatpush1.bf16.msra.mxu0 %v3015
        %3273 = vmatprep.subr.bf16.mxu0 0
        %3274 = vmatpush1.bf16.msra.mxu0 %v3014
        %3275 = vmatprep.subr.bf16.mxu0 0
        %3276 = vmatpush1.bf16.msra.mxu0 %v3013
        %3277 = vmatprep.subr.bf16.mxu0 0
        %3278 = vmatpush1.bf16.msra.mxu0 %v3012
        %3279 = vmatprep.subr.bf16.mxu0 0
        %3280 = vmatpush1.bf16.msra.mxu0 %v3011
        %3281 = vmatprep.subr.bf16.mxu0 0
        %3282 = vmatpush1.bf16.msra.mxu0 %v3010
        %3283 = vmatprep.subr.bf16.mxu0 0
        %3284 = vmatpush2.bf16.msra.mxu0 %v3025
        %3285 = vmatprep.subr.bf16.mxu0 0
        %3286 = vmatpush2.bf16.msra.mxu0 %v3024
        %3287 = vmatprep.subr.bf16.mxu0 0
        %3288 = vmatpush2.bf16.msra.mxu0 %v3023
        %3289 = vmatprep.subr.bf16.mxu0 0
        %3290 = vmatpush2.bf16.msra.mxu0 %v3022
        %3291 = vmatprep.subr.bf16.mxu0 0
        %3292 = vmatpush2.bf16.msra.mxu0 %v3021
        %3293 = vmatprep.subr.bf16.mxu0 0
        %3294 = vmatpush2.bf16.msra.mxu0 %v3020
        %3295 = vmatprep.subr.bf16.mxu0 0
        %3296 = vmatpush2.bf16.msra.mxu0 %v3019
        %3297 = vmatprep.subr.bf16.mxu0 0
        %3298 = vmatpush2.bf16.msra.mxu0 %v3018
        %3299 = vmatprep.mubr.bf16.mxu0 %v2509
        %3300 = vmatmul.mubr.bf16.gmra.mxu0 %v2508
        %v3301 = vpop.f32.mrf.mxu0
        %v3302 = vadd.f32 %v3237, %v3301
        %v3303 = vpop.f32.mrf.mxu0
        %v3304 = vpop.f32.mrf.mxu0
        %v3305 = vadd.f32 %v3240, %v3304
        %v3306 = vpop.f32.mrf.mxu0
        %3307 = vmatprep.mubr.bf16.mxu0 %v2522
        %3308 = vmatmul.mubr.bf16.gmra.mxu0 %v2521
        %v3309 = vpop.f32.mrf.mxu0
        %v3310 = vadd.f32 %v3245, %v3309
        %v3311 = vpop.f32.mrf.mxu0
        %v3312 = vpop.f32.mrf.mxu0
        %v3313 = vadd.f32 %v3248, %v3312
        %v3314 = vpop.f32.mrf.mxu0
        %3315 = vmatprep.mubr.bf16.mxu0 %v2535
        %3316 = vmatmul.mubr.bf16.gmra.mxu0 %v2534
        %v3317 = vpop.f32.mrf.mxu0
        %v3318 = vadd.f32 %v3253, %v3317
        %v3319 = vpop.f32.mrf.mxu0
        %v3320 = vpop.f32.mrf.mxu0
        %v3321 = vadd.f32 %v3256, %v3320
        %v3322 = vpop.f32.mrf.mxu0
        %3323 = vmatprep.mubr.bf16.mxu0 %v2548
        %3324 = vmatmul.mubr.bf16.gmra.mxu0 %v2547
        %v3325 = vpop.f32.mrf.mxu0
        %v3326 = vadd.f32 %v3261, %v3325
        %v3327 = vpop.f32.mrf.mxu0
        %v3328 = vpop.f32.mrf.mxu0
        %v3329 = vadd.f32 %v3264, %v3328
        %v3330 = vpop.f32.mrf.mxu0
        %3331 = vdwg.mxu0
        %3332 = vmatprep.subr.bf16.mxu0 0
        %3333 = vmatpush1.bf16.msra.mxu0 %v3033
        %3334 = vmatprep.subr.bf16.mxu0 0
        %3335 = vmatpush1.bf16.msra.mxu0 %v3032
        %3336 = vmatprep.subr.bf16.mxu0 0
        %3337 = vmatpush1.bf16.msra.mxu0 %v3031
        %3338 = vmatprep.subr.bf16.mxu0 0
        %3339 = vmatpush1.bf16.msra.mxu0 %v3030
        %3340 = vmatprep.subr.bf16.mxu0 0
        %3341 = vmatpush1.bf16.msra.mxu0 %v3029
        %3342 = vmatprep.subr.bf16.mxu0 0
        %3343 = vmatpush1.bf16.msra.mxu0 %v3028
        %3344 = vmatprep.subr.bf16.mxu0 0
        %3345 = vmatpush1.bf16.msra.mxu0 %v3027
        %3346 = vmatprep.subr.bf16.mxu0 0
        %3347 = vmatpush1.bf16.msra.mxu0 %v3026
        %3348 = vmatprep.subr.bf16.mxu0 0
        %3349 = vmatpush2.bf16.msra.mxu0 %v3041
        %3350 = vmatprep.subr.bf16.mxu0 0
        %3351 = vmatpush2.bf16.msra.mxu0 %v3040
        %3352 = vmatprep.subr.bf16.mxu0 0
        %3353 = vmatpush2.bf16.msra.mxu0 %v3039
        %3354 = vmatprep.subr.bf16.mxu0 0
        %3355 = vmatpush2.bf16.msra.mxu0 %v3038
        %3356 = vmatprep.subr.bf16.mxu0 0
        %3357 = vmatpush2.bf16.msra.mxu0 %v3037
        %3358 = vmatprep.subr.bf16.mxu0 0
        %3359 = vmatpush2.bf16.msra.mxu0 %v3036
        %3360 = vmatprep.subr.bf16.mxu0 0
        %3361 = vmatpush2.bf16.msra.mxu0 %v3035
        %3362 = vmatprep.subr.bf16.mxu0 0
        %3363 = vmatpush2.bf16.msra.mxu0 %v3034
        %3364 = vmatprep.mubr.bf16.mxu0 %v2511
        %3365 = vmatmul.mubr.bf16.gmra.mxu0 %v2510
        %v3366 = vpop.f32.mrf.mxu0
        %v3367 = vadd.f32 %v3302, %v3366
        %v3368 = vpop.f32.mrf.mxu0
        %v3369 = vpop.f32.mrf.mxu0
        %v3370 = vadd.f32 %v3305, %v3369
        %v3371 = vpop.f32.mrf.mxu0
        %3372 = vmatprep.mubr.bf16.mxu0 %v2524
        %3373 = vmatmul.mubr.bf16.gmra.mxu0 %v2523
        %v3374 = vpop.f32.mrf.mxu0
        %v3375 = vadd.f32 %v3310, %v3374
        %v3376 = vpop.f32.mrf.mxu0
        %v3377 = vpop.f32.mrf.mxu0
        %v3378 = vadd.f32 %v3313, %v3377
        %v3379 = vpop.f32.mrf.mxu0
        %3380 = vmatprep.mubr.bf16.mxu0 %v2537
        %3381 = vmatmul.mubr.bf16.gmra.mxu0 %v2536
        %v3382 = vpop.f32.mrf.mxu0
        %v3383 = vadd.f32 %v3318, %v3382
        %v3384 = vpop.f32.mrf.mxu0
        %v3385 = vpop.f32.mrf.mxu0
        %v3386 = vadd.f32 %v3321, %v3385
        %v3387 = vpop.f32.mrf.mxu0
        %3388 = vmatprep.mubr.bf16.mxu0 %v2550
        %3389 = vmatmul.mubr.bf16.gmra.mxu0 %v2549
        %v3390 = vpop.f32.mrf.mxu0
        %v3391 = vadd.f32 %v3326, %v3390
        %v3392 = vpop.f32.mrf.mxu0
        %v3393 = vpop.f32.mrf.mxu0
        %v3394 = vadd.f32 %v3329, %v3393
        %v3395 = vpop.f32.mrf.mxu0
        %3396 = vdwg.mxu0
        %3397 = vmatprep.subr.bf16.mxu0 0
        %3398 = vmatpush1.bf16.msra.mxu0 %v3049
        %3399 = vmatprep.subr.bf16.mxu0 0
        %3400 = vmatpush1.bf16.msra.mxu0 %v3048
        %3401 = vmatprep.subr.bf16.mxu0 0
        %3402 = vmatpush1.bf16.msra.mxu0 %v3047
        %3403 = vmatprep.subr.bf16.mxu0 0
        %3404 = vmatpush1.bf16.msra.mxu0 %v3046
        %3405 = vmatprep.subr.bf16.mxu0 0
        %3406 = vmatpush1.bf16.msra.mxu0 %v3045
        %3407 = vmatprep.subr.bf16.mxu0 0
        %3408 = vmatpush1.bf16.msra.mxu0 %v3044
        %3409 = vmatprep.subr.bf16.mxu0 0
        %3410 = vmatpush1.bf16.msra.mxu0 %v3043
        %3411 = vmatprep.subr.bf16.mxu0 0
        %3412 = vmatpush1.bf16.msra.mxu0 %v3042
        %3413 = vmatprep.subr.bf16.mxu0 0
        %3414 = vmatpush2.bf16.msra.mxu0 %v3057
        %3415 = vmatprep.subr.bf16.mxu0 0
        %3416 = vmatpush2.bf16.msra.mxu0 %v3056
        %3417 = vmatprep.subr.bf16.mxu0 0
        %3418 = vmatpush2.bf16.msra.mxu0 %v3055
        %3419 = vmatprep.subr.bf16.mxu0 0
        %3420 = vmatpush2.bf16.msra.mxu0 %v3054
        %3421 = vmatprep.subr.bf16.mxu0 0
        %3422 = vmatpush2.bf16.msra.mxu0 %v3053
        %3423 = vmatprep.subr.bf16.mxu0 0
        %3424 = vmatpush2.bf16.msra.mxu0 %v3052
        %3425 = vmatprep.subr.bf16.mxu0 0
        %3426 = vmatpush2.bf16.msra.mxu0 %v3051
        %3427 = vmatprep.subr.bf16.mxu0 0
        %3428 = vmatpush2.bf16.msra.mxu0 %v3050
        %3429 = vmatprep.mubr.bf16.mxu0 %v2513
        %3430 = vmatmul.mubr.bf16.gmra.mxu0 %v2512
        %v3431 = vpop.f32.mrf.mxu0
        %v3432 = vadd.f32 %v3367, %v3431
        %v3433 = vpop.f32.mrf.mxu0
        %v3434 = vpop.f32.mrf.mxu0
        %v3435 = vadd.f32 %v3370, %v3434
        %v3436 = vpop.f32.mrf.mxu0
        %3437 = vmatprep.mubr.bf16.mxu0 %v2526
        %3438 = vmatmul.mubr.bf16.gmra.mxu0 %v2525
        %v3439 = vpop.f32.mrf.mxu0
        %v3440 = vadd.f32 %v3375, %v3439
        %v3441 = vpop.f32.mrf.mxu0
        %v3442 = vpop.f32.mrf.mxu0
        %v3443 = vadd.f32 %v3378, %v3442
        %v3444 = vpop.f32.mrf.mxu0
        %3445 = vmatprep.mubr.bf16.mxu0 %v2539
        %3446 = vmatmul.mubr.bf16.gmra.mxu0 %v2538
        %v3447 = vpop.f32.mrf.mxu0
        %v3448 = vadd.f32 %v3383, %v3447
        %v3449 = vpop.f32.mrf.mxu0
        %v3450 = vpop.f32.mrf.mxu0
        %v3451 = vadd.f32 %v3386, %v3450
        %v3452 = vpop.f32.mrf.mxu0
        %3453 = vmatprep.mubr.bf16.mxu0 %v2552
        %3454 = vmatmul.mubr.bf16.gmra.mxu0 %v2551
        %v3455 = vpop.f32.mrf.mxu0
        %v3456 = vadd.f32 %v3391, %v3455
        %v3457 = vpop.f32.mrf.mxu0
        %v3458 = vpop.f32.mrf.mxu0
        %v3459 = vadd.f32 %v3394, %v3458
        %v3460 = vpop.f32.mrf.mxu0
        %3461 = vdwg.mxu0
        %3462 = vmatprep.subr.bf16.mxu0 0
        %3463 = vmatpush1.bf16.msra.mxu0 %v3065
        %3464 = vmatprep.subr.bf16.mxu0 0
        %3465 = vmatpush1.bf16.msra.mxu0 %v3064
        %3466 = vmatprep.subr.bf16.mxu0 0
        %3467 = vmatpush1.bf16.msra.mxu0 %v3063
        %3468 = vmatprep.subr.bf16.mxu0 0
        %3469 = vmatpush1.bf16.msra.mxu0 %v3062
        %3470 = vmatprep.subr.bf16.mxu0 0
        %3471 = vmatpush1.bf16.msra.mxu0 %v3061
        %3472 = vmatprep.subr.bf16.mxu0 0
        %3473 = vmatpush1.bf16.msra.mxu0 %v3060
        %3474 = vmatprep.subr.bf16.mxu0 0
        %3475 = vmatpush1.bf16.msra.mxu0 %v3059
        %3476 = vmatprep.subr.bf16.mxu0 0
        %3477 = vmatpush1.bf16.msra.mxu0 %v3058
        %3478 = vmatprep.subr.bf16.mxu0 0
        %3479 = vmatpush2.bf16.msra.mxu0 %v3073
        %3480 = vmatprep.subr.bf16.mxu0 0
        %3481 = vmatpush2.bf16.msra.mxu0 %v3072
        %3482 = vmatprep.subr.bf16.mxu0 0
        %3483 = vmatpush2.bf16.msra.mxu0 %v3071
        %3484 = vmatprep.subr.bf16.mxu0 0
        %3485 = vmatpush2.bf16.msra.mxu0 %v3070
        %3486 = vmatprep.subr.bf16.mxu0 0
        %3487 = vmatpush2.bf16.msra.mxu0 %v3069
        %3488 = vmatprep.subr.bf16.mxu0 0
        %3489 = vmatpush2.bf16.msra.mxu0 %v3068
        %3490 = vmatprep.subr.bf16.mxu0 0
        %3491 = vmatpush2.bf16.msra.mxu0 %v3067
        %3492 = vmatprep.subr.bf16.mxu0 0
        %3493 = vmatpush2.bf16.msra.mxu0 %v3066
        %3494 = vmatprep.mubr.bf16.mxu0 %v2515
        %3495 = vmatmul.mubr.bf16.gmra.mxu0 %v2514
        %v3496 = vpop.f32.mrf.mxu0
        %v3497 = vadd.f32 %v3432, %v3496
        %v3498 = vpop.f32.mrf.mxu0
        %v3499 = vpop.f32.mrf.mxu0
        %v3500 = vadd.f32 %v3435, %v3499
        %v3501 = vpop.f32.mrf.mxu0
        %3502 = vmatprep.mubr.bf16.mxu0 %v2528
        %3503 = vmatmul.mubr.bf16.gmra.mxu0 %v2527
        %v3504 = vpop.f32.mrf.mxu0
        %v3505 = vadd.f32 %v3440, %v3504
        %v3506 = vpop.f32.mrf.mxu0
        %v3507 = vpop.f32.mrf.mxu0
        %v3508 = vadd.f32 %v3443, %v3507
        %v3509 = vpop.f32.mrf.mxu0
        %3510 = vmatprep.mubr.bf16.mxu0 %v2541
        %3511 = vmatmul.mubr.bf16.gmra.mxu0 %v2540
        %v3512 = vpop.f32.mrf.mxu0
        %v3513 = vadd.f32 %v3448, %v3512
        %v3514 = vpop.f32.mrf.mxu0
        %v3515 = vpop.f32.mrf.mxu0
        %v3516 = vadd.f32 %v3451, %v3515
        %v3517 = vpop.f32.mrf.mxu0
        %3518 = vmatprep.mubr.bf16.mxu0 %v2554
        %3519 = vmatmul.mubr.bf16.gmra.mxu0 %v2553
        %v3520 = vpop.f32.mrf.mxu0
        %v3521 = vadd.f32 %v3456, %v3520
        %v3522 = vpop.f32.mrf.mxu0
        %v3523 = vpop.f32.mrf.mxu0
        %v3524 = vadd.f32 %v3459, %v3523
        %v3525 = vpop.f32.mrf.mxu0
        %3526 = vdwg.mxu0
        %3527 = vmatprep.subr.bf16.mxu0 0
        %3528 = vmatpush1.bf16.msra.mxu0 %v3081
        %3529 = vmatprep.subr.bf16.mxu0 0
        %3530 = vmatpush1.bf16.msra.mxu0 %v3080
        %3531 = vmatprep.subr.bf16.mxu0 0
        %3532 = vmatpush1.bf16.msra.mxu0 %v3079
        %3533 = vmatprep.subr.bf16.mxu0 0
        %3534 = vmatpush1.bf16.msra.mxu0 %v3078
        %3535 = vmatprep.subr.bf16.mxu0 0
        %3536 = vmatpush1.bf16.msra.mxu0 %v3077
        %3537 = vmatprep.subr.bf16.mxu0 0
        %3538 = vmatpush1.bf16.msra.mxu0 %v3076
        %3539 = vmatprep.subr.bf16.mxu0 0
        %3540 = vmatpush1.bf16.msra.mxu0 %v3075
        %3541 = vmatprep.subr.bf16.mxu0 0
        %3542 = vmatpush1.bf16.msra.mxu0 %v3074
        %3543 = vmatprep.subr.bf16.mxu0 0
        %3544 = vmatpush2.bf16.msra.mxu0 %v3089
        %3545 = vmatprep.subr.bf16.mxu0 0
        %3546 = vmatpush2.bf16.msra.mxu0 %v3088
        %3547 = vmatprep.subr.bf16.mxu0 0
        %3548 = vmatpush2.bf16.msra.mxu0 %v3087
        %3549 = vmatprep.subr.bf16.mxu0 0
        %3550 = vmatpush2.bf16.msra.mxu0 %v3086
        %3551 = vmatprep.subr.bf16.mxu0 0
        %3552 = vmatpush2.bf16.msra.mxu0 %v3085
        %3553 = vmatprep.subr.bf16.mxu0 0
        %3554 = vmatpush2.bf16.msra.mxu0 %v3084
        %3555 = vmatprep.subr.bf16.mxu0 0
        %3556 = vmatpush2.bf16.msra.mxu0 %v3083
        %3557 = vmatprep.subr.bf16.mxu0 0
        %3558 = vmatpush2.bf16.msra.mxu0 %v3082
        %3559 = vmatprep.mubr.bf16.mxu0 %v2517
        %3560 = vmatmul.mubr.bf16.gmra.mxu0 %v2516
        %v3561 = vpop.f32.mrf.mxu0
        %v3562 = vadd.f32 %v3497, %v3561
        %v3563 = vpop.f32.mrf.mxu0
        %v3564 = vpop.f32.mrf.mxu0
        %v3565 = vadd.f32 %v3500, %v3564
        %v3566 = vpop.f32.mrf.mxu0
        %3567 = vmatprep.mubr.bf16.mxu0 %v2530
        %3568 = vmatmul.mubr.bf16.gmra.mxu0 %v2529
        %v3569 = vpop.f32.mrf.mxu0
        %v3570 = vadd.f32 %v3505, %v3569
        %v3571 = vpop.f32.mrf.mxu0
        %v3572 = vpop.f32.mrf.mxu0
        %v3573 = vadd.f32 %v3508, %v3572
        %v3574 = vpop.f32.mrf.mxu0
        %3575 = vmatprep.mubr.bf16.mxu0 %v2543
        %3576 = vmatmul.mubr.bf16.gmra.mxu0 %v2542
        %v3577 = vpop.f32.mrf.mxu0
        %v3578 = vadd.f32 %v3513, %v3577
        %v3579 = vpop.f32.mrf.mxu0
        %v3580 = vpop.f32.mrf.mxu0
        %v3581 = vadd.f32 %v3516, %v3580
        %v3582 = vpop.f32.mrf.mxu0
        %3583 = vmatprep.mubr.bf16.mxu0 %v2556
        %3584 = vmatmul.mubr.bf16.gmra.mxu0 %v2555
        %v3585 = vpop.f32.mrf.mxu0
        %v3586 = vadd.f32 %v3521, %v3585
        %v3587 = vpop.f32.mrf.mxu0
        %v3588 = vpop.f32.mrf.mxu0
        %v3589 = vadd.f32 %v3524, %v3588
        %v3590 = vpop.f32.mrf.mxu0
        %3591 = vdwg.mxu0
        %3592 = vmatprep.subr.bf16.mxu0 0
        %3593 = vmatpush1.bf16.msra.mxu0 0
        %3594 = vmatprep.subr.bf16.mxu0 0
        %3595 = vmatpush1.bf16.msra.mxu0 0
        %3596 = vmatprep.subr.bf16.mxu0 0
        %3597 = vmatpush1.bf16.msra.mxu0 0
        %3598 = vmatprep.subr.bf16.mxu0 0
        %3599 = vmatpush1.bf16.msra.mxu0 0
        %3600 = vmatprep.subr.bf16.mxu0 0
        %3601 = vmatpush1.bf16.msra.mxu0 0
        %3602 = vmatprep.subr.bf16.mxu0 0
        %3603 = vmatpush1.bf16.msra.mxu0 0
        %3604 = vmatprep.subr.bf16.mxu0 0
        %3605 = vmatpush1.bf16.msra.mxu0 0
        %3606 = vmatprep.subr.bf16.mxu0 0
        %3607 = vmatpush1.bf16.msra.mxu0 %v3200
        %3608 = vmatprep.subr.bf16.mxu0 0
        %3609 = vmatpush2.bf16.msra.mxu0 0
        %3610 = vmatprep.subr.bf16.mxu0 0
        %3611 = vmatpush2.bf16.msra.mxu0 0
        %3612 = vmatprep.subr.bf16.mxu0 0
        %3613 = vmatpush2.bf16.msra.mxu0 0
        %3614 = vmatprep.subr.bf16.mxu0 0
        %3615 = vmatpush2.bf16.msra.mxu0 0
        %3616 = vmatprep.subr.bf16.mxu0 0
        %3617 = vmatpush2.bf16.msra.mxu0 0
        %3618 = vmatprep.subr.bf16.mxu0 0
        %3619 = vmatpush2.bf16.msra.mxu0 0
        %3620 = vmatprep.subr.bf16.mxu0 0
        %3621 = vmatpush2.bf16.msra.mxu0 0
        %3622 = vmatprep.subr.bf16.mxu0 0
        %3623 = vmatpush2.bf16.msra.mxu0 0
        %3624 = vmatprep.mubr.bf16.mxu0 0
        %3625 = vmatmul.mubr.bf16.gmra.mxu0 %v3188
        %v3626 = vpop.f32.mrf.mxu0
        %v3627 = vadd.f32 %v3562, %v3626
        %v3628 = vpop.f32.mrf.mxu0
        %v3629 = vpop.f32.mrf.mxu0
        %v3630 = vadd.f32 %v3565, %v3629
        %v3631 = vpop.f32.mrf.mxu0
        %3632 = vmatprep.mubr.bf16.mxu0 0
        %3633 = vmatmul.mubr.bf16.gmra.mxu0 %v3191
        %v3634 = vpop.f32.mrf.mxu0
        %v3635 = vadd.f32 %v3570, %v3634
        %v3636 = vpop.f32.mrf.mxu0
        %v3637 = vpop.f32.mrf.mxu0
        %v3638 = vadd.f32 %v3573, %v3637
        %v3639 = vpop.f32.mrf.mxu0
        %3640 = vmatprep.mubr.bf16.mxu0 0
        %3641 = vmatmul.mubr.bf16.gmra.mxu0 %v3194
        %v3642 = vpop.f32.mrf.mxu0
        %v3643 = vadd.f32 %v3578, %v3642
        %v3644 = vpop.f32.mrf.mxu0
        %v3645 = vpop.f32.mrf.mxu0
        %v3646 = vadd.f32 %v3581, %v3645
        %v3647 = vpop.f32.mrf.mxu0
        %3648 = vmatprep.mubr.bf16.mxu0 0
        %3649 = vmatmul.mubr.bf16.gmra.mxu0 %v3197
        %v3650 = vpop.f32.mrf.mxu0
        %v3651 = vadd.f32 %v3586, %v3650
        %v3652 = vpop.f32.mrf.mxu0
        %v3653 = vpop.f32.mrf.mxu0
        %v3654 = vadd.f32 %v3589, %v3653
        %v3655 = vpop.f32.mrf.mxu0
        %3656 = vdwg.mxu0
        loop: start=0, step=1, limit=64
        $region93: #{simple_cnn_sigmoid_forward.1} parent=59 // loop_pre_header
          _
        $region94: #{simple_cnn_sigmoid_forward.1} parent=59 // loop_header
          %s3658 = sphi 0, %s3662
          %p3659 = scmp.ge.s32.totalorder %s3658, 64
          %v3663 = vphi %v3627, %v3971
          %v3664 = vphi %v3630, %v3972
          %v3665 = vphi %v3635, %v3973
          %v3666 = vphi %v3638, %v3974
          %v3667 = vphi %v3643, %v3975
          %v3668 = vphi %v3646, %v3976
          %v3669 = vphi %v3651, %v3977
          %v3670 = vphi %v3654, %v3978
        $region95: #{simple_cnn_sigmoid_forward.1} parent=59 // loop_header_branch
          %3661 = sbr.rel (%p3659) target = $region99
        $region96: #{simple_cnn_sigmoid_forward.1} parent=59 // loop_body
          %s3671 = smul.u32 %s3658, 2
          %s3672 = scalar_lea.vmem [#allocation2], %s3671
          %v3673 = vld [vmem:[%s3672] sm:$0xff]
          %v3674 = vld [vmem:[%s3672 + $0x8] sm:$0xff]
          %v3675 = vld [vmem:[%s3672 + $0x10] sm:$0xff]
          %v3676 = vld [vmem:[%s3672 + $0x18] sm:$0xff]
          %v3677 = vld [vmem:[%s3672 + $0x20] sm:$0xff]
          %v3678 = vld [vmem:[%s3672 + $0x28] sm:$0xff]
          %v3679 = vld [vmem:[%s3672 + $0x30] sm:$0xff]
          %v3680 = vld [vmem:[%s3672 + $0x38] sm:$0xff]
          %v3681 = vpack.c.bf16 %v3674, %v3673
          %v3682 = vpack.c.bf16 %v3676, %v3675
          %v3683 = vpack.c.bf16 %v3678, %v3677
          %v3684 = vpack.c.bf16 %v3680, %v3679
          %s3685 = smul.u32 %s3671, 16
          %s3686 = smul.addr %s3685, 4
          %s3687 = scalar_lea.vmem [#allocation10], %s3686
          %v3688 = vld [vmem:[%s3687] sm:$0xf]
          %v3689 = vld [vmem:[%s3687 + $0x4] sm:$0xf]
          %v3690 = vld [vmem:[%s3687 + $0x8] sm:$0xf]
          %v3691 = vld [vmem:[%s3687 + $0xc] sm:$0xf]
          %v3692 = vld [vmem:[%s3687 + $0x10] sm:$0xf]
          %v3693 = vld [vmem:[%s3687 + $0x14] sm:$0xf]
          %v3694 = vld [vmem:[%s3687 + $0x18] sm:$0xf]
          %v3695 = vld [vmem:[%s3687 + $0x1c] sm:$0xf]
          %v3696 = vld [vmem:[%s3687 + $0x20] sm:$0xf]
          %v3697 = vld [vmem:[%s3687 + $0x24] sm:$0xf]
          %v3698 = vld [vmem:[%s3687 + $0x28] sm:$0xf]
          %v3699 = vld [vmem:[%s3687 + $0x2c] sm:$0xf]
          %v3700 = vld [vmem:[%s3687 + $0x30] sm:$0xf]
          %v3701 = vld [vmem:[%s3687 + $0x34] sm:$0xf]
          %v3702 = vld [vmem:[%s3687 + $0x38] sm:$0xf]
          %v3703 = vld [vmem:[%s3687 + $0x3c] sm:$0xf]
          %v3720 = vunpack.c.l.b16 %v3688
          %v3721 = vunpack.c.l.b16 %v3689
          %v3722 = vunpack.c.l.b16 %v3690
          %v3723 = vunpack.c.l.b16 %v3691
          %v3724 = vunpack.c.l.b16 %v3692
          %v3725 = vunpack.c.l.b16 %v3693
          %v3726 = vunpack.c.l.b16 %v3694
          %v3727 = vunpack.c.l.b16 %v3695
          %v3728 = vunpack.c.l.b16 %v3696
          %v3729 = vunpack.c.l.b16 %v3697
          %v3730 = vunpack.c.l.b16 %v3698
          %v3731 = vunpack.c.l.b16 %v3699
          %v3732 = vunpack.c.l.b16 %v3700
          %v3733 = vunpack.c.l.b16 %v3701
          %v3734 = vunpack.c.l.b16 %v3702
          %v3735 = vunpack.c.l.b16 %v3703
          %v3736 = vpack.c.b16 %v3721, %v3720
          %v3737 = vpack.c.b16 %v3723, %v3722
          %v3738 = vpack.c.b16 %v3725, %v3724
          %v3739 = vpack.c.b16 %v3727, %v3726
          %v3740 = vpack.c.b16 %v3729, %v3728
          %v3741 = vpack.c.b16 %v3731, %v3730
          %v3742 = vpack.c.b16 %v3733, %v3732
          %v3743 = vpack.c.b16 %v3735, %v3734
          %3752 = vmatprep.subr.bf16.mxu0 0
          %3753 = vmatpush1.bf16.msra.mxu0 %v3743
          %3754 = vmatprep.subr.bf16.mxu0 0
          %3755 = vmatpush1.bf16.msra.mxu0 %v3742
          %3756 = vmatprep.subr.bf16.mxu0 0
          %3757 = vmatpush1.bf16.msra.mxu0 %v3741
          %3758 = vmatprep.subr.bf16.mxu0 0
          %3759 = vmatpush1.bf16.msra.mxu0 %v3740
          %3760 = vmatprep.subr.bf16.mxu0 0
          %3761 = vmatpush1.bf16.msra.mxu0 %v3739
          %3762 = vmatprep.subr.bf16.mxu0 0
          %3763 = vmatpush1.bf16.msra.mxu0 %v3738
          %3764 = vmatprep.subr.bf16.mxu0 0
          %3765 = vmatpush1.bf16.msra.mxu0 %v3737
          %3766 = vmatprep.subr.bf16.mxu0 0
          %3767 = vmatpush1.bf16.msra.mxu0 %v3736
          %3768 = vmatprep.subr.bf16.mxu0 0
          %3769 = vmatpush2.bf16.msra.mxu0 0
          %3770 = vmatprep.subr.bf16.mxu0 0
          %3771 = vmatpush2.bf16.msra.mxu0 0
          %3772 = vmatprep.subr.bf16.mxu0 0
          %3773 = vmatpush2.bf16.msra.mxu0 0
          %3774 = vmatprep.subr.bf16.mxu0 0
          %3775 = vmatpush2.bf16.msra.mxu0 0
          %3776 = vmatprep.subr.bf16.mxu0 0
          %3777 = vmatpush2.bf16.msra.mxu0 0
          %3778 = vmatprep.subr.bf16.mxu0 0
          %3779 = vmatpush2.bf16.msra.mxu0 0
          %3780 = vmatprep.subr.bf16.mxu0 0
          %3781 = vmatpush2.bf16.msra.mxu0 0
          %3782 = vmatprep.subr.bf16.mxu0 0
          %3783 = vmatpush2.bf16.msra.mxu0 0
          %3784 = vmatprep.mubr.bf16.mxu0 0
          %3785 = vmatmul.mubr.bf16.gmra.mxu0 %v3681
          %v3786 = vpop.f32.mrf.mxu0
          %v3787 = vadd.f32 0.0, %v3786
          %v3788 = vpop.f32.mrf.mxu0
          %v3789 = vpop.f32.mrf.mxu0
          %v3790 = vadd.f32 0.0, %v3789
          %v3791 = vpop.f32.mrf.mxu0
          %3792 = vmatprep.mubr.bf16.mxu0 0
          %3793 = vmatmul.mubr.bf16.gmra.mxu0 %v3682
          %v3794 = vpop.f32.mrf.mxu0
          %v3795 = vadd.f32 0.0, %v3794
          %v3796 = vpop.f32.mrf.mxu0
          %v3797 = vpop.f32.mrf.mxu0
          %v3798 = vadd.f32 0.0, %v3797
          %v3799 = vpop.f32.mrf.mxu0
          %3800 = vmatprep.mubr.bf16.mxu0 0
          %3801 = vmatmul.mubr.bf16.gmra.mxu0 %v3683
          %v3802 = vpop.f32.mrf.mxu0
          %v3803 = vadd.f32 0.0, %v3802
          %v3804 = vpop.f32.mrf.mxu0
          %v3805 = vpop.f32.mrf.mxu0
          %v3806 = vadd.f32 0.0, %v3805
          %v3807 = vpop.f32.mrf.mxu0
          %3808 = vmatprep.mubr.bf16.mxu0 0
          %3809 = vmatmul.mubr.bf16.gmra.mxu0 %v3684
          %v3810 = vpop.f32.mrf.mxu0
          %v3811 = vadd.f32 0.0, %v3810
          %v3812 = vpop.f32.mrf.mxu0
          %v3813 = vpop.f32.mrf.mxu0
          %v3814 = vadd.f32 0.0, %v3813
          %v3815 = vpop.f32.mrf.mxu0
          %3816 = vdwg.mxu0
          %v3817 = vadd.f32 %v3663, %v3787
          %v3818 = vadd.f32 %v3664, %v3790
          %v3819 = vadd.f32 %v3665, %v3795
          %v3820 = vadd.f32 %v3666, %v3798
          %v3821 = vadd.f32 %v3667, %v3803
          %v3822 = vadd.f32 %v3668, %v3806
          %v3823 = vadd.f32 %v3669, %v3811
          %v3824 = vadd.f32 %v3670, %v3814
          %s3825 = sadd.s32 %s3671, 1
          %s3826 = scalar_lea.vmem [#allocation2], %s3825
          %v3827 = vld [vmem:[%s3826] sm:$0xff]
          %v3828 = vld [vmem:[%s3826 + $0x8] sm:$0xff]
          %v3829 = vld [vmem:[%s3826 + $0x10] sm:$0xff]
          %v3830 = vld [vmem:[%s3826 + $0x18] sm:$0xff]
          %v3831 = vld [vmem:[%s3826 + $0x20] sm:$0xff]
          %v3832 = vld [vmem:[%s3826 + $0x28] sm:$0xff]
          %v3833 = vld [vmem:[%s3826 + $0x30] sm:$0xff]
          %v3834 = vld [vmem:[%s3826 + $0x38] sm:$0xff]
          %v3835 = vpack.c.bf16 %v3828, %v3827
          %v3836 = vpack.c.bf16 %v3830, %v3829
          %v3837 = vpack.c.bf16 %v3832, %v3831
          %v3838 = vpack.c.bf16 %v3834, %v3833
          %s3839 = smul.u32 %s3825, 16
          %s3840 = smul.addr %s3839, 4
          %s3841 = scalar_lea.vmem [#allocation10], %s3840
          %v3842 = vld [vmem:[%s3841] sm:$0xf]
          %v3843 = vld [vmem:[%s3841 + $0x4] sm:$0xf]
          %v3844 = vld [vmem:[%s3841 + $0x8] sm:$0xf]
          %v3845 = vld [vmem:[%s3841 + $0xc] sm:$0xf]
          %v3846 = vld [vmem:[%s3841 + $0x10] sm:$0xf]
          %v3847 = vld [vmem:[%s3841 + $0x14] sm:$0xf]
          %v3848 = vld [vmem:[%s3841 + $0x18] sm:$0xf]
          %v3849 = vld [vmem:[%s3841 + $0x1c] sm:$0xf]
          %v3850 = vld [vmem:[%s3841 + $0x20] sm:$0xf]
          %v3851 = vld [vmem:[%s3841 + $0x24] sm:$0xf]
          %v3852 = vld [vmem:[%s3841 + $0x28] sm:$0xf]
          %v3853 = vld [vmem:[%s3841 + $0x2c] sm:$0xf]
          %v3854 = vld [vmem:[%s3841 + $0x30] sm:$0xf]
          %v3855 = vld [vmem:[%s3841 + $0x34] sm:$0xf]
          %v3856 = vld [vmem:[%s3841 + $0x38] sm:$0xf]
          %v3857 = vld [vmem:[%s3841 + $0x3c] sm:$0xf]
          %v3874 = vunpack.c.l.b16 %v3842
          %v3875 = vunpack.c.l.b16 %v3843
          %v3876 = vunpack.c.l.b16 %v3844
          %v3877 = vunpack.c.l.b16 %v3845
          %v3878 = vunpack.c.l.b16 %v3846
          %v3879 = vunpack.c.l.b16 %v3847
          %v3880 = vunpack.c.l.b16 %v3848
          %v3881 = vunpack.c.l.b16 %v3849
          %v3882 = vunpack.c.l.b16 %v3850
          %v3883 = vunpack.c.l.b16 %v3851
          %v3884 = vunpack.c.l.b16 %v3852
          %v3885 = vunpack.c.l.b16 %v3853
          %v3886 = vunpack.c.l.b16 %v3854
          %v3887 = vunpack.c.l.b16 %v3855
          %v3888 = vunpack.c.l.b16 %v3856
          %v3889 = vunpack.c.l.b16 %v3857
          %v3890 = vpack.c.b16 %v3875, %v3874
          %v3891 = vpack.c.b16 %v3877, %v3876
          %v3892 = vpack.c.b16 %v3879, %v3878
          %v3893 = vpack.c.b16 %v3881, %v3880
          %v3894 = vpack.c.b16 %v3883, %v3882
          %v3895 = vpack.c.b16 %v3885, %v3884
          %v3896 = vpack.c.b16 %v3887, %v3886
          %v3897 = vpack.c.b16 %v3889, %v3888
          %3906 = vmatprep.subr.bf16.mxu0 0
          %3907 = vmatpush1.bf16.msra.mxu0 %v3897
          %3908 = vmatprep.subr.bf16.mxu0 0
          %3909 = vmatpush1.bf16.msra.mxu0 %v3896
          %3910 = vmatprep.subr.bf16.mxu0 0
          %3911 = vmatpush1.bf16.msra.mxu0 %v3895
          %3912 = vmatprep.subr.bf16.mxu0 0
          %3913 = vmatpush1.bf16.msra.mxu0 %v3894
          %3914 = vmatprep.subr.bf16.mxu0 0
          %3915 = vmatpush1.bf16.msra.mxu0 %v3893
          %3916 = vmatprep.subr.bf16.mxu0 0
          %3917 = vmatpush1.bf16.msra.mxu0 %v3892
          %3918 = vmatprep.subr.bf16.mxu0 0
          %3919 = vmatpush1.bf16.msra.mxu0 %v3891
          %3920 = vmatprep.subr.bf16.mxu0 0
          %3921 = vmatpush1.bf16.msra.mxu0 %v3890
          %3922 = vmatprep.subr.bf16.mxu0 0
          %3923 = vmatpush2.bf16.msra.mxu0 0
          %3924 = vmatprep.subr.bf16.mxu0 0
          %3925 = vmatpush2.bf16.msra.mxu0 0
          %3926 = vmatprep.subr.bf16.mxu0 0
          %3927 = vmatpush2.bf16.msra.mxu0 0
          %3928 = vmatprep.subr.bf16.mxu0 0
          %3929 = vmatpush2.bf16.msra.mxu0 0
          %3930 = vmatprep.subr.bf16.mxu0 0
          %3931 = vmatpush2.bf16.msra.mxu0 0
          %3932 = vmatprep.subr.bf16.mxu0 0
          %3933 = vmatpush2.bf16.msra.mxu0 0
          %3934 = vmatprep.subr.bf16.mxu0 0
          %3935 = vmatpush2.bf16.msra.mxu0 0
          %3936 = vmatprep.subr.bf16.mxu0 0
          %3937 = vmatpush2.bf16.msra.mxu0 0
          %3938 = vmatprep.mubr.bf16.mxu0 0
          %3939 = vmatmul.mubr.bf16.gmra.mxu0 %v3835
          %v3940 = vpop.f32.mrf.mxu0
          %v3941 = vadd.f32 0.0, %v3940
          %v3942 = vpop.f32.mrf.mxu0
          %v3943 = vpop.f32.mrf.mxu0
          %v3944 = vadd.f32 0.0, %v3943
          %v3945 = vpop.f32.mrf.mxu0
          %3946 = vmatprep.mubr.bf16.mxu0 0
          %3947 = vmatmul.mubr.bf16.gmra.mxu0 %v3836
          %v3948 = vpop.f32.mrf.mxu0
          %v3949 = vadd.f32 0.0, %v3948
          %v3950 = vpop.f32.mrf.mxu0
          %v3951 = vpop.f32.mrf.mxu0
          %v3952 = vadd.f32 0.0, %v3951
          %v3953 = vpop.f32.mrf.mxu0
          %3954 = vmatprep.mubr.bf16.mxu0 0
          %3955 = vmatmul.mubr.bf16.gmra.mxu0 %v3837
          %v3956 = vpop.f32.mrf.mxu0
          %v3957 = vadd.f32 0.0, %v3956
          %v3958 = vpop.f32.mrf.mxu0
          %v3959 = vpop.f32.mrf.mxu0
          %v3960 = vadd.f32 0.0, %v3959
          %v3961 = vpop.f32.mrf.mxu0
          %3962 = vmatprep.mubr.bf16.mxu0 0
          %3963 = vmatmul.mubr.bf16.gmra.mxu0 %v3838
          %v3964 = vpop.f32.mrf.mxu0
          %v3965 = vadd.f32 0.0, %v3964
          %v3966 = vpop.f32.mrf.mxu0
          %v3967 = vpop.f32.mrf.mxu0
          %v3968 = vadd.f32 0.0, %v3967
          %v3969 = vpop.f32.mrf.mxu0
          %3970 = vdwg.mxu0
          %v3971 = vadd.f32 %v3817, %v3941
          %v3972 = vadd.f32 %v3818, %v3944
          %v3973 = vadd.f32 %v3819, %v3949
          %v3974 = vadd.f32 %v3820, %v3952
          %v3975 = vadd.f32 %v3821, %v3957
          %v3976 = vadd.f32 %v3822, %v3960
          %v3977 = vadd.f32 %v3823, %v3965
          %v3978 = vadd.f32 %v3824, %v3968
        $region97: #{simple_cnn_sigmoid_forward.1} parent=59 // loop_footer
          %s3662 = sadd.s32 1, %s3658
        $region98: #{simple_cnn_sigmoid_forward.1} parent=59 // loop_footer_branch
          %3657 = sbr.rel target = $region94
        $region99: #{simple_cnn_sigmoid_forward.1} parent=59 // loop_exit
          _
        %v3979 = vld [vmem:[#allocation2 + $0x80] sm:$0xff]
        %v3980 = vld [vmem:[#allocation2 + $0x88] sm:$0xff]
        %v3981 = vld [vmem:[#allocation2 + $0x90] sm:$0xff]
        %v3982 = vld [vmem:[#allocation2 + $0x98] sm:$0xff]
        %v3983 = vld [vmem:[#allocation2 + $0xa0] sm:$0xff]
        %v3984 = vld [vmem:[#allocation2 + $0xa8] sm:$0xff]
        %v3985 = vld [vmem:[#allocation2 + $0xb0] sm:$0xff]
        %v3986 = vld [vmem:[#allocation2 + $0xb8] sm:$0xff]
        %v3987 = vpack.c.bf16 %v3980, %v3979
        %v3988 = vpack.c.bf16 %v3982, %v3981
        %v3989 = vpack.c.bf16 %v3984, %v3983
        %v3990 = vpack.c.bf16 %v3986, %v3985
        %s3991 = scalar_lea.vmem [#allocation10], 8192
        %v3992 = vld [vmem:[%s3991] sm:$0xf]
        %v3993 = vld [vmem:[%s3991 + $0x4] sm:$0xf]
        %v3994 = vld [vmem:[%s3991 + $0x8] sm:$0xf]
        %v3995 = vld [vmem:[%s3991 + $0xc] sm:$0xf]
        %v3996 = vld [vmem:[%s3991 + $0x10] sm:$0xf]
        %v3997 = vld [vmem:[%s3991 + $0x14] sm:$0xf]
        %v3998 = vld [vmem:[%s3991 + $0x18] sm:$0xf]
        %v3999 = vld [vmem:[%s3991 + $0x1c] sm:$0xf]
        %v4000 = vld [vmem:[%s3991 + $0x20] sm:$0xf]
        %v4001 = vld [vmem:[%s3991 + $0x24] sm:$0xf]
        %v4002 = vld [vmem:[%s3991 + $0x28] sm:$0xf]
        %v4003 = vld [vmem:[%s3991 + $0x2c] sm:$0xf]
        %v4004 = vld [vmem:[%s3991 + $0x30] sm:$0xf]
        %v4005 = vld [vmem:[%s3991 + $0x34] sm:$0xf]
        %v4006 = vld [vmem:[%s3991 + $0x38] sm:$0xf]
        %v4007 = vld [vmem:[%s3991 + $0x3c] sm:$0xf]
        %v4024 = vunpack.c.l.b16 %v3992
        %v4025 = vunpack.c.l.b16 %v3993
        %v4026 = vunpack.c.l.b16 %v3994
        %v4027 = vunpack.c.l.b16 %v3995
        %v4028 = vunpack.c.l.b16 %v3996
        %v4029 = vunpack.c.l.b16 %v3997
        %v4030 = vunpack.c.l.b16 %v3998
        %v4031 = vunpack.c.l.b16 %v3999
        %v4032 = vunpack.c.l.b16 %v4000
        %v4033 = vunpack.c.l.b16 %v4001
        %v4034 = vunpack.c.l.b16 %v4002
        %v4035 = vunpack.c.l.b16 %v4003
        %v4036 = vunpack.c.l.b16 %v4004
        %v4037 = vunpack.c.l.b16 %v4005
        %v4038 = vunpack.c.l.b16 %v4006
        %v4039 = vunpack.c.l.b16 %v4007
        %v4040 = vpack.c.b16 %v4025, %v4024
        %v4041 = vpack.c.b16 %v4027, %v4026
        %v4042 = vpack.c.b16 %v4029, %v4028
        %v4043 = vpack.c.b16 %v4031, %v4030
        %v4044 = vpack.c.b16 %v4033, %v4032
        %v4045 = vpack.c.b16 %v4035, %v4034
        %v4046 = vpack.c.b16 %v4037, %v4036
        %v4047 = vpack.c.b16 %v4039, %v4038
        %4056 = vmatprep.subr.bf16.mxu0 0
        %4057 = vmatpush1.bf16.msra.mxu0 %v4047
        %4058 = vmatprep.subr.bf16.mxu0 0
        %4059 = vmatpush1.bf16.msra.mxu0 %v4046
        %4060 = vmatprep.subr.bf16.mxu0 0
        %4061 = vmatpush1.bf16.msra.mxu0 %v4045
        %4062 = vmatprep.subr.bf16.mxu0 0
        %4063 = vmatpush1.bf16.msra.mxu0 %v4044
        %4064 = vmatprep.subr.bf16.mxu0 0
        %4065 = vmatpush1.bf16.msra.mxu0 %v4043
        %4066 = vmatprep.subr.bf16.mxu0 0
        %4067 = vmatpush1.bf16.msra.mxu0 %v4042
        %4068 = vmatprep.subr.bf16.mxu0 0
        %4069 = vmatpush1.bf16.msra.mxu0 %v4041
        %4070 = vmatprep.subr.bf16.mxu0 0
        %4071 = vmatpush1.bf16.msra.mxu0 %v4040
        %4072 = vmatprep.subr.bf16.mxu0 0
        %4073 = vmatpush2.bf16.msra.mxu0 0
        %4074 = vmatprep.subr.bf16.mxu0 0
        %4075 = vmatpush2.bf16.msra.mxu0 0
        %4076 = vmatprep.subr.bf16.mxu0 0
        %4077 = vmatpush2.bf16.msra.mxu0 0
        %4078 = vmatprep.subr.bf16.mxu0 0
        %4079 = vmatpush2.bf16.msra.mxu0 0
        %4080 = vmatprep.subr.bf16.mxu0 0
        %4081 = vmatpush2.bf16.msra.mxu0 0
        %4082 = vmatprep.subr.bf16.mxu0 0
        %4083 = vmatpush2.bf16.msra.mxu0 0
        %4084 = vmatprep.subr.bf16.mxu0 0
        %4085 = vmatpush2.bf16.msra.mxu0 0
        %4086 = vmatprep.subr.bf16.mxu0 0
        %4087 = vmatpush2.bf16.msra.mxu0 0
        %4088 = vmatprep.mubr.bf16.mxu0 0
        %4089 = vmatmul.mubr.bf16.gmra.mxu0 %v3987
        %v4090 = vpop.f32.mrf.mxu0
        %v4091 = vadd.f32 0.0, %v4090
        %v4092 = vpop.f32.mrf.mxu0
        %v4093 = vpop.f32.mrf.mxu0
        %v4094 = vadd.f32 0.0, %v4093
        %v4095 = vpop.f32.mrf.mxu0
        %4096 = vmatprep.mubr.bf16.mxu0 0
        %4097 = vmatmul.mubr.bf16.gmra.mxu0 %v3988
        %v4098 = vpop.f32.mrf.mxu0
        %v4099 = vadd.f32 0.0, %v4098
        %v4100 = vpop.f32.mrf.mxu0
        %v4101 = vpop.f32.mrf.mxu0
        %v4102 = vadd.f32 0.0, %v4101
        %v4103 = vpop.f32.mrf.mxu0
        %4104 = vmatprep.mubr.bf16.mxu0 0
        %4105 = vmatmul.mubr.bf16.gmra.mxu0 %v3989
        %v4106 = vpop.f32.mrf.mxu0
        %v4107 = vadd.f32 0.0, %v4106
        %v4108 = vpop.f32.mrf.mxu0
        %v4109 = vpop.f32.mrf.mxu0
        %v4110 = vadd.f32 0.0, %v4109
        %v4111 = vpop.f32.mrf.mxu0
        %4112 = vmatprep.mubr.bf16.mxu0 0
        %4113 = vmatmul.mubr.bf16.gmra.mxu0 %v3990
        %v4114 = vpop.f32.mrf.mxu0
        %v4115 = vadd.f32 0.0, %v4114
        %v4116 = vpop.f32.mrf.mxu0
        %v4117 = vpop.f32.mrf.mxu0
        %v4118 = vadd.f32 0.0, %v4117
        %v4119 = vpop.f32.mrf.mxu0
        %4120 = vdwg.mxu0
        %v4121 = vadd.f32 %v3663, %v4091
        %v4122 = vadd.f32 %v3664, %v4094
        %v4123 = vadd.f32 %v3665, %v4099
        %v4124 = vadd.f32 %v3666, %v4102
        %v4125 = vadd.f32 %v3667, %v4107
        %v4126 = vadd.f32 %v3668, %v4110
        %v4127 = vadd.f32 %v3669, %v4115
        %v4128 = vadd.f32 %v3670, %v4118
        %v4129 = vld [vmem:[#allocation12] sm:$0x1]
        %v4131 = vlaneseq
        %v4132 = vshrl.u32 %v4131, 7
        %v4133 = vsub.s32 0, %v4132
        %v4134 = vrot.slane %v4129, %v4133
        %v4136 = vadd.f32 %v4121, %v4134
        %v4137 = vadd.f32 %v4122, %v4134
        %v4138 = vadd.f32 %v4123, %v4134
        %v4139 = vadd.f32 %v4124, %v4134
        %v4140 = vadd.f32 %v4125, %v4134
        %v4141 = vadd.f32 %v4126, %v4134
        %v4142 = vadd.f32 %v4127, %v4134
        %v4143 = vadd.f32 %v4128, %v4134
        %v4144 = vmul.f32 %v4136, %v4136
        %v4145 = vmul.f32 %v4137, %v4137
        %v4146 = vmul.f32 %v4138, %v4138
        %v4147 = vmul.f32 %v4139, %v4139
        %v4148 = vmul.f32 %v4140, %v4140
        %v4149 = vmul.f32 %v4141, %v4141
        %v4150 = vmul.f32 %v4142, %v4142
        %v4151 = vmul.f32 %v4143, %v4143
        %v4152 = vmul.f32 %v4144, %v4136
        %v4153 = vmul.f32 %v4145, %v4137
        %v4154 = vmul.f32 %v4146, %v4138
        %v4155 = vmul.f32 %v4147, %v4139
        %v4156 = vmul.f32 %v4148, %v4140
        %v4157 = vmul.f32 %v4149, %v4141
        %v4158 = vmul.f32 %v4150, %v4142
        %v4159 = vmul.f32 %v4151, %v4143
        %4160 = vst [vmem:[#allocation3 + $0x40] sm:$0xff] %v4152
        %4161 = vst [vmem:[#allocation3 + $0x48] sm:$0xff] %v4153
        %4162 = vst [vmem:[#allocation3 + $0x50] sm:$0xff] %v4154
        %4163 = vst [vmem:[#allocation3 + $0x58] sm:$0xff] %v4155
        %4164 = vst [vmem:[#allocation3 + $0x60] sm:$0xff] %v4156
        %4165 = vst [vmem:[#allocation3 + $0x68] sm:$0xff] %v4157
        %4166 = vst [vmem:[#allocation3 + $0x70] sm:$0xff] %v4158
        %4167 = vst [vmem:[#allocation3 + $0x78] sm:$0xff] %v4159
        %v4168 = vld [vmem:[#allocation13] sm:$0xff]
        %v4169 = vld [vmem:[#allocation13 + $0x8] sm:$0xff]
        %v4170 = vld [vmem:[#allocation13 + $0x10] sm:$0xff]
        %v4171 = vld [vmem:[#allocation13 + $0x18] sm:$0xff]
        %v4172 = vld [vmem:[#allocation13 + $0x20] sm:$0xff]
        %v4173 = vld [vmem:[#allocation13 + $0x28] sm:$0xff]
        %v4174 = vld [vmem:[#allocation13 + $0x30] sm:$0xf]
        %v4175 = vld [vmem:[%s468] sm:$0xff]
        %v4176 = vld [vmem:[%s468 + $0x8] sm:$0xff]
        %v4177 = vld [vmem:[%s468 + $0x10] sm:$0xff]
        %v4178 = vld [vmem:[%s468 + $0x18] sm:$0xff]
        %v4179 = vld [vmem:[%s468 + $0x20] sm:$0xff]
        %v4180 = vld [vmem:[%s468 + $0x28] sm:$0xff]
        %v4181 = vld [vmem:[%s468 + $0x30] sm:$0xf]
        %v4182 = vld [vmem:[%s468 + $0x34] sm:$0xff]
        %v4183 = vld [vmem:[%s468 + $0x3c] sm:$0xff]
        %v4184 = vld [vmem:[%s468 + $0x44] sm:$0xff]
        %v4185 = vld [vmem:[%s468 + $0x4c] sm:$0xff]
        %v4186 = vld [vmem:[%s468 + $0x54] sm:$0xff]
        %v4187 = vld [vmem:[%s468 + $0x5c] sm:$0xff]
        %v4188 = vld [vmem:[%s468 + $0x64] sm:$0xf]
        %v4189 = vld [vmem:[%s468 + $0x68] sm:$0xff]
        %v4190 = vld [vmem:[%s468 + $0x70] sm:$0xff]
        %v4191 = vld [vmem:[%s468 + $0x78] sm:$0xff]
        %v4192 = vld [vmem:[%s468 + $0x80] sm:$0xff]
        %v4193 = vld [vmem:[%s468 + $0x88] sm:$0xff]
        %v4194 = vld [vmem:[%s468 + $0x90] sm:$0xff]
        %v4195 = vld [vmem:[%s468 + $0x98] sm:$0xf]
        %v4196 = vld [vmem:[%s468 + $0x9c] sm:$0xff]
        %v4197 = vld [vmem:[%s468 + $0xa4] sm:$0xff]
        %v4198 = vld [vmem:[%s468 + $0xac] sm:$0xff]
        %v4199 = vld [vmem:[%s468 + $0xb4] sm:$0xff]
        %v4200 = vld [vmem:[%s468 + $0xbc] sm:$0xff]
        %v4201 = vld [vmem:[%s468 + $0xc4] sm:$0xff]
        %v4202 = vld [vmem:[%s468 + $0xcc] sm:$0xf]
        %v4203 = vld [vmem:[%s468 + $0xd0] sm:$0xff]
        %v4204 = vld [vmem:[%s468 + $0xd8] sm:$0xff]
        %v4205 = vld [vmem:[%s468 + $0xe0] sm:$0xff]
        %v4206 = vld [vmem:[%s468 + $0xe8] sm:$0xff]
        %v4207 = vld [vmem:[%s468 + $0xf0] sm:$0xff]
        %v4208 = vld [vmem:[%s468 + $0xf8] sm:$0xff]
        %v4209 = vld [vmem:[%s468 + $0x100] sm:$0xf]
        %v4210 = vld [vmem:[%s468 + $0x104] sm:$0xff]
        %v4211 = vld [vmem:[%s468 + $0x10c] sm:$0xff]
        %v4212 = vld [vmem:[%s468 + $0x114] sm:$0xff]
        %v4213 = vld [vmem:[%s468 + $0x11c] sm:$0xff]
        %v4214 = vld [vmem:[%s468 + $0x124] sm:$0xff]
        %v4215 = vld [vmem:[%s468 + $0x12c] sm:$0xff]
        %v4216 = vld [vmem:[%s468 + $0x134] sm:$0xf]
        %v4217 = vld [vmem:[%s468 + $0x138] sm:$0xff]
        %v4218 = vld [vmem:[%s468 + $0x140] sm:$0xff]
        %v4219 = vld [vmem:[%s468 + $0x148] sm:$0xff]
        %v4220 = vld [vmem:[%s468 + $0x150] sm:$0xff]
        %v4221 = vld [vmem:[%s468 + $0x158] sm:$0xff]
        %v4222 = vld [vmem:[%s468 + $0x160] sm:$0xff]
        %v4223 = vld [vmem:[%s468 + $0x168] sm:$0xf]
        %v4224 = vld [vmem:[%s468 + $0x16c] sm:$0xff]
        %v4225 = vld [vmem:[%s468 + $0x174] sm:$0xff]
        %v4226 = vld [vmem:[%s468 + $0x17c] sm:$0xff]
        %v4227 = vld [vmem:[%s468 + $0x184] sm:$0xff]
        %v4228 = vld [vmem:[%s468 + $0x18c] sm:$0xff]
        %v4229 = vld [vmem:[%s468 + $0x194] sm:$0xff]
        %v4230 = vld [vmem:[%s468 + $0x19c] sm:$0xf]
        %v4238 = vunpack.c.l.b16 %v4168
        %v4239 = vunpack.c.h.b16 %v4168
        %v4240 = vunpack.c.l.b16 %v4169
        %v4241 = vunpack.c.h.b16 %v4169
        %v4242 = vunpack.c.l.b16 %v4170
        %v4243 = vunpack.c.h.b16 %v4170
        %v4244 = vunpack.c.l.b16 %v4171
        %v4245 = vunpack.c.h.b16 %v4171
        %v4246 = vunpack.c.l.b16 %v4172
        %v4247 = vunpack.c.h.b16 %v4172
        %v4248 = vunpack.c.l.b16 %v4173
        %v4249 = vunpack.c.h.b16 %v4173
        %v4250 = vunpack.c.l.b16 %v4174
        %v4251 = vpack.c.b16 %v4238, %v4238
        %v4252 = vpack.c.b16 %v4239, %v4239
        %v4253 = vpack.c.b16 %v4240, %v4240
        %v4254 = vpack.c.b16 %v4241, %v4241
        %v4255 = vpack.c.b16 %v4242, %v4242
        %v4256 = vpack.c.b16 %v4243, %v4243
        %v4257 = vpack.c.b16 %v4244, %v4244
        %v4258 = vpack.c.b16 %v4245, %v4245
        %v4259 = vpack.c.b16 %v4246, %v4246
        %v4260 = vpack.c.b16 %v4247, %v4247
        %v4261 = vpack.c.b16 %v4248, %v4248
        %v4262 = vpack.c.b16 %v4249, %v4249
        %v4263 = vpack.c.b16 %v4250, %v4250
        %v4332 = vunpack.c.l.b16 %v4175
        %v4333 = vunpack.c.h.b16 %v4175
        %v4334 = vunpack.c.l.b16 %v4176
        %v4335 = vunpack.c.h.b16 %v4176
        %v4336 = vunpack.c.l.b16 %v4177
        %v4337 = vunpack.c.h.b16 %v4177
        %v4338 = vunpack.c.l.b16 %v4178
        %v4339 = vunpack.c.h.b16 %v4178
        %v4340 = vunpack.c.l.b16 %v4179
        %v4341 = vunpack.c.h.b16 %v4179
        %v4342 = vunpack.c.l.b16 %v4180
        %v4343 = vunpack.c.h.b16 %v4180
        %v4344 = vunpack.c.l.b16 %v4181
        %v4345 = vunpack.c.l.b16 %v4182
        %v4346 = vunpack.c.h.b16 %v4182
        %v4347 = vunpack.c.l.b16 %v4183
        %v4348 = vunpack.c.h.b16 %v4183
        %v4349 = vunpack.c.l.b16 %v4184
        %v4350 = vunpack.c.h.b16 %v4184
        %v4351 = vunpack.c.l.b16 %v4185
        %v4352 = vunpack.c.h.b16 %v4185
        %v4353 = vunpack.c.l.b16 %v4186
        %v4354 = vunpack.c.h.b16 %v4186
        %v4355 = vunpack.c.l.b16 %v4187
        %v4356 = vunpack.c.h.b16 %v4187
        %v4357 = vunpack.c.l.b16 %v4188
        %v4358 = vunpack.c.l.b16 %v4189
        %v4359 = vunpack.c.h.b16 %v4189
        %v4360 = vunpack.c.l.b16 %v4190
        %v4361 = vunpack.c.h.b16 %v4190
        %v4362 = vunpack.c.l.b16 %v4191
        %v4363 = vunpack.c.h.b16 %v4191
        %v4364 = vunpack.c.l.b16 %v4192
        %v4365 = vunpack.c.h.b16 %v4192
        %v4366 = vunpack.c.l.b16 %v4193
        %v4367 = vunpack.c.h.b16 %v4193
        %v4368 = vunpack.c.l.b16 %v4194
        %v4369 = vunpack.c.h.b16 %v4194
        %v4370 = vunpack.c.l.b16 %v4195
        %v4371 = vunpack.c.l.b16 %v4196
        %v4372 = vunpack.c.h.b16 %v4196
        %v4373 = vunpack.c.l.b16 %v4197
        %v4374 = vunpack.c.h.b16 %v4197
        %v4375 = vunpack.c.l.b16 %v4198
        %v4376 = vunpack.c.h.b16 %v4198
        %v4377 = vunpack.c.l.b16 %v4199
        %v4378 = vunpack.c.h.b16 %v4199
        %v4379 = vunpack.c.l.b16 %v4200
        %v4380 = vunpack.c.h.b16 %v4200
        %v4381 = vunpack.c.l.b16 %v4201
        %v4382 = vunpack.c.h.b16 %v4201
        %v4383 = vunpack.c.l.b16 %v4202
        %v4384 = vunpack.c.l.b16 %v4203
        %v4385 = vunpack.c.h.b16 %v4203
        %v4386 = vunpack.c.l.b16 %v4204
        %v4387 = vunpack.c.h.b16 %v4204
        %v4388 = vunpack.c.l.b16 %v4205
        %v4389 = vunpack.c.h.b16 %v4205
        %v4390 = vunpack.c.l.b16 %v4206
        %v4391 = vunpack.c.h.b16 %v4206
        %v4392 = vunpack.c.l.b16 %v4207
        %v4393 = vunpack.c.h.b16 %v4207
        %v4394 = vunpack.c.l.b16 %v4208
        %v4395 = vunpack.c.h.b16 %v4208
        %v4396 = vunpack.c.l.b16 %v4209
        %v4397 = vunpack.c.l.b16 %v4210
        %v4398 = vunpack.c.h.b16 %v4210
        %v4399 = vunpack.c.l.b16 %v4211
        %v4400 = vunpack.c.h.b16 %v4211
        %v4401 = vunpack.c.l.b16 %v4212
        %v4402 = vunpack.c.h.b16 %v4212
        %v4403 = vunpack.c.l.b16 %v4213
        %v4404 = vunpack.c.h.b16 %v4213
        %v4405 = vunpack.c.l.b16 %v4214
        %v4406 = vunpack.c.h.b16 %v4214
        %v4407 = vunpack.c.l.b16 %v4215
        %v4408 = vunpack.c.h.b16 %v4215
        %v4409 = vunpack.c.l.b16 %v4216
        %v4410 = vunpack.c.l.b16 %v4217
        %v4411 = vunpack.c.h.b16 %v4217
        %v4412 = vunpack.c.l.b16 %v4218
        %v4413 = vunpack.c.h.b16 %v4218
        %v4414 = vunpack.c.l.b16 %v4219
        %v4415 = vunpack.c.h.b16 %v4219
        %v4416 = vunpack.c.l.b16 %v4220
        %v4417 = vunpack.c.h.b16 %v4220
        %v4418 = vunpack.c.l.b16 %v4221
        %v4419 = vunpack.c.h.b16 %v4221
        %v4420 = vunpack.c.l.b16 %v4222
        %v4421 = vunpack.c.h.b16 %v4222
        %v4422 = vunpack.c.l.b16 %v4223
        %v4423 = vunpack.c.l.b16 %v4224
        %v4424 = vunpack.c.h.b16 %v4224
        %v4425 = vunpack.c.l.b16 %v4225
        %v4426 = vunpack.c.h.b16 %v4225
        %v4427 = vunpack.c.l.b16 %v4226
        %v4428 = vunpack.c.h.b16 %v4226
        %v4429 = vunpack.c.l.b16 %v4227
        %v4430 = vunpack.c.h.b16 %v4227
        %v4431 = vunpack.c.l.b16 %v4228
        %v4432 = vunpack.c.h.b16 %v4228
        %v4433 = vunpack.c.l.b16 %v4229
        %v4434 = vunpack.c.h.b16 %v4229
        %v4435 = vunpack.c.l.b16 %v4230
        %v4436 = vpack.c.b16 %v4345, %v4332
        %v4437 = vpack.c.b16 %v4346, %v4333
        %v4438 = vpack.c.b16 %v4347, %v4334
        %v4439 = vpack.c.b16 %v4348, %v4335
        %v4440 = vpack.c.b16 %v4349, %v4336
        %v4441 = vpack.c.b16 %v4350, %v4337
        %v4442 = vpack.c.b16 %v4351, %v4338
        %v4443 = vpack.c.b16 %v4352, %v4339
        %v4444 = vpack.c.b16 %v4353, %v4340
        %v4445 = vpack.c.b16 %v4354, %v4341
        %v4446 = vpack.c.b16 %v4355, %v4342
        %v4447 = vpack.c.b16 %v4356, %v4343
        %v4448 = vpack.c.b16 %v4357, %v4344
        %v4449 = vpack.c.b16 %v4371, %v4358
        %v4450 = vpack.c.b16 %v4372, %v4359
        %v4451 = vpack.c.b16 %v4373, %v4360
        %v4452 = vpack.c.b16 %v4374, %v4361
        %v4453 = vpack.c.b16 %v4375, %v4362
        %v4454 = vpack.c.b16 %v4376, %v4363
        %v4455 = vpack.c.b16 %v4377, %v4364
        %v4456 = vpack.c.b16 %v4378, %v4365
        %v4457 = vpack.c.b16 %v4379, %v4366
        %v4458 = vpack.c.b16 %v4380, %v4367
        %v4459 = vpack.c.b16 %v4381, %v4368
        %v4460 = vpack.c.b16 %v4382, %v4369
        %v4461 = vpack.c.b16 %v4383, %v4370
        %v4462 = vpack.c.b16 %v4397, %v4384
        %v4463 = vpack.c.b16 %v4398, %v4385
        %v4464 = vpack.c.b16 %v4399, %v4386
        %v4465 = vpack.c.b16 %v4400, %v4387
        %v4466 = vpack.c.b16 %v4401, %v4388
        %v4467 = vpack.c.b16 %v4402, %v4389
        %v4468 = vpack.c.b16 %v4403, %v4390
        %v4469 = vpack.c.b16 %v4404, %v4391
        %v4470 = vpack.c.b16 %v4405, %v4392
        %v4471 = vpack.c.b16 %v4406, %v4393
        %v4472 = vpack.c.b16 %v4407, %v4394
        %v4473 = vpack.c.b16 %v4408, %v4395
        %v4474 = vpack.c.b16 %v4409, %v4396
        %v4475 = vpack.c.b16 %v4423, %v4410
        %v4476 = vpack.c.b16 %v4424, %v4411
        %v4477 = vpack.c.b16 %v4425, %v4412
        %v4478 = vpack.c.b16 %v4426, %v4413
        %v4479 = vpack.c.b16 %v4427, %v4414
        %v4480 = vpack.c.b16 %v4428, %v4415
        %v4481 = vpack.c.b16 %v4429, %v4416
        %v4482 = vpack.c.b16 %v4430, %v4417
        %v4483 = vpack.c.b16 %v4431, %v4418
        %v4484 = vpack.c.b16 %v4432, %v4419
        %v4485 = vpack.c.b16 %v4433, %v4420
        %v4486 = vpack.c.b16 %v4434, %v4421
        %v4487 = vpack.c.b16 %v4435, %v4422
        %v4537 = vsel %vm1600, %v4263, 0
        %v4540 = vsel %vm1600, %v4448, 0
        %v4543 = vsel %vm1600, %v4461, 0
        %v4546 = vsel %vm1600, %v4474, 0
        %v4549 = vsel %vm1600, %v4487, 0
        %4551 = vmatprep.subr.bf16.mxu0 0
        %4552 = vmatpush1.bf16.xpose.msra.mxu0 0
        %4553 = vmatprep.subr.bf16.mxu0 0
        %4554 = vmatpush1.bf16.xpose.msra.mxu0 0
        %4555 = vmatprep.subr.bf16.mxu0 0
        %4556 = vmatpush1.bf16.xpose.msra.mxu0 0
        %4557 = vmatprep.subr.bf16.mxu0 0
        %4558 = vmatpush1.bf16.xpose.msra.mxu0 0
        %4559 = vmatprep.subr.bf16.mxu0 %v4476
        %4560 = vmatpush1.bf16.xpose.msra.mxu0 %v4475
        %4561 = vmatprep.subr.bf16.mxu0 %v4463
        %4562 = vmatpush1.bf16.xpose.msra.mxu0 %v4462
        %4563 = vmatprep.subr.bf16.mxu0 %v4450
        %4564 = vmatpush1.bf16.xpose.msra.mxu0 %v4449
        %4565 = vmatprep.subr.bf16.mxu0 %v4437
        %4566 = vmatpush1.bf16.xpose.msra.mxu0 %v4436
        %4567 = vmatprep.subr.bf16.mxu0 0
        %4568 = vmatpush2.bf16.xpose.msra.mxu0 0
        %4569 = vmatprep.subr.bf16.mxu0 0
        %4570 = vmatpush2.bf16.xpose.msra.mxu0 0
        %4571 = vmatprep.subr.bf16.mxu0 0
        %4572 = vmatpush2.bf16.xpose.msra.mxu0 0
        %4573 = vmatprep.subr.bf16.mxu0 0
        %4574 = vmatpush2.bf16.xpose.msra.mxu0 0
        %4575 = vmatprep.subr.bf16.mxu0 0
        %4576 = vmatpush2.bf16.xpose.msra.mxu0 0
        %4577 = vmatprep.subr.bf16.mxu0 0
        %4578 = vmatpush2.bf16.xpose.msra.mxu0 0
        %4579 = vmatprep.subr.bf16.mxu0 0
        %4580 = vmatpush2.bf16.xpose.msra.mxu0 0
        %4581 = vmatprep.subr.bf16.mxu0 0
        %4582 = vmatpush2.bf16.xpose.msra.mxu0 0
        %4583 = vmatprep.mubr.bf16.mxu0 %v4252
        %4584 = vmatmul.mubr.bf16.gmra.mxu0 %v4251
        %v4585 = vpop.f32.mrf.mxu0
        %v4586 = vadd.f32 0.0, %v4585
        %v4587 = vpop.f32.mrf.mxu0
        %v4588 = vpop.f32.mrf.mxu0
        %v4589 = vpop.f32.mrf.mxu0
        %4590 = vdwg.mxu0
        %4591 = vmatprep.subr.bf16.mxu0 0
        %4592 = vmatpush1.bf16.xpose.msra.mxu0 0
        %4593 = vmatprep.subr.bf16.mxu0 0
        %4594 = vmatpush1.bf16.xpose.msra.mxu0 0
        %4595 = vmatprep.subr.bf16.mxu0 0
        %4596 = vmatpush1.bf16.xpose.msra.mxu0 0
        %4597 = vmatprep.subr.bf16.mxu0 0
        %4598 = vmatpush1.bf16.xpose.msra.mxu0 0
        %4599 = vmatprep.subr.bf16.mxu0 %v4478
        %4600 = vmatpush1.bf16.xpose.msra.mxu0 %v4477
        %4601 = vmatprep.subr.bf16.mxu0 %v4465
        %4602 = vmatpush1.bf16.xpose.msra.mxu0 %v4464
        %4603 = vmatprep.subr.bf16.mxu0 %v4452
        %4604 = vmatpush1.bf16.xpose.msra.mxu0 %v4451
        %4605 = vmatprep.subr.bf16.mxu0 %v4439
        %4606 = vmatpush1.bf16.xpose.msra.mxu0 %v4438
        %4607 = vmatprep.subr.bf16.mxu0 0
        %4608 = vmatpush2.bf16.xpose.msra.mxu0 0
        %4609 = vmatprep.subr.bf16.mxu0 0
        %4610 = vmatpush2.bf16.xpose.msra.mxu0 0
        %4611 = vmatprep.subr.bf16.mxu0 0
        %4612 = vmatpush2.bf16.xpose.msra.mxu0 0
        %4613 = vmatprep.subr.bf16.mxu0 0
        %4614 = vmatpush2.bf16.xpose.msra.mxu0 0
        %4615 = vmatprep.subr.bf16.mxu0 0
        %4616 = vmatpush2.bf16.xpose.msra.mxu0 0
        %4617 = vmatprep.subr.bf16.mxu0 0
        %4618 = vmatpush2.bf16.xpose.msra.mxu0 0
        %4619 = vmatprep.subr.bf16.mxu0 0
        %4620 = vmatpush2.bf16.xpose.msra.mxu0 0
        %4621 = vmatprep.subr.bf16.mxu0 0
        %4622 = vmatpush2.bf16.xpose.msra.mxu0 0
        %4623 = vmatprep.mubr.bf16.mxu0 %v4254
        %4624 = vmatmul.mubr.bf16.gmra.mxu0 %v4253
        %v4625 = vpop.f32.mrf.mxu0
        %v4626 = vadd.f32 %v4586, %v4625
        %v4627 = vpop.f32.mrf.mxu0
        %v4628 = vpop.f32.mrf.mxu0
        %v4629 = vpop.f32.mrf.mxu0
        %4630 = vdwg.mxu0
        %4631 = vmatprep.subr.bf16.mxu0 0
        %4632 = vmatpush1.bf16.xpose.msra.mxu0 0
        %4633 = vmatprep.subr.bf16.mxu0 0
        %4634 = vmatpush1.bf16.xpose.msra.mxu0 0
        %4635 = vmatprep.subr.bf16.mxu0 0
        %4636 = vmatpush1.bf16.xpose.msra.mxu0 0
        %4637 = vmatprep.subr.bf16.mxu0 0
        %4638 = vmatpush1.bf16.xpose.msra.mxu0 0
        %4639 = vmatprep.subr.bf16.mxu0 %v4480
        %4640 = vmatpush1.bf16.xpose.msra.mxu0 %v4479
        %4641 = vmatprep.subr.bf16.mxu0 %v4467
        %4642 = vmatpush1.bf16.xpose.msra.mxu0 %v4466
        %4643 = vmatprep.subr.bf16.mxu0 %v4454
        %4644 = vmatpush1.bf16.xpose.msra.mxu0 %v4453
        %4645 = vmatprep.subr.bf16.mxu0 %v4441
        %4646 = vmatpush1.bf16.xpose.msra.mxu0 %v4440
        %4647 = vmatprep.subr.bf16.mxu0 0
        %4648 = vmatpush2.bf16.xpose.msra.mxu0 0
        %4649 = vmatprep.subr.bf16.mxu0 0
        %4650 = vmatpush2.bf16.xpose.msra.mxu0 0
        %4651 = vmatprep.subr.bf16.mxu0 0
        %4652 = vmatpush2.bf16.xpose.msra.mxu0 0
        %4653 = vmatprep.subr.bf16.mxu0 0
        %4654 = vmatpush2.bf16.xpose.msra.mxu0 0
        %4655 = vmatprep.subr.bf16.mxu0 0
        %4656 = vmatpush2.bf16.xpose.msra.mxu0 0
        %4657 = vmatprep.subr.bf16.mxu0 0
        %4658 = vmatpush2.bf16.xpose.msra.mxu0 0
        %4659 = vmatprep.subr.bf16.mxu0 0
        %4660 = vmatpush2.bf16.xpose.msra.mxu0 0
        %4661 = vmatprep.subr.bf16.mxu0 0
        %4662 = vmatpush2.bf16.xpose.msra.mxu0 0
        %4663 = vmatprep.mubr.bf16.mxu0 %v4256
        %4664 = vmatmul.mubr.bf16.gmra.mxu0 %v4255
        %v4665 = vpop.f32.mrf.mxu0
        %v4666 = vadd.f32 %v4626, %v4665
        %v4667 = vpop.f32.mrf.mxu0
        %v4668 = vpop.f32.mrf.mxu0
        %v4669 = vpop.f32.mrf.mxu0
        %4670 = vdwg.mxu0
        %4671 = vmatprep.subr.bf16.mxu0 0
        %4672 = vmatpush1.bf16.xpose.msra.mxu0 0
        %4673 = vmatprep.subr.bf16.mxu0 0
        %4674 = vmatpush1.bf16.xpose.msra.mxu0 0
        %4675 = vmatprep.subr.bf16.mxu0 0
        %4676 = vmatpush1.bf16.xpose.msra.mxu0 0
        %4677 = vmatprep.subr.bf16.mxu0 0
        %4678 = vmatpush1.bf16.xpose.msra.mxu0 0
        %4679 = vmatprep.subr.bf16.mxu0 %v4482
        %4680 = vmatpush1.bf16.xpose.msra.mxu0 %v4481
        %4681 = vmatprep.subr.bf16.mxu0 %v4469
        %4682 = vmatpush1.bf16.xpose.msra.mxu0 %v4468
        %4683 = vmatprep.subr.bf16.mxu0 %v4456
        %4684 = vmatpush1.bf16.xpose.msra.mxu0 %v4455
        %4685 = vmatprep.subr.bf16.mxu0 %v4443
        %4686 = vmatpush1.bf16.xpose.msra.mxu0 %v4442
        %4687 = vmatprep.subr.bf16.mxu0 0
        %4688 = vmatpush2.bf16.xpose.msra.mxu0 0
        %4689 = vmatprep.subr.bf16.mxu0 0
        %4690 = vmatpush2.bf16.xpose.msra.mxu0 0
        %4691 = vmatprep.subr.bf16.mxu0 0
        %4692 = vmatpush2.bf16.xpose.msra.mxu0 0
        %4693 = vmatprep.subr.bf16.mxu0 0
        %4694 = vmatpush2.bf16.xpose.msra.mxu0 0
        %4695 = vmatprep.subr.bf16.mxu0 0
        %4696 = vmatpush2.bf16.xpose.msra.mxu0 0
        %4697 = vmatprep.subr.bf16.mxu0 0
        %4698 = vmatpush2.bf16.xpose.msra.mxu0 0
        %4699 = vmatprep.subr.bf16.mxu0 0
        %4700 = vmatpush2.bf16.xpose.msra.mxu0 0
        %4701 = vmatprep.subr.bf16.mxu0 0
        %4702 = vmatpush2.bf16.xpose.msra.mxu0 0
        %4703 = vmatprep.mubr.bf16.mxu0 %v4258
        %4704 = vmatmul.mubr.bf16.gmra.mxu0 %v4257
        %v4705 = vpop.f32.mrf.mxu0
        %v4706 = vadd.f32 %v4666, %v4705
        %v4707 = vpop.f32.mrf.mxu0
        %v4708 = vpop.f32.mrf.mxu0
        %v4709 = vpop.f32.mrf.mxu0
        %4710 = vdwg.mxu0
        %4711 = vmatprep.subr.bf16.mxu0 0
        %4712 = vmatpush1.bf16.xpose.msra.mxu0 0
        %4713 = vmatprep.subr.bf16.mxu0 0
        %4714 = vmatpush1.bf16.xpose.msra.mxu0 0
        %4715 = vmatprep.subr.bf16.mxu0 0
        %4716 = vmatpush1.bf16.xpose.msra.mxu0 0
        %4717 = vmatprep.subr.bf16.mxu0 0
        %4718 = vmatpush1.bf16.xpose.msra.mxu0 0
        %4719 = vmatprep.subr.bf16.mxu0 %v4484
        %4720 = vmatpush1.bf16.xpose.msra.mxu0 %v4483
        %4721 = vmatprep.subr.bf16.mxu0 %v4471
        %4722 = vmatpush1.bf16.xpose.msra.mxu0 %v4470
        %4723 = vmatprep.subr.bf16.mxu0 %v4458
        %4724 = vmatpush1.bf16.xpose.msra.mxu0 %v4457
        %4725 = vmatprep.subr.bf16.mxu0 %v4445
        %4726 = vmatpush1.bf16.xpose.msra.mxu0 %v4444
        %4727 = vmatprep.subr.bf16.mxu0 0
        %4728 = vmatpush2.bf16.xpose.msra.mxu0 0
        %4729 = vmatprep.subr.bf16.mxu0 0
        %4730 = vmatpush2.bf16.xpose.msra.mxu0 0
        %4731 = vmatprep.subr.bf16.mxu0 0
        %4732 = vmatpush2.bf16.xpose.msra.mxu0 0
        %4733 = vmatprep.subr.bf16.mxu0 0
        %4734 = vmatpush2.bf16.xpose.msra.mxu0 0
        %4735 = vmatprep.subr.bf16.mxu0 0
        %4736 = vmatpush2.bf16.xpose.msra.mxu0 0
        %4737 = vmatprep.subr.bf16.mxu0 0
        %4738 = vmatpush2.bf16.xpose.msra.mxu0 0
        %4739 = vmatprep.subr.bf16.mxu0 0
        %4740 = vmatpush2.bf16.xpose.msra.mxu0 0
        %4741 = vmatprep.subr.bf16.mxu0 0
        %4742 = vmatpush2.bf16.xpose.msra.mxu0 0
        %4743 = vmatprep.mubr.bf16.mxu0 %v4260
        %4744 = vmatmul.mubr.bf16.gmra.mxu0 %v4259
        %v4745 = vpop.f32.mrf.mxu0
        %v4746 = vadd.f32 %v4706, %v4745
        %v4747 = vpop.f32.mrf.mxu0
        %v4748 = vpop.f32.mrf.mxu0
        %v4749 = vpop.f32.mrf.mxu0
        %4750 = vdwg.mxu0
        %4751 = vmatprep.subr.bf16.mxu0 0
        %4752 = vmatpush1.bf16.xpose.msra.mxu0 0
        %4753 = vmatprep.subr.bf16.mxu0 0
        %4754 = vmatpush1.bf16.xpose.msra.mxu0 0
        %4755 = vmatprep.subr.bf16.mxu0 0
        %4756 = vmatpush1.bf16.xpose.msra.mxu0 0
        %4757 = vmatprep.subr.bf16.mxu0 0
        %4758 = vmatpush1.bf16.xpose.msra.mxu0 0
        %4759 = vmatprep.subr.bf16.mxu0 %v4486
        %4760 = vmatpush1.bf16.xpose.msra.mxu0 %v4485
        %4761 = vmatprep.subr.bf16.mxu0 %v4473
        %4762 = vmatpush1.bf16.xpose.msra.mxu0 %v4472
        %4763 = vmatprep.subr.bf16.mxu0 %v4460
        %4764 = vmatpush1.bf16.xpose.msra.mxu0 %v4459
        %4765 = vmatprep.subr.bf16.mxu0 %v4447
        %4766 = vmatpush1.bf16.xpose.msra.mxu0 %v4446
        %4767 = vmatprep.subr.bf16.mxu0 0
        %4768 = vmatpush2.bf16.xpose.msra.mxu0 0
        %4769 = vmatprep.subr.bf16.mxu0 0
        %4770 = vmatpush2.bf16.xpose.msra.mxu0 0
        %4771 = vmatprep.subr.bf16.mxu0 0
        %4772 = vmatpush2.bf16.xpose.msra.mxu0 0
        %4773 = vmatprep.subr.bf16.mxu0 0
        %4774 = vmatpush2.bf16.xpose.msra.mxu0 0
        %4775 = vmatprep.subr.bf16.mxu0 0
        %4776 = vmatpush2.bf16.xpose.msra.mxu0 0
        %4777 = vmatprep.subr.bf16.mxu0 0
        %4778 = vmatpush2.bf16.xpose.msra.mxu0 0
        %4779 = vmatprep.subr.bf16.mxu0 0
        %4780 = vmatpush2.bf16.xpose.msra.mxu0 0
        %4781 = vmatprep.subr.bf16.mxu0 0
        %4782 = vmatpush2.bf16.xpose.msra.mxu0 0
        %4783 = vmatprep.mubr.bf16.mxu0 %v4262
        %4784 = vmatmul.mubr.bf16.gmra.mxu0 %v4261
        %v4785 = vpop.f32.mrf.mxu0
        %v4786 = vadd.f32 %v4746, %v4785
        %v4787 = vpop.f32.mrf.mxu0
        %v4788 = vpop.f32.mrf.mxu0
        %v4789 = vpop.f32.mrf.mxu0
        %4790 = vdwg.mxu0
        %4791 = vmatprep.subr.bf16.mxu0 0
        %4792 = vmatpush1.bf16.xpose.msra.mxu0 0
        %4793 = vmatprep.subr.bf16.mxu0 0
        %4794 = vmatpush1.bf16.xpose.msra.mxu0 0
        %4795 = vmatprep.subr.bf16.mxu0 0
        %4796 = vmatpush1.bf16.xpose.msra.mxu0 0
        %4797 = vmatprep.subr.bf16.mxu0 0
        %4798 = vmatpush1.bf16.xpose.msra.mxu0 0
        %4799 = vmatprep.subr.bf16.mxu0 0
        %4800 = vmatpush1.bf16.xpose.msra.mxu0 %v4549
        %4801 = vmatprep.subr.bf16.mxu0 0
        %4802 = vmatpush1.bf16.xpose.msra.mxu0 %v4546
        %4803 = vmatprep.subr.bf16.mxu0 0
        %4804 = vmatpush1.bf16.xpose.msra.mxu0 %v4543
        %4805 = vmatprep.subr.bf16.mxu0 0
        %4806 = vmatpush1.bf16.xpose.msra.mxu0 %v4540
        %4807 = vmatprep.subr.bf16.mxu0 0
        %4808 = vmatpush2.bf16.xpose.msra.mxu0 0
        %4809 = vmatprep.subr.bf16.mxu0 0
        %4810 = vmatpush2.bf16.xpose.msra.mxu0 0
        %4811 = vmatprep.subr.bf16.mxu0 0
        %4812 = vmatpush2.bf16.xpose.msra.mxu0 0
        %4813 = vmatprep.subr.bf16.mxu0 0
        %4814 = vmatpush2.bf16.xpose.msra.mxu0 0
        %4815 = vmatprep.subr.bf16.mxu0 0
        %4816 = vmatpush2.bf16.xpose.msra.mxu0 0
        %4817 = vmatprep.subr.bf16.mxu0 0
        %4818 = vmatpush2.bf16.xpose.msra.mxu0 0
        %4819 = vmatprep.subr.bf16.mxu0 0
        %4820 = vmatpush2.bf16.xpose.msra.mxu0 0
        %4821 = vmatprep.subr.bf16.mxu0 0
        %4822 = vmatpush2.bf16.xpose.msra.mxu0 0
        %4823 = vmatprep.mubr.bf16.mxu0 0
        %4824 = vmatmul.mubr.bf16.gmra.mxu0 %v4537
        %v4825 = vpop.f32.mrf.mxu0
        %v4826 = vadd.f32 %v4786, %v4825
        %v4827 = vpop.f32.mrf.mxu0
        %v4828 = vpop.f32.mrf.mxu0
        %v4829 = vpop.f32.mrf.mxu0
        %4830 = vdwg.mxu0
        loop: start=0, step=1, limit=64
        $region100: #{simple_cnn_sigmoid_forward.1} parent=59 // loop_pre_header
          _
        $region101: #{simple_cnn_sigmoid_forward.1} parent=59 // loop_header
          %s4832 = sphi 0, %s4836
          %p4833 = scmp.ge.s32.totalorder %s4832, 64
          %v4837 = vphi %v4826, %v5067
        $region102: #{simple_cnn_sigmoid_forward.1} parent=59 // loop_header_branch
          %4835 = sbr.rel (%p4833) target = $region106
        $region103: #{simple_cnn_sigmoid_forward.1} parent=59 // loop_body
          %s4838 = smul.u32 %s4832, 2
          %s4839 = scalar_lea.vmem [#allocation2], %s4838
          %v4840 = vld [vmem:[%s4839] sm:$0xff]
          %v4841 = vld [vmem:[%s4839 + $0x8] sm:$0xff]
          %v4842 = vld [vmem:[%s4839 + $0x10] sm:$0xff]
          %v4843 = vld [vmem:[%s4839 + $0x18] sm:$0xff]
          %v4844 = vld [vmem:[%s4839 + $0x20] sm:$0xff]
          %v4845 = vld [vmem:[%s4839 + $0x28] sm:$0xff]
          %v4846 = vld [vmem:[%s4839 + $0x30] sm:$0xff]
          %v4847 = vld [vmem:[%s4839 + $0x38] sm:$0xff]
          %v4848 = vpack.c.bf16 %v4841, %v4840
          %v4849 = vpack.c.bf16 %v4843, %v4842
          %v4850 = vpack.c.bf16 %v4845, %v4844
          %v4851 = vpack.c.bf16 %v4847, %v4846
          %s4852 = scalar_lea.vmem [#allocation3], %s4838
          %v4853 = vld [vmem:[%s4852] sm:$0xff]
          %v4854 = vld [vmem:[%s4852 + $0x8] sm:$0xff]
          %v4855 = vld [vmem:[%s4852 + $0x10] sm:$0xff]
          %v4856 = vld [vmem:[%s4852 + $0x18] sm:$0xff]
          %v4857 = vld [vmem:[%s4852 + $0x20] sm:$0xff]
          %v4858 = vld [vmem:[%s4852 + $0x28] sm:$0xff]
          %v4859 = vld [vmem:[%s4852 + $0x30] sm:$0xff]
          %v4860 = vld [vmem:[%s4852 + $0x38] sm:$0xff]
          %v4861 = vpack.c.bf16 %v4854, %v4853
          %v4862 = vpack.c.bf16 %v4856, %v4855
          %v4863 = vpack.c.bf16 %v4858, %v4857
          %v4864 = vpack.c.bf16 %v4860, %v4859
          %s4865 = smul.addr %s4838, 4
          %s4866 = scalar_lea.vmem [#allocation15], %s4865
          %v4867 = vld [vmem:[%s4866] sm:$0xf]
          %4868 = vmatprep.subr.bf16.mxu0 0
          %4869 = vmatpush1.bf16.xpose.msra.mxu0 0
          %4870 = vmatprep.subr.bf16.mxu0 0
          %4871 = vmatpush1.bf16.xpose.msra.mxu0 0
          %4872 = vmatprep.subr.bf16.mxu0 0
          %4873 = vmatpush1.bf16.xpose.msra.mxu0 0
          %4874 = vmatprep.subr.bf16.mxu0 0
          %4875 = vmatpush1.bf16.xpose.msra.mxu0 0
          %4876 = vmatprep.subr.bf16.mxu0 0
          %4877 = vmatpush1.bf16.xpose.msra.mxu0 %v4851
          %4878 = vmatprep.subr.bf16.mxu0 0
          %4879 = vmatpush1.bf16.xpose.msra.mxu0 %v4850
          %4880 = vmatprep.subr.bf16.mxu0 0
          %4881 = vmatpush1.bf16.xpose.msra.mxu0 %v4849
          %4882 = vmatprep.subr.bf16.mxu0 0
          %4883 = vmatpush1.bf16.xpose.msra.mxu0 %v4848
          %4884 = vmatprep.subr.bf16.mxu0 0
          %4885 = vmatpush2.bf16.xpose.msra.mxu0 0
          %4886 = vmatprep.subr.bf16.mxu0 0
          %4887 = vmatpush2.bf16.xpose.msra.mxu0 0
          %4888 = vmatprep.subr.bf16.mxu0 0
          %4889 = vmatpush2.bf16.xpose.msra.mxu0 0
          %4890 = vmatprep.subr.bf16.mxu0 0
          %4891 = vmatpush2.bf16.xpose.msra.mxu0 0
          %4892 = vmatprep.subr.bf16.mxu0 0
          %4893 = vmatpush2.bf16.xpose.msra.mxu0 0
          %4894 = vmatprep.subr.bf16.mxu0 0
          %4895 = vmatpush2.bf16.xpose.msra.mxu0 0
          %4896 = vmatprep.subr.bf16.mxu0 0
          %4897 = vmatpush2.bf16.xpose.msra.mxu0 0
          %4898 = vmatprep.subr.bf16.mxu0 0
          %4899 = vmatpush2.bf16.xpose.msra.mxu0 0
          %4900 = vmatprep.mubr.bf16.mxu0 0
          %4901 = vmatmul.mubr.bf16.gmra.mxu0 %v4867
          %v4902 = vpop.f32.mrf.mxu0
          %v4903 = vadd.f32 0.0, %v4902
          %v4904 = vpop.f32.mrf.mxu0
          %v4905 = vpop.f32.mrf.mxu0
          %v4906 = vpop.f32.mrf.mxu0
          %4907 = vdwg.mxu0
          %v4908 = vadd.f32 %v4837, %v4903
          %s4909 = smul.addr %s4838, 4
          %s4910 = scalar_lea.vmem [#allocation16], %s4909
          %v4911 = vld [vmem:[%s4910] sm:$0xf]
          %4912 = vmatprep.subr.bf16.mxu0 0
          %4913 = vmatpush1.bf16.xpose.msra.mxu0 0
          %4914 = vmatprep.subr.bf16.mxu0 0
          %4915 = vmatpush1.bf16.xpose.msra.mxu0 0
          %4916 = vmatprep.subr.bf16.mxu0 0
          %4917 = vmatpush1.bf16.xpose.msra.mxu0 0
          %4918 = vmatprep.subr.bf16.mxu0 0
          %4919 = vmatpush1.bf16.xpose.msra.mxu0 0
          %4920 = vmatprep.subr.bf16.mxu0 0
          %4921 = vmatpush1.bf16.xpose.msra.mxu0 %v4864
          %4922 = vmatprep.subr.bf16.mxu0 0
          %4923 = vmatpush1.bf16.xpose.msra.mxu0 %v4863
          %4924 = vmatprep.subr.bf16.mxu0 0
          %4925 = vmatpush1.bf16.xpose.msra.mxu0 %v4862
          %4926 = vmatprep.subr.bf16.mxu0 0
          %4927 = vmatpush1.bf16.xpose.msra.mxu0 %v4861
          %4928 = vmatprep.subr.bf16.mxu0 0
          %4929 = vmatpush2.bf16.xpose.msra.mxu0 0
          %4930 = vmatprep.subr.bf16.mxu0 0
          %4931 = vmatpush2.bf16.xpose.msra.mxu0 0
          %4932 = vmatprep.subr.bf16.mxu0 0
          %4933 = vmatpush2.bf16.xpose.msra.mxu0 0
          %4934 = vmatprep.subr.bf16.mxu0 0
          %4935 = vmatpush2.bf16.xpose.msra.mxu0 0
          %4936 = vmatprep.subr.bf16.mxu0 0
          %4937 = vmatpush2.bf16.xpose.msra.mxu0 0
          %4938 = vmatprep.subr.bf16.mxu0 0
          %4939 = vmatpush2.bf16.xpose.msra.mxu0 0
          %4940 = vmatprep.subr.bf16.mxu0 0
          %4941 = vmatpush2.bf16.xpose.msra.mxu0 0
          %4942 = vmatprep.subr.bf16.mxu0 0
          %4943 = vmatpush2.bf16.xpose.msra.mxu0 0
          %4944 = vmatprep.mubr.bf16.mxu0 0
          %4945 = vmatmul.mubr.bf16.gmra.mxu0 %v4911
          %v4946 = vpop.f32.mrf.mxu0
          %v4947 = vadd.f32 0.0, %v4946
          %v4948 = vpop.f32.mrf.mxu0
          %v4949 = vpop.f32.mrf.mxu0
          %v4950 = vpop.f32.mrf.mxu0
          %4951 = vdwg.mxu0
          %v4952 = vadd.f32 %v4908, %v4947
          %s4953 = sadd.s32 %s4838, 1
          %s4954 = scalar_lea.vmem [#allocation2], %s4953
          %v4955 = vld [vmem:[%s4954] sm:$0xff]
          %v4956 = vld [vmem:[%s4954 + $0x8] sm:$0xff]
          %v4957 = vld [vmem:[%s4954 + $0x10] sm:$0xff]
          %v4958 = vld [vmem:[%s4954 + $0x18] sm:$0xff]
          %v4959 = vld [vmem:[%s4954 + $0x20] sm:$0xff]
          %v4960 = vld [vmem:[%s4954 + $0x28] sm:$0xff]
          %v4961 = vld [vmem:[%s4954 + $0x30] sm:$0xff]
          %v4962 = vld [vmem:[%s4954 + $0x38] sm:$0xff]
          %v4963 = vpack.c.bf16 %v4956, %v4955
          %v4964 = vpack.c.bf16 %v4958, %v4957
          %v4965 = vpack.c.bf16 %v4960, %v4959
          %v4966 = vpack.c.bf16 %v4962, %v4961
          %s4967 = scalar_lea.vmem [#allocation3], %s4953
          %v4968 = vld [vmem:[%s4967] sm:$0xff]
          %v4969 = vld [vmem:[%s4967 + $0x8] sm:$0xff]
          %v4970 = vld [vmem:[%s4967 + $0x10] sm:$0xff]
          %v4971 = vld [vmem:[%s4967 + $0x18] sm:$0xff]
          %v4972 = vld [vmem:[%s4967 + $0x20] sm:$0xff]
          %v4973 = vld [vmem:[%s4967 + $0x28] sm:$0xff]
          %v4974 = vld [vmem:[%s4967 + $0x30] sm:$0xff]
          %v4975 = vld [vmem:[%s4967 + $0x38] sm:$0xff]
          %v4976 = vpack.c.bf16 %v4969, %v4968
          %v4977 = vpack.c.bf16 %v4971, %v4970
          %v4978 = vpack.c.bf16 %v4973, %v4972
          %v4979 = vpack.c.bf16 %v4975, %v4974
          %s4980 = smul.addr %s4953, 4
          %s4981 = scalar_lea.vmem [#allocation15], %s4980
          %v4982 = vld [vmem:[%s4981] sm:$0xf]
          %4983 = vmatprep.subr.bf16.mxu0 0
          %4984 = vmatpush1.bf16.xpose.msra.mxu0 0
          %4985 = vmatprep.subr.bf16.mxu0 0
          %4986 = vmatpush1.bf16.xpose.msra.mxu0 0
          %4987 = vmatprep.subr.bf16.mxu0 0
          %4988 = vmatpush1.bf16.xpose.msra.mxu0 0
          %4989 = vmatprep.subr.bf16.mxu0 0
          %4990 = vmatpush1.bf16.xpose.msra.mxu0 0
          %4991 = vmatprep.subr.bf16.mxu0 0
          %4992 = vmatpush1.bf16.xpose.msra.mxu0 %v4966
          %4993 = vmatprep.subr.bf16.mxu0 0
          %4994 = vmatpush1.bf16.xpose.msra.mxu0 %v4965
          %4995 = vmatprep.subr.bf16.mxu0 0
          %4996 = vmatpush1.bf16.xpose.msra.mxu0 %v4964
          %4997 = vmatprep.subr.bf16.mxu0 0
          %4998 = vmatpush1.bf16.xpose.msra.mxu0 %v4963
          %4999 = vmatprep.subr.bf16.mxu0 0
          %5000 = vmatpush2.bf16.xpose.msra.mxu0 0
          %5001 = vmatprep.subr.bf16.mxu0 0
          %5002 = vmatpush2.bf16.xpose.msra.mxu0 0
          %5003 = vmatprep.subr.bf16.mxu0 0
          %5004 = vmatpush2.bf16.xpose.msra.mxu0 0
          %5005 = vmatprep.subr.bf16.mxu0 0
          %5006 = vmatpush2.bf16.xpose.msra.mxu0 0
          %5007 = vmatprep.subr.bf16.mxu0 0
          %5008 = vmatpush2.bf16.xpose.msra.mxu0 0
          %5009 = vmatprep.subr.bf16.mxu0 0
          %5010 = vmatpush2.bf16.xpose.msra.mxu0 0
          %5011 = vmatprep.subr.bf16.mxu0 0
          %5012 = vmatpush2.bf16.xpose.msra.mxu0 0
          %5013 = vmatprep.subr.bf16.mxu0 0
          %5014 = vmatpush2.bf16.xpose.msra.mxu0 0
          %5015 = vmatprep.mubr.bf16.mxu0 0
          %5016 = vmatmul.mubr.bf16.gmra.mxu0 %v4982
          %v5017 = vpop.f32.mrf.mxu0
          %v5018 = vadd.f32 0.0, %v5017
          %v5019 = vpop.f32.mrf.mxu0
          %v5020 = vpop.f32.mrf.mxu0
          %v5021 = vpop.f32.mrf.mxu0
          %5022 = vdwg.mxu0
          %v5023 = vadd.f32 %v4952, %v5018
          %s5024 = smul.addr %s4953, 4
          %s5025 = scalar_lea.vmem [#allocation16], %s5024
          %v5026 = vld [vmem:[%s5025] sm:$0xf]
          %5027 = vmatprep.subr.bf16.mxu0 0
          %5028 = vmatpush1.bf16.xpose.msra.mxu0 0
          %5029 = vmatprep.subr.bf16.mxu0 0
          %5030 = vmatpush1.bf16.xpose.msra.mxu0 0
          %5031 = vmatprep.subr.bf16.mxu0 0
          %5032 = vmatpush1.bf16.xpose.msra.mxu0 0
          %5033 = vmatprep.subr.bf16.mxu0 0
          %5034 = vmatpush1.bf16.xpose.msra.mxu0 0
          %5035 = vmatprep.subr.bf16.mxu0 0
          %5036 = vmatpush1.bf16.xpose.msra.mxu0 %v4979
          %5037 = vmatprep.subr.bf16.mxu0 0
          %5038 = vmatpush1.bf16.xpose.msra.mxu0 %v4978
          %5039 = vmatprep.subr.bf16.mxu0 0
          %5040 = vmatpush1.bf16.xpose.msra.mxu0 %v4977
          %5041 = vmatprep.subr.bf16.mxu0 0
          %5042 = vmatpush1.bf16.xpose.msra.mxu0 %v4976
          %5043 = vmatprep.subr.bf16.mxu0 0
          %5044 = vmatpush2.bf16.xpose.msra.mxu0 0
          %5045 = vmatprep.subr.bf16.mxu0 0
          %5046 = vmatpush2.bf16.xpose.msra.mxu0 0
          %5047 = vmatprep.subr.bf16.mxu0 0
          %5048 = vmatpush2.bf16.xpose.msra.mxu0 0
          %5049 = vmatprep.subr.bf16.mxu0 0
          %5050 = vmatpush2.bf16.xpose.msra.mxu0 0
          %5051 = vmatprep.subr.bf16.mxu0 0
          %5052 = vmatpush2.bf16.xpose.msra.mxu0 0
          %5053 = vmatprep.subr.bf16.mxu0 0
          %5054 = vmatpush2.bf16.xpose.msra.mxu0 0
          %5055 = vmatprep.subr.bf16.mxu0 0
          %5056 = vmatpush2.bf16.xpose.msra.mxu0 0
          %5057 = vmatprep.subr.bf16.mxu0 0
          %5058 = vmatpush2.bf16.xpose.msra.mxu0 0
          %5059 = vmatprep.mubr.bf16.mxu0 0
          %5060 = vmatmul.mubr.bf16.gmra.mxu0 %v5026
          %v5061 = vpop.f32.mrf.mxu0
          %v5062 = vadd.f32 0.0, %v5061
          %v5063 = vpop.f32.mrf.mxu0
          %v5064 = vpop.f32.mrf.mxu0
          %v5065 = vpop.f32.mrf.mxu0
          %5066 = vdwg.mxu0
          %v5067 = vadd.f32 %v5023, %v5062
        $region104: #{simple_cnn_sigmoid_forward.1} parent=59 // loop_footer
          %s4836 = sadd.s32 1, %s4832
        $region105: #{simple_cnn_sigmoid_forward.1} parent=59 // loop_footer_branch
          %4831 = sbr.rel target = $region101
        $region106: #{simple_cnn_sigmoid_forward.1} parent=59 // loop_exit
          _
        %v5068 = vld [vmem:[#allocation2 + $0x80] sm:$0xff]
        %v5069 = vld [vmem:[#allocation2 + $0x88] sm:$0xff]
        %v5070 = vld [vmem:[#allocation2 + $0x90] sm:$0xff]
        %v5071 = vld [vmem:[#allocation2 + $0x98] sm:$0xff]
        %v5072 = vld [vmem:[#allocation2 + $0xa0] sm:$0xff]
        %v5073 = vld [vmem:[#allocation2 + $0xa8] sm:$0xff]
        %v5074 = vld [vmem:[#allocation2 + $0xb0] sm:$0xff]
        %v5075 = vld [vmem:[#allocation2 + $0xb8] sm:$0xff]
        %v5076 = vpack.c.bf16 %v5069, %v5068
        %v5077 = vpack.c.bf16 %v5071, %v5070
        %v5078 = vpack.c.bf16 %v5073, %v5072
        %v5079 = vpack.c.bf16 %v5075, %v5074
        %v5080 = vld [vmem:[#allocation3 + $0x80] sm:$0xff]
        %v5081 = vld [vmem:[#allocation3 + $0x88] sm:$0xff]
        %v5082 = vld [vmem:[#allocation3 + $0x90] sm:$0xff]
        %v5083 = vld [vmem:[#allocation3 + $0x98] sm:$0xff]
        %v5084 = vld [vmem:[#allocation3 + $0xa0] sm:$0xff]
        %v5085 = vld [vmem:[#allocation3 + $0xa8] sm:$0xff]
        %v5086 = vld [vmem:[#allocation3 + $0xb0] sm:$0xff]
        %v5087 = vld [vmem:[#allocation3 + $0xb8] sm:$0xff]
        %v5088 = vpack.c.bf16 %v5081, %v5080
        %v5089 = vpack.c.bf16 %v5083, %v5082
        %v5090 = vpack.c.bf16 %v5085, %v5084
        %v5091 = vpack.c.bf16 %v5087, %v5086
        %s5092 = scalar_lea.vmem [#allocation15], 512
        %v5093 = vld [vmem:[%s5092] sm:$0xf]
        %5094 = vmatprep.subr.bf16.mxu0 0
        %5095 = vmatpush1.bf16.xpose.msra.mxu0 0
        %5096 = vmatprep.subr.bf16.mxu0 0
        %5097 = vmatpush1.bf16.xpose.msra.mxu0 0
        %5098 = vmatprep.subr.bf16.mxu0 0
        %5099 = vmatpush1.bf16.xpose.msra.mxu0 0
        %5100 = vmatprep.subr.bf16.mxu0 0
        %5101 = vmatpush1.bf16.xpose.msra.mxu0 0
        %5102 = vmatprep.subr.bf16.mxu0 0
        %5103 = vmatpush1.bf16.xpose.msra.mxu0 %v5079
        %5104 = vmatprep.subr.bf16.mxu0 0
        %5105 = vmatpush1.bf16.xpose.msra.mxu0 %v5078
        %5106 = vmatprep.subr.bf16.mxu0 0
        %5107 = vmatpush1.bf16.xpose.msra.mxu0 %v5077
        %5108 = vmatprep.subr.bf16.mxu0 0
        %5109 = vmatpush1.bf16.xpose.msra.mxu0 %v5076
        %5110 = vmatprep.subr.bf16.mxu0 0
        %5111 = vmatpush2.bf16.xpose.msra.mxu0 0
        %5112 = vmatprep.subr.bf16.mxu0 0
        %5113 = vmatpush2.bf16.xpose.msra.mxu0 0
        %5114 = vmatprep.subr.bf16.mxu0 0
        %5115 = vmatpush2.bf16.xpose.msra.mxu0 0
        %5116 = vmatprep.subr.bf16.mxu0 0
        %5117 = vmatpush2.bf16.xpose.msra.mxu0 0
        %5118 = vmatprep.subr.bf16.mxu0 0
        %5119 = vmatpush2.bf16.xpose.msra.mxu0 0
        %5120 = vmatprep.subr.bf16.mxu0 0
        %5121 = vmatpush2.bf16.xpose.msra.mxu0 0
        %5122 = vmatprep.subr.bf16.mxu0 0
        %5123 = vmatpush2.bf16.xpose.msra.mxu0 0
        %5124 = vmatprep.subr.bf16.mxu0 0
        %5125 = vmatpush2.bf16.xpose.msra.mxu0 0
        %5126 = vmatprep.mubr.bf16.mxu0 0
        %5127 = vmatmul.mubr.bf16.gmra.mxu0 %v5093
        %v5128 = vpop.f32.mrf.mxu0
        %v5129 = vadd.f32 0.0, %v5128
        %v5130 = vpop.f32.mrf.mxu0
        %v5131 = vpop.f32.mrf.mxu0
        %v5132 = vpop.f32.mrf.mxu0
        %5133 = vdwg.mxu0
        %v5134 = vadd.f32 %v4837, %v5129
        %s5135 = scalar_lea.vmem [#allocation16], 512
        %v5136 = vld [vmem:[%s5135] sm:$0xf]
        %5137 = vmatprep.subr.bf16.mxu0 0
        %5138 = vmatpush1.bf16.xpose.msra.mxu0 0
        %5139 = vmatprep.subr.bf16.mxu0 0
        %5140 = vmatpush1.bf16.xpose.msra.mxu0 0
        %5141 = vmatprep.subr.bf16.mxu0 0
        %5142 = vmatpush1.bf16.xpose.msra.mxu0 0
        %5143 = vmatprep.subr.bf16.mxu0 0
        %5144 = vmatpush1.bf16.xpose.msra.mxu0 0
        %5145 = vmatprep.subr.bf16.mxu0 0
        %5146 = vmatpush1.bf16.xpose.msra.mxu0 %v5091
        %5147 = vmatprep.subr.bf16.mxu0 0
        %5148 = vmatpush1.bf16.xpose.msra.mxu0 %v5090
        %5149 = vmatprep.subr.bf16.mxu0 0
        %5150 = vmatpush1.bf16.xpose.msra.mxu0 %v5089
        %5151 = vmatprep.subr.bf16.mxu0 0
        %5152 = vmatpush1.bf16.xpose.msra.mxu0 %v5088
        %5153 = vmatprep.subr.bf16.mxu0 0
        %5154 = vmatpush2.bf16.xpose.msra.mxu0 0
        %5155 = vmatprep.subr.bf16.mxu0 0
        %5156 = vmatpush2.bf16.xpose.msra.mxu0 0
        %5157 = vmatprep.subr.bf16.mxu0 0
        %5158 = vmatpush2.bf16.xpose.msra.mxu0 0
        %5159 = vmatprep.subr.bf16.mxu0 0
        %5160 = vmatpush2.bf16.xpose.msra.mxu0 0
        %5161 = vmatprep.subr.bf16.mxu0 0
        %5162 = vmatpush2.bf16.xpose.msra.mxu0 0
        %5163 = vmatprep.subr.bf16.mxu0 0
        %5164 = vmatpush2.bf16.xpose.msra.mxu0 0
        %5165 = vmatprep.subr.bf16.mxu0 0
        %5166 = vmatpush2.bf16.xpose.msra.mxu0 0
        %5167 = vmatprep.subr.bf16.mxu0 0
        %5168 = vmatpush2.bf16.xpose.msra.mxu0 0
        %5169 = vmatprep.mubr.bf16.mxu0 0
        %5170 = vmatmul.mubr.bf16.gmra.mxu0 %v5136
        %v5171 = vpop.f32.mrf.mxu0
        %v5172 = vadd.f32 0.0, %v5171
        %v5173 = vpop.f32.mrf.mxu0
        %v5174 = vpop.f32.mrf.mxu0
        %v5175 = vpop.f32.mrf.mxu0
        %5176 = vdwg.mxu0
        %v5177 = vadd.f32 %v5134, %v5172
        %v5178 = vld [vmem:[%s9] sm:$0xff]
        %5180 = vset.pattern.permute.xlu0 0
        %5181 = vperm.xlu0 %5180, %v5178
        %v5182 = vpop.permute.xlu0 %5181
        %v5184 = vadd.f32 %v5177, %v5182
        %v5185 = vmul.f32 %v5184, %v5184
        %v5186 = vmul.f32 %v5185, %v5184
        %vm5187 = vcmask 523264
        %5188 = vst.msk [vmem:[%s463] sm:$0xff] %vm5187, %v5186
        %s5189 = sand.u32 %s252, 1
        %s5190 = scalar_lea.sflag [#allocation6], %s5189
        %s5191 = sand.u32 %s252, 1
        %s5192 = smul.addr %s5191, 8
        %s5193 = scalar_lea.vmem [#allocation18], %s5192
        // Predicated region
        $region107: #{simple_cnn_sigmoid_forward.1} parent=59 // pred_check
          %p5194 = pneg %p262
        $region108: #{simple_cnn_sigmoid_forward.1} parent=59 // pred_check_branch
          %5196 = sbr.rel (%p5194) target = $region110
        $region109: #{simple_cnn_sigmoid_forward.1} parent=59 // pred_region
          %s5198 = ssub.s32 128, 128
          %5199 = vsyncadd %s5190, %s5198
          %s5200 = smul.addr %s29, 128
          %s5201 = scalar_lea.hbm %s10, %s5200
          %s5203 = sshll.u32 %s5193, 4
          %s5204 = int_to_ptr.vmem [resolvable:$true] %s5203
          %5206 = dma.vmem_to_hbm [thread:$0]  %s5204, 128, %s5201, %s5190
        $region110: #{simple_cnn_sigmoid_forward.1} parent=59 // pred_fallthru
          _
      $region60: #{simple_cnn_sigmoid_forward.1} parent=5 // pred_fallthru
        _
      %p5207 = scmp.le.s32.totalorder 2, %s24
      // Predicated region
      $region111: #{simple_cnn_sigmoid_forward.1} parent=5 // pred_check
        %p5208 = pneg %p5207
      $region112: #{simple_cnn_sigmoid_forward.1} parent=5 // pred_check_branch
        %5210 = sbr.rel (%p5208) target = $region114
      $region113: #{simple_cnn_sigmoid_forward.1} parent=5 // pred_region
        %s5211 = ssub.s32 %s24, 2
        // Predicated region
        $region115: #{simple_cnn_sigmoid_forward.1} parent=113 // pred_check
          %p5212 = pneg %p268
        $region116: #{simple_cnn_sigmoid_forward.1} parent=113 // pred_check_branch
          %5214 = sbr.rel (%p5212) target = $region118
        $region117: #{simple_cnn_sigmoid_forward.1} parent=113 // pred_region
          %s5215 = sand.u32 %s253, 1
          %s5216 = scalar_lea.sflag [#allocation6], %s5215
          %s5217 = sand.u32 %s253, 1
          %s5218 = smul.addr %s5217, 8
          %s5219 = scalar_lea.vmem [#allocation18], %s5218
          %5220 = dma.done %s5216, 128
        $region118: #{simple_cnn_sigmoid_forward.1} parent=113 // pred_fallthru
          _
      $region114: #{simple_cnn_sigmoid_forward.1} parent=5 // pred_fallthru
        _
    $region6: #{simple_cnn_sigmoid_forward.1} parent=1 // loop_footer
      %s28 = sadd.s32 1, %s24
    $region7: #{simple_cnn_sigmoid_forward.1} parent=1 // loop_footer_branch
      %23 = sbr.rel target = $region3
    $region8: #{simple_cnn_sigmoid_forward.1} parent=1 // loop_exit
      _
    %5221 = vsyncpa [#allocation5], 1
    %s5222 = scalar_lea.sflag [#allocation5], 1
    %5223 = vsyncpa %s5222, 1
    %5224 = vsyncpa [#allocation8], 1
    %5225 = vsyncpa [#allocation11], 1
    %5226 = vsyncpa [#allocation14], 1
    %5227 = vsyncpa [#allocation17], 1
    %5228 = vsyncpa [#allocation6], 1
    %s5229 = scalar_lea.sflag [#allocation6], 1
    %5230 = vsyncpa %s5229, 1

</llo_original>
